<compile_context>
chip_gen: v7x
topology: tpu7x:2x2x1
jax: 0.10.0
libtpu: 0.0.40
codegen_flags: <defaults>
</compile_context>

<pallas_src>
import jax
import jax.numpy as jnp
from jax.experimental import pallas as pl
from jax.experimental.pallas import tpu as pltpu

# ---------------- synthetic small config (consistent with the module) --------
DICT_SIZE = 50
EMBED_DIM = 32                  # embedding_dim
IN_DIM = EMBED_DIM + 1          # embedding + keyword flag = 33
HIDDEN = 16                     # hidden_dim
N_LAYERS = 2                    # n_layers
NUM_DIRS = 2                    # bidirectional=True
OUT_SIZE = 1                    # output_size
BATCH = 2
SEQ = 16
CONV_CH = 32
K_CONV = 3
L1 = SEQ - (K_CONV - 1)         # 14  after conv1
L2 = L1 // 3                    # 4   after MaxPool1d(3)
L3 = L2 - (K_CONV - 1)          # 2   after conv2
GB = NUM_DIRS * HIDDEN          # 32  one gate block (fwd|bwd)
GATES2 = 4 * GB                 # 128 all gates, both directions (one vreg wide)

# bf16 matmul-weight slab row offsets (16-row aligned for bf16 sublane tiling)
WQ_IH0 = 0                      # (2*IN_DIM, 128) = (66,128)   layer-0 input proj
WQ_HH0 = 80                     # (32,128)                      layer-0 recurrent
WQ_IH1 = 112                    # (64,128)                      layer-1 input proj
WQ_HH1 = 176                    # (32,128)                      layer-1 recurrent
WQ_C1 = 208                     # (99, 32)                      conv1 im2col weight
WQ_C2 = 320                     # (96, 32)                      conv2 im2col weight
WQ_ROWS = 416

# f32 bias / head slab row offsets (8-row aligned)
WF_B0 = 0                       # lstm layer-0 bias  (1,128)
WF_B1 = 8                       # lstm layer-1 bias  (1,128)
WF_BC1 = 16                     # conv1 bias         (1,32)
WF_BC2 = 24                     # conv2 bias         (1,32)
WF_FC = 32                      # fc weight          (1,64)
WF_BFC = 40                     # fc bias            (1,1)
WF_ROWS = 48


# ------------------------------ fused kernel ----------------------------------
def _fused_kernel(wq_ref, wf_ref, lhs0_ref, im2col_ref, pm_ref, hc0_ref, out_ref):
    H = HIDDEN

    # -------- loop-invariant weight loads (static slab slices, hoisted) ------
    w_ih0 = wq_ref[WQ_IH0:WQ_IH0 + 2 * IN_DIM, :]               # (66,128) bf16
    w_hh0 = wq_ref[WQ_HH0:WQ_HH0 + GB, :]                        # (32,128) bf16
    w_ih1 = wq_ref[WQ_IH1:WQ_IH1 + 2 * GB, :]                    # (64,128) bf16
    w_hh1 = wq_ref[WQ_HH1:WQ_HH1 + GB, :]                        # (32,128) bf16
    w_c1 = wq_ref[WQ_C1:WQ_C1 + K_CONV * IN_DIM, 0:CONV_CH]      # (99,32)  bf16
    w_c2 = wq_ref[WQ_C2:WQ_C2 + K_CONV * CONV_CH, 0:CONV_CH]     # (96,32)  bf16
    b_l0 = wf_ref[WF_B0:WF_B0 + 1, :]                            # (1,128)  f32
    b_l1 = wf_ref[WF_B1:WF_B1 + 1, :]
    b_c1 = wf_ref[WF_BC1:WF_BC1 + 1, 0:CONV_CH]
    b_c2 = wf_ref[WF_BC2:WF_BC2 + 1, 0:CONV_CH]
    w_fc = wf_ref[WF_FC:WF_FC + 1, 0:GB + CONV_CH]               # (1,64)
    b_fc = wf_ref[WF_BFC:WF_BFC + 1, 0:1]                        # (1,1)

    # per-step validity (pack_padded semantics): lanes 0:H fwd, H:2H bwd
    sel = pm_ref[...] != 0.0                                     # (S,B,2H) bool

    def lstm_layer(xproj, w_hh, h, c):
        """Fully unrolled bidirectional layer. State packed (B,2H)=[fwd|bwd];
        gate columns gate-major/direction-minor -> 32-lane-aligned slices."""
        outs = []
        for t in range(SEQ):
            xp = xproj[t * BATCH:(t + 1) * BATCH]                # (B,128), precomputed
            gates = xp + jnp.dot(h.astype(jnp.bfloat16), w_hh,
                                 preferred_element_type=jnp.float32)
            sg = jax.nn.sigmoid(gates)                           # one 128-lane EUP pass
            th = jnp.tanh(gates)
            i_g = sg[:, 0:GB]
            f_g = sg[:, GB:2 * GB]
            g_g = th[:, 2 * GB:3 * GB]
            o_g = sg[:, 3 * GB:4 * GB]
            c_new = f_g * c + i_g * g_g
            h_new = o_g * jnp.tanh(c_new)
            st = sel[t]
            h = jnp.where(st, h_new, h)                          # freeze past seq length
            c = jnp.where(st, c_new, c)
            outs.append(jnp.where(st, h_new, 0.0))               # pad_packed zero-fill
        return outs

    # -------- layer 0: one hoisted input-projection matmul + unrolled loop ---
    xproj0 = jnp.dot(lhs0_ref[...], w_ih0,
                     preferred_element_type=jnp.float32) + b_l0  # (S*B,128)
    outs0 = lstm_layer(xproj0, w_hh0, hc0_ref[0], hc0_ref[1])

    # re-index layer-0 outputs by original timestep per direction (trace-time)
    yf = [None] * SEQ
    yb = [None] * SEQ
    for t in range(SEQ):
        yf[t] = outs0[t][:, 0:H]                                 # fwd output at time t
        yb[SEQ - 1 - t] = outs0[t][:, H:2 * H]                   # bwd output at time S-1-t

    # -------- layer 1: single hoisted projection on layer-0 outputs ----------
    rows1 = [jnp.concatenate([yf[t], yb[t], yf[SEQ - 1 - t], yb[SEQ - 1 - t]],
                             axis=-1) for t in range(SEQ)]       # (B,64) each
    lhs1 = jnp.concatenate(rows1, axis=0).astype(jnp.bfloat16)   # (S*B,64)
    xproj1 = jnp.dot(lhs1, w_ih1,
                     preferred_element_type=jnp.float32) + b_l1  # (S*B,128)
    outs1 = lstm_layer(xproj1, w_hh1, hc0_ref[2], hc0_ref[3])

    # torch.max over the zero-filled padded LSTM output: running packed max,
    # fed the masked (zero-filled) per-step outputs -> no (S,B,H) buffers.
    lstm_max = outs1[0]
    for t in range(1, SEQ):
        lstm_max = jnp.maximum(lstm_max, outs1[t])               # (B,2H)

    # -------- conv branch: im2col prebuilt in wrapper, one matmul per conv ---
    a1 = jnp.dot(im2col_ref[...], w_c1,
                 preferred_element_type=jnp.float32) + b_c1      # (L1*B,32)
    a1 = jnp.maximum(a1, 0.0)
    pooled = []                                                  # MaxPool1d(3, stride=3)
    for j in range(L2):
        p = a1[(3 * j) * BATCH:(3 * j + 1) * BATCH]
        p = jnp.maximum(p, a1[(3 * j + 1) * BATCH:(3 * j + 2) * BATCH])
        p = jnp.maximum(p, a1[(3 * j + 2) * BATCH:(3 * j + 3) * BATCH])
        pooled.append(p)                                         # (B,32) each
    rows2 = [jnp.concatenate([pooled[j + k] for k in range(K_CONV)], axis=-1)
             for j in range(L3)]                                 # (B,96) each
    lhs2 = jnp.concatenate(rows2, axis=0).astype(jnp.bfloat16)   # (L3*B,96)
    a2 = jnp.dot(lhs2, w_c2, preferred_element_type=jnp.float32) + b_c2
    a2 = jnp.maximum(a2, 0.0)
    conv_feat = a2[0:BATCH]
    for j in range(1, L3):
        conv_feat = jnp.maximum(conv_feat, a2[j * BATCH:(j + 1) * BATCH])  # (B,32)

    # -------- final fc (OUT_SIZE=1 -> VPU mul + lane reduce) + sigmoid --------
    feat = jnp.concatenate([lstm_max, conv_feat], axis=-1)       # (B,64)
    logit = jnp.sum(feat * w_fc, axis=-1, keepdims=True) + b_fc
    out_ref[...] = jax.nn.sigmoid(logit)                         # normalize_output


def _sentiment_pallas(wq, wf, lhs0, im2col1, pm, hc0):
    def full_spec(shape):
        nd = len(shape)
        return pl.BlockSpec(shape, lambda i, _nd=nd: (0,) * _nd)

    ins = [wq, wf, lhs0, im2col1, pm, hc0]
    return pl.pallas_call(
        _fused_kernel,
        out_shape=jax.ShapeDtypeStruct((BATCH, OUT_SIZE), jnp.float32),
        grid=(1,),
        in_specs=[full_spec(a.shape) for a in ins],
        out_specs=pl.BlockSpec((BATCH, OUT_SIZE), lambda i: (0, 0)),
        compiler_params=pltpu.CompilerParams(
            dimension_semantics=("arbitrary",)),
    )(*ins)


# ------------------------------- full forward --------------------------------
@jax.jit
def sentiment_forward(x, s_lengths, params):
    """x: (B, S, 2) int32, s_lengths: (B,) int32. Returns (B, OUT_SIZE) f32."""
    tokens = x[:, :, 0]
    flags = x[:, :, 1].astype(jnp.float32)[..., None]
    # TODO(synk): embedding gather stays as XLA glue (no clean tiny-table
    # dynamic-gather Pallas path worth it at this size).
    emb = jnp.take(params['embedding'], tokens, axis=0)           # (B,S,E)
    embedded = jnp.concatenate([emb, flags], axis=-1)             # (B,S,E+1)
    emb_tm = jnp.transpose(embedded, (1, 0, 2))                   # (S,B,E+1)

    # layer-0 projection LHS: row block t = [x(t) | x(S-1-t)] (layout plumbing)
    lhs0 = jnp.concatenate([emb_tm, emb_tm[::-1]], axis=-1)       # (S,B,66)
    lhs0 = lhs0.reshape(SEQ * BATCH, 2 * IN_DIM).astype(jnp.bfloat16)

    # conv1 im2col slab, rows time-major (row = t*B + b)
    im2col1 = jnp.concatenate([emb_tm[k:k + L1] for k in range(K_CONV)], axis=-1)
    im2col1 = im2col1.reshape(L1 * BATCH, K_CONV * IN_DIM).astype(jnp.bfloat16)

    # per-step packed validity mask: lanes 0:H fwd (t<len), H:2H bwd (S-1-t<len)
    t_idx = jnp.arange(SEQ, dtype=jnp.int32)
    lens = s_lengths.astype(jnp.int32)
    mf = (t_idx[:, None] < lens[None, :]).astype(jnp.float32)     # (S,B)
    mb = ((SEQ - 1 - t_idx)[:, None] < lens[None, :]).astype(jnp.float32)
    pm = jnp.concatenate(
        [jnp.broadcast_to(mf[..., None], (SEQ, BATCH, HIDDEN)),
         jnp.broadcast_to(mb[..., None], (SEQ, BATCH, HIDDEN))], axis=-1)

    # packed initial states: rows [h_l0, c_l0, h_l1, c_l1], lanes [fwd|bwd]
    h0, c0 = params['h0'], params['c0']
    hc0 = jnp.stack([jnp.concatenate([h0[0], h0[1]], axis=-1),
                     jnp.concatenate([c0[0], c0[1]], axis=-1),
                     jnp.concatenate([h0[2], h0[3]], axis=-1),
                     jnp.concatenate([c0[2], c0[3]], axis=-1)], axis=0)

    return _sentiment_pallas(params['wq'], params['wf'], lhs0, im2col1, pm, hc0)


# ------------------------------ parameter init --------------------------------
def init_params(key):
    p = {}
    keys = iter(jax.random.split(key, 64))
    scale = 0.1

    embt = jax.random.normal(next(keys), (DICT_SIZE, EMBED_DIM), jnp.float32) * scale
    p['embedding'] = embt.at[0].set(0.0)                          # padding_idx=0

    # LSTM weights: block-diagonal input / recurrent projections with columns
    # packed gate-major / direction-minor ([i_f i_b | f_f f_b | g_f g_b | o_f o_b]).
    def pack_layer(din):
        w_ih_blk = jnp.zeros((NUM_DIRS * din, GATES2), jnp.float32)
        w_hh_blk = jnp.zeros((NUM_DIRS * HIDDEN, GATES2), jnp.float32)
        bias = jnp.zeros((GATES2,), jnp.float32)
        for d in range(NUM_DIRS):
            w_ih = jax.random.normal(next(keys), (4 * HIDDEN, din), jnp.float32) * scale
            w_hh = jax.random.normal(next(keys), (4 * HIDDEN, HIDDEN), jnp.float32) * scale
            b_ih = jax.random.normal(next(keys), (4 * HIDDEN,), jnp.float32) * scale
            b_hh = jax.random.normal(next(keys), (4 * HIDDEN,), jnp.float32) * scale
            for g in range(4):                                    # torch gate order i,f,g,o
                col = GB * g + HIDDEN * d
                w_ih_blk = w_ih_blk.at[d * din:(d + 1) * din, col:col + HIDDEN].set(
                    w_ih[g * HIDDEN:(g + 1) * HIDDEN, :].T)
                w_hh_blk = w_hh_blk.at[d * HIDDEN:(d + 1) * HIDDEN, col:col + HIDDEN].set(
                    w_hh[g * HIDDEN:(g + 1) * HIDDEN, :].T)
                bias = bias.at[col:col + HIDDEN].set(
                    b_ih[g * HIDDEN:(g + 1) * HIDDEN] + b_hh[g * HIDDEN:(g + 1) * HIDDEN])
        return w_ih_blk, w_hh_blk, bias

    w_ih0, w_hh0, bias0 = pack_layer(IN_DIM)
    w_ih1, w_hh1, bias1 = pack_layer(NUM_DIRS * HIDDEN)

    # init_hidden(batch_size, stddev=1); order [l0_fwd, l0_bwd, l1_fwd, l1_bwd]
    p['h0'] = jax.random.normal(next(keys),
                                (N_LAYERS * NUM_DIRS, BATCH, HIDDEN), jnp.float32)
    p['c0'] = jax.random.normal(next(keys),
                                (N_LAYERS * NUM_DIRS, BATCH, HIDDEN), jnp.float32)

    # conv1 / conv2: torch layout (out, in, k) -> im2col weights (k*in, out)
    w1 = jax.random.normal(next(keys), (CONV_CH, IN_DIM, K_CONV), jnp.float32) * scale
    b1 = jax.random.normal(next(keys), (CONV_CH,), jnp.float32) * scale
    w2 = jax.random.normal(next(keys), (CONV_CH, CONV_CH, K_CONV), jnp.float32) * scale
    b2 = jax.random.normal(next(keys), (CONV_CH,), jnp.float32) * scale
    w1_mat = jnp.transpose(w1, (2, 1, 0)).reshape(K_CONV * IN_DIM, CONV_CH)
    w2_mat = jnp.transpose(w2, (2, 1, 0)).reshape(K_CONV * CONV_CH, CONV_CH)

    w_fc = jax.random.normal(next(keys),
                             (OUT_SIZE, NUM_DIRS * HIDDEN + CONV_CH), jnp.float32) * scale
    b_fc = jax.random.normal(next(keys), (OUT_SIZE,), jnp.float32) * scale

    # ---- one bf16 slab for all matmul weights (single DMA, 16-row aligned) --
    wq = jnp.zeros((WQ_ROWS, 128), jnp.float32)
    wq = wq.at[WQ_IH0:WQ_IH0 + 2 * IN_DIM, :].set(w_ih0)
    wq = wq.at[WQ_HH0:WQ_HH0 + GB, :].set(w_hh0)
    wq = wq.at[WQ_IH1:WQ_IH1 + 2 * GB, :].set(w_ih1)
    wq = wq.at[WQ_HH1:WQ_HH1 + GB, :].set(w_hh1)
    wq = wq.at[WQ_C1:WQ_C1 + K_CONV * IN_DIM, 0:CONV_CH].set(w1_mat)
    wq = wq.at[WQ_C2:WQ_C2 + K_CONV * CONV_CH, 0:CONV_CH].set(w2_mat)
    p['wq'] = wq.astype(jnp.bfloat16)

    # ---- one f32 slab for biases + fc head (single DMA, 8-row aligned) ------
    wf = jnp.zeros((WF_ROWS, 128), jnp.float32)
    wf = wf.at[WF_B0, :].set(bias0)
    wf = wf.at[WF_B1, :].set(bias1)
    wf = wf.at[WF_BC1, 0:CONV_CH].set(b1)
    wf = wf.at[WF_BC2, 0:CONV_CH].set(b2)
    wf = wf.at[WF_FC, 0:NUM_DIRS * HIDDEN + CONV_CH].set(w_fc[0])
    wf = wf.at[WF_BFC, 0].set(b_fc[0])
    p['wf'] = wf
    return p


# ----------------------------------- main -------------------------------------
if __name__ == "__main__":
    key = jax.random.PRNGKey(0)
    pkey, tkey, fkey = jax.random.split(key, 3)
    params = init_params(pkey)

    tokens = jax.random.randint(tkey, (BATCH, SEQ), 1, DICT_SIZE, dtype=jnp.int32)
    flags = jax.random.randint(fkey, (BATCH, SEQ), 0, 2, dtype=jnp.int32)
    # max(s_lengths) == SEQ so pad_packed_sequence's output length matches SEQ.
    s_lengths = jnp.array([SEQ, 11], dtype=jnp.int32)
    pos = jnp.arange(SEQ, dtype=jnp.int32)[None, :]
    pad_mask = pos < s_lengths[:, None]
    tokens = jnp.where(pad_mask, tokens, 0)                       # padding_idx=0
    flags = jnp.where(pad_mask, flags, 0)
    x = jnp.stack([tokens, flags], axis=-1)                       # (B, S, 2)

    out = sentiment_forward(x, s_lengths, params)
    out = jax.block_until_ready(out)
    assert out.shape == (BATCH, OUT_SIZE)
    print("KERNEL_OK")
</pallas_src>

<mosaic_0001>
module attributes {stable_mosaic.version = 11 : i64} {
  func.func @_fused_kernel(%arg0: i32, %arg1: memref<416x128xbf16, #tpu.memory_space<vmem>>, %arg2: memref<48x128xf32, #tpu.memory_space<vmem>>, %arg3: memref<32x66xbf16, #tpu.memory_space<vmem>>, %arg4: memref<28x99xbf16, #tpu.memory_space<vmem>>, %arg5: memref<16x2x32xf32, #tpu.memory_space<vmem>>, %arg6: memref<4x2x32xf32, #tpu.memory_space<vmem>>, %arg7: memref<2x1xf32, #tpu.memory_space<vmem>>) attributes {dimension_semantics = [#tpu.dimension_semantics<arbitrary>], iteration_bounds = array<i64: 1>, scalar_prefetch = 0 : i64, scratch_operands = 0 : i64, tpu.core_type = #tpu.core_type<tc>, window_params = [{pipeline_mode = #tpu.pipeline_mode<synchronous>, transform_indices = @transform_0, window_bounds = array<i64: 416, 128>}, {pipeline_mode = #tpu.pipeline_mode<synchronous>, transform_indices = @transform_1, window_bounds = array<i64: 48, 128>}, {pipeline_mode = #tpu.pipeline_mode<synchronous>, transform_indices = @transform_2, window_bounds = array<i64: 32, 66>}, {pipeline_mode = #tpu.pipeline_mode<synchronous>, transform_indices = @transform_3, window_bounds = array<i64: 28, 99>}, {pipeline_mode = #tpu.pipeline_mode<synchronous>, transform_indices = @transform_4, window_bounds = array<i64: 16, 2, 32>}, {pipeline_mode = #tpu.pipeline_mode<synchronous>, transform_indices = @transform_5, window_bounds = array<i64: 4, 2, 32>}, {pipeline_mode = #tpu.pipeline_mode<synchronous>, transform_indices = @transform_6, window_bounds = array<i64: 2, 1>}]} {
    %c0 = arith.constant 0 : index
    %c0_0 = arith.constant 0 : index
    %0 = vector.load %arg1[%c0, %c0_0] : memref<416x128xbf16, #tpu.memory_space<vmem>>, vector<66x128xbf16>
    %c80 = arith.constant 80 : index
    %c0_1 = arith.constant 0 : index
    %1 = vector.load %arg1[%c80, %c0_1] : memref<416x128xbf16, #tpu.memory_space<vmem>>, vector<32x128xbf16>
    %c112 = arith.constant 112 : index
    %c0_2 = arith.constant 0 : index
    %2 = vector.load %arg1[%c112, %c0_2] : memref<416x128xbf16, #tpu.memory_space<vmem>>, vector<64x128xbf16>
    %c176 = arith.constant 176 : index
    %c0_3 = arith.constant 0 : index
    %3 = vector.load %arg1[%c176, %c0_3] : memref<416x128xbf16, #tpu.memory_space<vmem>>, vector<32x128xbf16>
    %c208 = arith.constant 208 : index
    %c0_4 = arith.constant 0 : index
    %4 = vector.load %arg1[%c208, %c0_4] : memref<416x128xbf16, #tpu.memory_space<vmem>>, vector<99x32xbf16>
    %c320 = arith.constant 320 : index
    %c0_5 = arith.constant 0 : index
    %5 = vector.load %arg1[%c320, %c0_5] : memref<416x128xbf16, #tpu.memory_space<vmem>>, vector<96x32xbf16>
    %c0_6 = arith.constant 0 : index
    %c0_7 = arith.constant 0 : index
    %6 = vector.load %arg2[%c0_6, %c0_7] : memref<48x128xf32, #tpu.memory_space<vmem>>, vector<1x128xf32>
    %c8 = arith.constant 8 : index
    %c0_8 = arith.constant 0 : index
    %7 = vector.load %arg2[%c8, %c0_8] : memref<48x128xf32, #tpu.memory_space<vmem>>, vector<1x128xf32>
    %c16 = arith.constant 16 : index
    %c0_9 = arith.constant 0 : index
    %8 = vector.load %arg2[%c16, %c0_9] : memref<48x128xf32, #tpu.memory_space<vmem>>, vector<1x32xf32>
    %c24 = arith.constant 24 : index
    %c0_10 = arith.constant 0 : index
    %9 = vector.load %arg2[%c24, %c0_10] : memref<48x128xf32, #tpu.memory_space<vmem>>, vector<1x32xf32>
    %c32 = arith.constant 32 : index
    %c0_11 = arith.constant 0 : index
    %10 = vector.load %arg2[%c32, %c0_11] : memref<48x128xf32, #tpu.memory_space<vmem>>, vector<1x64xf32>
    %c40 = arith.constant 40 : index
    %c0_12 = arith.constant 0 : index
    %11 = vector.load %arg2[%c40, %c0_12] : memref<48x128xf32, #tpu.memory_space<vmem>>, vector<1x1xf32>
    %c0_13 = arith.constant 0 : index
    %c0_14 = arith.constant 0 : index
    %c0_15 = arith.constant 0 : index
    %12 = vector.load %arg5[%c0_13, %c0_14, %c0_15] : memref<16x2x32xf32, #tpu.memory_space<vmem>>, vector<16x2x32xf32>
    %cst = arith.constant 0.000000e+00 : f32
    %13 = vector.broadcast %cst : f32 to vector<16x2x32xf32>
    %14 = arith.cmpf one, %12, %13 : vector<16x2x32xf32>
    %c0_16 = arith.constant 0 : index
    %c0_17 = arith.constant 0 : index
    %15 = vector.load %arg3[%c0_16, %c0_17] : memref<32x66xbf16, #tpu.memory_space<vmem>>, vector<32x66xbf16>
    %cst_18 = arith.constant dense<0.000000e+00> : vector<32x128xf32>
    %16 = tpu.matmul %15, %0, %cst_18 {dimension_numbers = #tpu.dot_dimension_numbers<[1], [0], [0], [1], [0, 0, 1, 1], [], []>} : vector<32x66xbf16>, vector<66x128xbf16>, vector<32x128xf32> -> vector<32x128xf32>
    %17 = vector.broadcast %6 : vector<1x128xf32> to vector<32x128xf32>
    %18 = arith.addf %16, %17 : vector<32x128xf32>
    %c0_19 = arith.constant 0 : index
    %c0_20 = arith.constant 0 : index
    %c0_21 = arith.constant 0 : index
    %19 = vector.load %arg6[%c0_19, %c0_20, %c0_21] : memref<4x2x32xf32, #tpu.memory_space<vmem>>, vector<1x2x32xf32>
    %20 = vector.shape_cast %19 : vector<1x2x32xf32> to vector<2x32xf32>
    %c1 = arith.constant 1 : index
    %c0_22 = arith.constant 0 : index
    %c0_23 = arith.constant 0 : index
    %21 = vector.load %arg6[%c1, %c0_22, %c0_23] : memref<4x2x32xf32, #tpu.memory_space<vmem>>, vector<1x2x32xf32>
    %22 = vector.shape_cast %21 : vector<1x2x32xf32> to vector<2x32xf32>
    %23 = vector.extract_strided_slice %18 {offsets = [0, 0], sizes = [2, 128], strides = [1, 1]} : vector<32x128xf32> to vector<2x128xf32>
    %24 = arith.truncf %20 : vector<2x32xf32> to vector<2x32xbf16>
    %cst_24 = arith.constant dense<0.000000e+00> : vector<2x128xf32>
    %25 = tpu.matmul %24, %1, %cst_24 {dimension_numbers = #tpu.dot_dimension_numbers<[1], [0], [0], [1], [0, 0, 1, 1], [], []>} : vector<2x32xbf16>, vector<32x128xbf16>, vector<2x128xf32> -> vector<2x128xf32>
    %26 = arith.addf %23, %25 : vector<2x128xf32>
    %27 = arith.negf %26 : vector<2x128xf32>
    %28 = math.exp %27 : vector<2x128xf32>
    %cst_25 = arith.constant 1.000000e+00 : f32
    %29 = vector.broadcast %cst_25 : f32 to vector<2x128xf32>
    %30 = arith.addf %29, %28 : vector<2x128xf32>
    %31 = arith.divf %29, %30 : vector<2x128xf32>
    %32 = math.tanh %26 : vector<2x128xf32>
    %33 = vector.extract_strided_slice %31 {offsets = [0, 0], sizes = [2, 32], strides = [1, 1]} : vector<2x128xf32> to vector<2x32xf32>
    %34 = vector.extract_strided_slice %31 {offsets = [0, 32], sizes = [2, 32], strides = [1, 1]} : vector<2x128xf32> to vector<2x32xf32>
    %35 = vector.extract_strided_slice %32 {offsets = [0, 64], sizes = [2, 32], strides = [1, 1]} : vector<2x128xf32> to vector<2x32xf32>
    %36 = vector.extract_strided_slice %31 {offsets = [0, 96], sizes = [2, 32], strides = [1, 1]} : vector<2x128xf32> to vector<2x32xf32>
    %37 = arith.mulf %34, %22 : vector<2x32xf32>
    %38 = arith.mulf %33, %35 : vector<2x32xf32>
    %39 = arith.addf %37, %38 : vector<2x32xf32>
    %40 = math.tanh %39 : vector<2x32xf32>
    %41 = arith.mulf %36, %40 : vector<2x32xf32>
    %42 = vector.extract_strided_slice %14 {offsets = [0, 0, 0], sizes = [1, 2, 32], strides = [1, 1, 1]} : vector<16x2x32xi1> to vector<1x2x32xi1>
    %43 = vector.shape_cast %42 : vector<1x2x32xi1> to vector<2x32xi1>
    %44 = arith.select %43, %41, %20 : vector<2x32xi1>, vector<2x32xf32>
    %45 = arith.select %43, %39, %22 : vector<2x32xi1>, vector<2x32xf32>
    %cst_26 = arith.constant 0.000000e+00 : f32
    %46 = vector.broadcast %cst_26 : f32 to vector<2x32xf32>
    %47 = arith.select %43, %41, %46 : vector<2x32xi1>, vector<2x32xf32>
    %48 = vector.extract_strided_slice %18 {offsets = [2, 0], sizes = [2, 128], strides = [1, 1]} : vector<32x128xf32> to vector<2x128xf32>
    %49 = arith.truncf %44 : vector<2x32xf32> to vector<2x32xbf16>
    %cst_27 = arith.constant dense<0.000000e+00> : vector<2x128xf32>
    %50 = tpu.matmul %49, %1, %cst_27 {dimension_numbers = #tpu.dot_dimension_numbers<[1], [0], [0], [1], [0, 0, 1, 1], [], []>} : vector<2x32xbf16>, vector<32x128xbf16>, vector<2x128xf32> -> vector<2x128xf32>
    %51 = arith.addf %48, %50 : vector<2x128xf32>
    %52 = arith.negf %51 : vector<2x128xf32>
    %53 = math.exp %52 : vector<2x128xf32>
    %cst_28 = arith.constant 1.000000e+00 : f32
    %54 = vector.broadcast %cst_28 : f32 to vector<2x128xf32>
    %55 = arith.addf %54, %53 : vector<2x128xf32>
    %56 = arith.divf %54, %55 : vector<2x128xf32>
    %57 = math.tanh %51 : vector<2x128xf32>
    %58 = vector.extract_strided_slice %56 {offsets = [0, 0], sizes = [2, 32], strides = [1, 1]} : vector<2x128xf32> to vector<2x32xf32>
    %59 = vector.extract_strided_slice %56 {offsets = [0, 32], sizes = [2, 32], strides = [1, 1]} : vector<2x128xf32> to vector<2x32xf32>
    %60 = vector.extract_strided_slice %57 {offsets = [0, 64], sizes = [2, 32], strides = [1, 1]} : vector<2x128xf32> to vector<2x32xf32>
    %61 = vector.extract_strided_slice %56 {offsets = [0, 96], sizes = [2, 32], strides = [1, 1]} : vector<2x128xf32> to vector<2x32xf32>
    %62 = arith.mulf %59, %45 : vector<2x32xf32>
    %63 = arith.mulf %58, %60 : vector<2x32xf32>
    %64 = arith.addf %62, %63 : vector<2x32xf32>
    %65 = math.tanh %64 : vector<2x32xf32>
    %66 = arith.mulf %61, %65 : vector<2x32xf32>
    %67 = vector.extract_strided_slice %14 {offsets = [1, 0, 0], sizes = [1, 2, 32], strides = [1, 1, 1]} : vector<16x2x32xi1> to vector<1x2x32xi1>
    %68 = vector.shape_cast %67 : vector<1x2x32xi1> to vector<2x32xi1>
    %69 = arith.select %68, %66, %44 : vector<2x32xi1>, vector<2x32xf32>
    %70 = arith.select %68, %64, %45 : vector<2x32xi1>, vector<2x32xf32>
    %cst_29 = arith.constant 0.000000e+00 : f32
    %71 = vector.broadcast %cst_29 : f32 to vector<2x32xf32>
    %72 = arith.select %68, %66, %71 : vector<2x32xi1>, vector<2x32xf32>
    %73 = vector.extract_strided_slice %18 {offsets = [4, 0], sizes = [2, 128], strides = [1, 1]} : vector<32x128xf32> to vector<2x128xf32>
    %74 = arith.truncf %69 : vector<2x32xf32> to vector<2x32xbf16>
    %cst_30 = arith.constant dense<0.000000e+00> : vector<2x128xf32>
    %75 = tpu.matmul %74, %1, %cst_30 {dimension_numbers = #tpu.dot_dimension_numbers<[1], [0], [0], [1], [0, 0, 1, 1], [], []>} : vector<2x32xbf16>, vector<32x128xbf16>, vector<2x128xf32> -> vector<2x128xf32>
    %76 = arith.addf %73, %75 : vector<2x128xf32>
    %77 = arith.negf %76 : vector<2x128xf32>
    %78 = math.exp %77 : vector<2x128xf32>
    %cst_31 = arith.constant 1.000000e+00 : f32
    %79 = vector.broadcast %cst_31 : f32 to vector<2x128xf32>
    %80 = arith.addf %79, %78 : vector<2x128xf32>
    %81 = arith.divf %79, %80 : vector<2x128xf32>
    %82 = math.tanh %76 : vector<2x128xf32>
    %83 = vector.extract_strided_slice %81 {offsets = [0, 0], sizes = [2, 32], strides = [1, 1]} : vector<2x128xf32> to vector<2x32xf32>
    %84 = vector.extract_strided_slice %81 {offsets = [0, 32], sizes = [2, 32], strides = [1, 1]} : vector<2x128xf32> to vector<2x32xf32>
    %85 = vector.extract_strided_slice %82 {offsets = [0, 64], sizes = [2, 32], strides = [1, 1]} : vector<2x128xf32> to vector<2x32xf32>
    %86 = vector.extract_strided_slice %81 {offsets = [0, 96], sizes = [2, 32], strides = [1, 1]} : vector<2x128xf32> to vector<2x32xf32>
    %87 = arith.mulf %84, %70 : vector<2x32xf32>
    %88 = arith.mulf %83, %85 : vector<2x32xf32>
    %89 = arith.addf %87, %88 : vector<2x32xf32>
    %90 = math.tanh %89 : vector<2x32xf32>
    %91 = arith.mulf %86, %90 : vector<2x32xf32>
    %92 = vector.extract_strided_slice %14 {offsets = [2, 0, 0], sizes = [1, 2, 32], strides = [1, 1, 1]} : vector<16x2x32xi1> to vector<1x2x32xi1>
    %93 = vector.shape_cast %92 : vector<1x2x32xi1> to vector<2x32xi1>
    %94 = arith.select %93, %91, %69 : vector<2x32xi1>, vector<2x32xf32>
    %95 = arith.select %93, %89, %70 : vector<2x32xi1>, vector<2x32xf32>
    %cst_32 = arith.constant 0.000000e+00 : f32
    %96 = vector.broadcast %cst_32 : f32 to vector<2x32xf32>
    %97 = arith.select %93, %91, %96 : vector<2x32xi1>, vector<2x32xf32>
    %98 = vector.extract_strided_slice %18 {offsets = [6, 0], sizes = [2, 128], strides = [1, 1]} : vector<32x128xf32> to vector<2x128xf32>
    %99 = arith.truncf %94 : vector<2x32xf32> to vector<2x32xbf16>
    %cst_33 = arith.constant dense<0.000000e+00> : vector<2x128xf32>
    %100 = tpu.matmul %99, %1, %cst_33 {dimension_numbers = #tpu.dot_dimension_numbers<[1], [0], [0], [1], [0, 0, 1, 1], [], []>} : vector<2x32xbf16>, vector<32x128xbf16>, vector<2x128xf32> -> vector<2x128xf32>
    %101 = arith.addf %98, %100 : vector<2x128xf32>
    %102 = arith.negf %101 : vector<2x128xf32>
    %103 = math.exp %102 : vector<2x128xf32>
    %cst_34 = arith.constant 1.000000e+00 : f32
    %104 = vector.broadcast %cst_34 : f32 to vector<2x128xf32>
    %105 = arith.addf %104, %103 : vector<2x128xf32>
    %106 = arith.divf %104, %105 : vector<2x128xf32>
    %107 = math.tanh %101 : vector<2x128xf32>
    %108 = vector.extract_strided_slice %106 {offsets = [0, 0], sizes = [2, 32], strides = [1, 1]} : vector<2x128xf32> to vector<2x32xf32>
    %109 = vector.extract_strided_slice %106 {offsets = [0, 32], sizes = [2, 32], strides = [1, 1]} : vector<2x128xf32> to vector<2x32xf32>
    %110 = vector.extract_strided_slice %107 {offsets = [0, 64], sizes = [2, 32], strides = [1, 1]} : vector<2x128xf32> to vector<2x32xf32>
    %111 = vector.extract_strided_slice %106 {offsets = [0, 96], sizes = [2, 32], strides = [1, 1]} : vector<2x128xf32> to vector<2x32xf32>
    %112 = arith.mulf %109, %95 : vector<2x32xf32>
    %113 = arith.mulf %108, %110 : vector<2x32xf32>
    %114 = arith.addf %112, %113 : vector<2x32xf32>
    %115 = math.tanh %114 : vector<2x32xf32>
    %116 = arith.mulf %111, %115 : vector<2x32xf32>
    %117 = vector.extract_strided_slice %14 {offsets = [3, 0, 0], sizes = [1, 2, 32], strides = [1, 1, 1]} : vector<16x2x32xi1> to vector<1x2x32xi1>
    %118 = vector.shape_cast %117 : vector<1x2x32xi1> to vector<2x32xi1>
    %119 = arith.select %118, %116, %94 : vector<2x32xi1>, vector<2x32xf32>
    %120 = arith.select %118, %114, %95 : vector<2x32xi1>, vector<2x32xf32>
    %cst_35 = arith.constant 0.000000e+00 : f32
    %121 = vector.broadcast %cst_35 : f32 to vector<2x32xf32>
    %122 = arith.select %118, %116, %121 : vector<2x32xi1>, vector<2x32xf32>
    %123 = vector.extract_strided_slice %18 {offsets = [8, 0], sizes = [2, 128], strides = [1, 1]} : vector<32x128xf32> to vector<2x128xf32>
    %124 = arith.truncf %119 : vector<2x32xf32> to vector<2x32xbf16>
    %cst_36 = arith.constant dense<0.000000e+00> : vector<2x128xf32>
    %125 = tpu.matmul %124, %1, %cst_36 {dimension_numbers = #tpu.dot_dimension_numbers<[1], [0], [0], [1], [0, 0, 1, 1], [], []>} : vector<2x32xbf16>, vector<32x128xbf16>, vector<2x128xf32> -> vector<2x128xf32>
    %126 = arith.addf %123, %125 : vector<2x128xf32>
    %127 = arith.negf %126 : vector<2x128xf32>
    %128 = math.exp %127 : vector<2x128xf32>
    %cst_37 = arith.constant 1.000000e+00 : f32
    %129 = vector.broadcast %cst_37 : f32 to vector<2x128xf32>
    %130 = arith.addf %129, %128 : vector<2x128xf32>
    %131 = arith.divf %129, %130 : vector<2x128xf32>
    %132 = math.tanh %126 : vector<2x128xf32>
    %133 = vector.extract_strided_slice %131 {offsets = [0, 0], sizes = [2, 32], strides = [1, 1]} : vector<2x128xf32> to vector<2x32xf32>
    %134 = vector.extract_strided_slice %131 {offsets = [0, 32], sizes = [2, 32], strides = [1, 1]} : vector<2x128xf32> to vector<2x32xf32>
    %135 = vector.extract_strided_slice %132 {offsets = [0, 64], sizes = [2, 32], strides = [1, 1]} : vector<2x128xf32> to vector<2x32xf32>
    %136 = vector.extract_strided_slice %131 {offsets = [0, 96], sizes = [2, 32], strides = [1, 1]} : vector<2x128xf32> to vector<2x32xf32>
    %137 = arith.mulf %134, %120 : vector<2x32xf32>
    %138 = arith.mulf %133, %135 : vector<2x32xf32>
    %139 = arith.addf %137, %138 : vector<2x32xf32>
    %140 = math.tanh %139 : vector<2x32xf32>
    %141 = arith.mulf %136, %140 : vector<2x32xf32>
    %142 = vector.extract_strided_slice %14 {offsets = [4, 0, 0], sizes = [1, 2, 32], strides = [1, 1, 1]} : vector<16x2x32xi1> to vector<1x2x32xi1>
    %143 = vector.shape_cast %142 : vector<1x2x32xi1> to vector<2x32xi1>
    %144 = arith.select %143, %141, %119 : vector<2x32xi1>, vector<2x32xf32>
    %145 = arith.select %143, %139, %120 : vector<2x32xi1>, vector<2x32xf32>
    %cst_38 = arith.constant 0.000000e+00 : f32
    %146 = vector.broadcast %cst_38 : f32 to vector<2x32xf32>
    %147 = arith.select %143, %141, %146 : vector<2x32xi1>, vector<2x32xf32>
    %148 = vector.extract_strided_slice %18 {offsets = [10, 0], sizes = [2, 128], strides = [1, 1]} : vector<32x128xf32> to vector<2x128xf32>
    %149 = arith.truncf %144 : vector<2x32xf32> to vector<2x32xbf16>
    %cst_39 = arith.constant dense<0.000000e+00> : vector<2x128xf32>
    %150 = tpu.matmul %149, %1, %cst_39 {dimension_numbers = #tpu.dot_dimension_numbers<[1], [0], [0], [1], [0, 0, 1, 1], [], []>} : vector<2x32xbf16>, vector<32x128xbf16>, vector<2x128xf32> -> vector<2x128xf32>
    %151 = arith.addf %148, %150 : vector<2x128xf32>
    %152 = arith.negf %151 : vector<2x128xf32>
    %153 = math.exp %152 : vector<2x128xf32>
    %cst_40 = arith.constant 1.000000e+00 : f32
    %154 = vector.broadcast %cst_40 : f32 to vector<2x128xf32>
    %155 = arith.addf %154, %153 : vector<2x128xf32>
    %156 = arith.divf %154, %155 : vector<2x128xf32>
    %157 = math.tanh %151 : vector<2x128xf32>
    %158 = vector.extract_strided_slice %156 {offsets = [0, 0], sizes = [2, 32], strides = [1, 1]} : vector<2x128xf32> to vector<2x32xf32>
    %159 = vector.extract_strided_slice %156 {offsets = [0, 32], sizes = [2, 32], strides = [1, 1]} : vector<2x128xf32> to vector<2x32xf32>
    %160 = vector.extract_strided_slice %157 {offsets = [0, 64], sizes = [2, 32], strides = [1, 1]} : vector<2x128xf32> to vector<2x32xf32>
    %161 = vector.extract_strided_slice %156 {offsets = [0, 96], sizes = [2, 32], strides = [1, 1]} : vector<2x128xf32> to vector<2x32xf32>
    %162 = arith.mulf %159, %145 : vector<2x32xf32>
    %163 = arith.mulf %158, %160 : vector<2x32xf32>
    %164 = arith.addf %162, %163 : vector<2x32xf32>
    %165 = math.tanh %164 : vector<2x32xf32>
    %166 = arith.mulf %161, %165 : vector<2x32xf32>
    %167 = vector.extract_strided_slice %14 {offsets = [5, 0, 0], sizes = [1, 2, 32], strides = [1, 1, 1]} : vector<16x2x32xi1> to vector<1x2x32xi1>
    %168 = vector.shape_cast %167 : vector<1x2x32xi1> to vector<2x32xi1>
    %169 = arith.select %168, %166, %144 : vector<2x32xi1>, vector<2x32xf32>
    %170 = arith.select %168, %164, %145 : vector<2x32xi1>, vector<2x32xf32>
    %cst_41 = arith.constant 0.000000e+00 : f32
    %171 = vector.broadcast %cst_41 : f32 to vector<2x32xf32>
    %172 = arith.select %168, %166, %171 : vector<2x32xi1>, vector<2x32xf32>
    %173 = vector.extract_strided_slice %18 {offsets = [12, 0], sizes = [2, 128], strides = [1, 1]} : vector<32x128xf32> to vector<2x128xf32>
    %174 = arith.truncf %169 : vector<2x32xf32> to vector<2x32xbf16>
    %cst_42 = arith.constant dense<0.000000e+00> : vector<2x128xf32>
    %175 = tpu.matmul %174, %1, %cst_42 {dimension_numbers = #tpu.dot_dimension_numbers<[1], [0], [0], [1], [0, 0, 1, 1], [], []>} : vector<2x32xbf16>, vector<32x128xbf16>, vector<2x128xf32> -> vector<2x128xf32>
    %176 = arith.addf %173, %175 : vector<2x128xf32>
    %177 = arith.negf %176 : vector<2x128xf32>
    %178 = math.exp %177 : vector<2x128xf32>
    %cst_43 = arith.constant 1.000000e+00 : f32
    %179 = vector.broadcast %cst_43 : f32 to vector<2x128xf32>
    %180 = arith.addf %179, %178 : vector<2x128xf32>
    %181 = arith.divf %179, %180 : vector<2x128xf32>
    %182 = math.tanh %176 : vector<2x128xf32>
    %183 = vector.extract_strided_slice %181 {offsets = [0, 0], sizes = [2, 32], strides = [1, 1]} : vector<2x128xf32> to vector<2x32xf32>
    %184 = vector.extract_strided_slice %181 {offsets = [0, 32], sizes = [2, 32], strides = [1, 1]} : vector<2x128xf32> to vector<2x32xf32>
    %185 = vector.extract_strided_slice %182 {offsets = [0, 64], sizes = [2, 32], strides = [1, 1]} : vector<2x128xf32> to vector<2x32xf32>
    %186 = vector.extract_strided_slice %181 {offsets = [0, 96], sizes = [2, 32], strides = [1, 1]} : vector<2x128xf32> to vector<2x32xf32>
    %187 = arith.mulf %184, %170 : vector<2x32xf32>
    %188 = arith.mulf %183, %185 : vector<2x32xf32>
    %189 = arith.addf %187, %188 : vector<2x32xf32>
    %190 = math.tanh %189 : vector<2x32xf32>
    %191 = arith.mulf %186, %190 : vector<2x32xf32>
    %192 = vector.extract_strided_slice %14 {offsets = [6, 0, 0], sizes = [1, 2, 32], strides = [1, 1, 1]} : vector<16x2x32xi1> to vector<1x2x32xi1>
    %193 = vector.shape_cast %192 : vector<1x2x32xi1> to vector<2x32xi1>
    %194 = arith.select %193, %191, %169 : vector<2x32xi1>, vector<2x32xf32>
    %195 = arith.select %193, %189, %170 : vector<2x32xi1>, vector<2x32xf32>
    %cst_44 = arith.constant 0.000000e+00 : f32
    %196 = vector.broadcast %cst_44 : f32 to vector<2x32xf32>
    %197 = arith.select %193, %191, %196 : vector<2x32xi1>, vector<2x32xf32>
    %198 = vector.extract_strided_slice %18 {offsets = [14, 0], sizes = [2, 128], strides = [1, 1]} : vector<32x128xf32> to vector<2x128xf32>
    %199 = arith.truncf %194 : vector<2x32xf32> to vector<2x32xbf16>
    %cst_45 = arith.constant dense<0.000000e+00> : vector<2x128xf32>
    %200 = tpu.matmul %199, %1, %cst_45 {dimension_numbers = #tpu.dot_dimension_numbers<[1], [0], [0], [1], [0, 0, 1, 1], [], []>} : vector<2x32xbf16>, vector<32x128xbf16>, vector<2x128xf32> -> vector<2x128xf32>
    %201 = arith.addf %198, %200 : vector<2x128xf32>
    %202 = arith.negf %201 : vector<2x128xf32>
    %203 = math.exp %202 : vector<2x128xf32>
    %cst_46 = arith.constant 1.000000e+00 : f32
    %204 = vector.broadcast %cst_46 : f32 to vector<2x128xf32>
    %205 = arith.addf %204, %203 : vector<2x128xf32>
    %206 = arith.divf %204, %205 : vector<2x128xf32>
    %207 = math.tanh %201 : vector<2x128xf32>
    %208 = vector.extract_strided_slice %206 {offsets = [0, 0], sizes = [2, 32], strides = [1, 1]} : vector<2x128xf32> to vector<2x32xf32>
    %209 = vector.extract_strided_slice %206 {offsets = [0, 32], sizes = [2, 32], strides = [1, 1]} : vector<2x128xf32> to vector<2x32xf32>
    %210 = vector.extract_strided_slice %207 {offsets = [0, 64], sizes = [2, 32], strides = [1, 1]} : vector<2x128xf32> to vector<2x32xf32>
    %211 = vector.extract_strided_slice %206 {offsets = [0, 96], sizes = [2, 32], strides = [1, 1]} : vector<2x128xf32> to vector<2x32xf32>
    %212 = arith.mulf %209, %195 : vector<2x32xf32>
    %213 = arith.mulf %208, %210 : vector<2x32xf32>
    %214 = arith.addf %212, %213 : vector<2x32xf32>
    %215 = math.tanh %214 : vector<2x32xf32>
    %216 = arith.mulf %211, %215 : vector<2x32xf32>
    %217 = vector.extract_strided_slice %14 {offsets = [7, 0, 0], sizes = [1, 2, 32], strides = [1, 1, 1]} : vector<16x2x32xi1> to vector<1x2x32xi1>
    %218 = vector.shape_cast %217 : vector<1x2x32xi1> to vector<2x32xi1>
    %219 = arith.select %218, %216, %194 : vector<2x32xi1>, vector<2x32xf32>
    %220 = arith.select %218, %214, %195 : vector<2x32xi1>, vector<2x32xf32>
    %cst_47 = arith.constant 0.000000e+00 : f32
    %221 = vector.broadcast %cst_47 : f32 to vector<2x32xf32>
    %222 = arith.select %218, %216, %221 : vector<2x32xi1>, vector<2x32xf32>
    %223 = vector.extract_strided_slice %18 {offsets = [16, 0], sizes = [2, 128], strides = [1, 1]} : vector<32x128xf32> to vector<2x128xf32>
    %224 = arith.truncf %219 : vector<2x32xf32> to vector<2x32xbf16>
    %cst_48 = arith.constant dense<0.000000e+00> : vector<2x128xf32>
    %225 = tpu.matmul %224, %1, %cst_48 {dimension_numbers = #tpu.dot_dimension_numbers<[1], [0], [0], [1], [0, 0, 1, 1], [], []>} : vector<2x32xbf16>, vector<32x128xbf16>, vector<2x128xf32> -> vector<2x128xf32>
    %226 = arith.addf %223, %225 : vector<2x128xf32>
    %227 = arith.negf %226 : vector<2x128xf32>
    %228 = math.exp %227 : vector<2x128xf32>
    %cst_49 = arith.constant 1.000000e+00 : f32
    %229 = vector.broadcast %cst_49 : f32 to vector<2x128xf32>
    %230 = arith.addf %229, %228 : vector<2x128xf32>
    %231 = arith.divf %229, %230 : vector<2x128xf32>
    %232 = math.tanh %226 : vector<2x128xf32>
    %233 = vector.extract_strided_slice %231 {offsets = [0, 0], sizes = [2, 32], strides = [1, 1]} : vector<2x128xf32> to vector<2x32xf32>
    %234 = vector.extract_strided_slice %231 {offsets = [0, 32], sizes = [2, 32], strides = [1, 1]} : vector<2x128xf32> to vector<2x32xf32>
    %235 = vector.extract_strided_slice %232 {offsets = [0, 64], sizes = [2, 32], strides = [1, 1]} : vector<2x128xf32> to vector<2x32xf32>
    %236 = vector.extract_strided_slice %231 {offsets = [0, 96], sizes = [2, 32], strides = [1, 1]} : vector<2x128xf32> to vector<2x32xf32>
    %237 = arith.mulf %234, %220 : vector<2x32xf32>
    %238 = arith.mulf %233, %235 : vector<2x32xf32>
    %239 = arith.addf %237, %238 : vector<2x32xf32>
    %240 = math.tanh %239 : vector<2x32xf32>
    %241 = arith.mulf %236, %240 : vector<2x32xf32>
    %242 = vector.extract_strided_slice %14 {offsets = [8, 0, 0], sizes = [1, 2, 32], strides = [1, 1, 1]} : vector<16x2x32xi1> to vector<1x2x32xi1>
    %243 = vector.shape_cast %242 : vector<1x2x32xi1> to vector<2x32xi1>
    %244 = arith.select %243, %241, %219 : vector<2x32xi1>, vector<2x32xf32>
    %245 = arith.select %243, %239, %220 : vector<2x32xi1>, vector<2x32xf32>
    %cst_50 = arith.constant 0.000000e+00 : f32
    %246 = vector.broadcast %cst_50 : f32 to vector<2x32xf32>
    %247 = arith.select %243, %241, %246 : vector<2x32xi1>, vector<2x32xf32>
    %248 = vector.extract_strided_slice %18 {offsets = [18, 0], sizes = [2, 128], strides = [1, 1]} : vector<32x128xf32> to vector<2x128xf32>
    %249 = arith.truncf %244 : vector<2x32xf32> to vector<2x32xbf16>
    %cst_51 = arith.constant dense<0.000000e+00> : vector<2x128xf32>
    %250 = tpu.matmul %249, %1, %cst_51 {dimension_numbers = #tpu.dot_dimension_numbers<[1], [0], [0], [1], [0, 0, 1, 1], [], []>} : vector<2x32xbf16>, vector<32x128xbf16>, vector<2x128xf32> -> vector<2x128xf32>
    %251 = arith.addf %248, %250 : vector<2x128xf32>
    %252 = arith.negf %251 : vector<2x128xf32>
    %253 = math.exp %252 : vector<2x128xf32>
    %cst_52 = arith.constant 1.000000e+00 : f32
    %254 = vector.broadcast %cst_52 : f32 to vector<2x128xf32>
    %255 = arith.addf %254, %253 : vector<2x128xf32>
    %256 = arith.divf %254, %255 : vector<2x128xf32>
    %257 = math.tanh %251 : vector<2x128xf32>
    %258 = vector.extract_strided_slice %256 {offsets = [0, 0], sizes = [2, 32], strides = [1, 1]} : vector<2x128xf32> to vector<2x32xf32>
    %259 = vector.extract_strided_slice %256 {offsets = [0, 32], sizes = [2, 32], strides = [1, 1]} : vector<2x128xf32> to vector<2x32xf32>
    %260 = vector.extract_strided_slice %257 {offsets = [0, 64], sizes = [2, 32], strides = [1, 1]} : vector<2x128xf32> to vector<2x32xf32>
    %261 = vector.extract_strided_slice %256 {offsets = [0, 96], sizes = [2, 32], strides = [1, 1]} : vector<2x128xf32> to vector<2x32xf32>
    %262 = arith.mulf %259, %245 : vector<2x32xf32>
    %263 = arith.mulf %258, %260 : vector<2x32xf32>
    %264 = arith.addf %262, %263 : vector<2x32xf32>
    %265 = math.tanh %264 : vector<2x32xf32>
    %266 = arith.mulf %261, %265 : vector<2x32xf32>
    %267 = vector.extract_strided_slice %14 {offsets = [9, 0, 0], sizes = [1, 2, 32], strides = [1, 1, 1]} : vector<16x2x32xi1> to vector<1x2x32xi1>
    %268 = vector.shape_cast %267 : vector<1x2x32xi1> to vector<2x32xi1>
    %269 = arith.select %268, %266, %244 : vector<2x32xi1>, vector<2x32xf32>
    %270 = arith.select %268, %264, %245 : vector<2x32xi1>, vector<2x32xf32>
    %cst_53 = arith.constant 0.000000e+00 : f32
    %271 = vector.broadcast %cst_53 : f32 to vector<2x32xf32>
    %272 = arith.select %268, %266, %271 : vector<2x32xi1>, vector<2x32xf32>
    %273 = vector.extract_strided_slice %18 {offsets = [20, 0], sizes = [2, 128], strides = [1, 1]} : vector<32x128xf32> to vector<2x128xf32>
    %274 = arith.truncf %269 : vector<2x32xf32> to vector<2x32xbf16>
    %cst_54 = arith.constant dense<0.000000e+00> : vector<2x128xf32>
    %275 = tpu.matmul %274, %1, %cst_54 {dimension_numbers = #tpu.dot_dimension_numbers<[1], [0], [0], [1], [0, 0, 1, 1], [], []>} : vector<2x32xbf16>, vector<32x128xbf16>, vector<2x128xf32> -> vector<2x128xf32>
    %276 = arith.addf %273, %275 : vector<2x128xf32>
    %277 = arith.negf %276 : vector<2x128xf32>
    %278 = math.exp %277 : vector<2x128xf32>
    %cst_55 = arith.constant 1.000000e+00 : f32
    %279 = vector.broadcast %cst_55 : f32 to vector<2x128xf32>
    %280 = arith.addf %279, %278 : vector<2x128xf32>
    %281 = arith.divf %279, %280 : vector<2x128xf32>
    %282 = math.tanh %276 : vector<2x128xf32>
    %283 = vector.extract_strided_slice %281 {offsets = [0, 0], sizes = [2, 32], strides = [1, 1]} : vector<2x128xf32> to vector<2x32xf32>
    %284 = vector.extract_strided_slice %281 {offsets = [0, 32], sizes = [2, 32], strides = [1, 1]} : vector<2x128xf32> to vector<2x32xf32>
    %285 = vector.extract_strided_slice %282 {offsets = [0, 64], sizes = [2, 32], strides = [1, 1]} : vector<2x128xf32> to vector<2x32xf32>
    %286 = vector.extract_strided_slice %281 {offsets = [0, 96], sizes = [2, 32], strides = [1, 1]} : vector<2x128xf32> to vector<2x32xf32>
    %287 = arith.mulf %284, %270 : vector<2x32xf32>
    %288 = arith.mulf %283, %285 : vector<2x32xf32>
    %289 = arith.addf %287, %288 : vector<2x32xf32>
    %290 = math.tanh %289 : vector<2x32xf32>
    %291 = arith.mulf %286, %290 : vector<2x32xf32>
    %292 = vector.extract_strided_slice %14 {offsets = [10, 0, 0], sizes = [1, 2, 32], strides = [1, 1, 1]} : vector<16x2x32xi1> to vector<1x2x32xi1>
    %293 = vector.shape_cast %292 : vector<1x2x32xi1> to vector<2x32xi1>
    %294 = arith.select %293, %291, %269 : vector<2x32xi1>, vector<2x32xf32>
    %295 = arith.select %293, %289, %270 : vector<2x32xi1>, vector<2x32xf32>
    %cst_56 = arith.constant 0.000000e+00 : f32
    %296 = vector.broadcast %cst_56 : f32 to vector<2x32xf32>
    %297 = arith.select %293, %291, %296 : vector<2x32xi1>, vector<2x32xf32>
    %298 = vector.extract_strided_slice %18 {offsets = [22, 0], sizes = [2, 128], strides = [1, 1]} : vector<32x128xf32> to vector<2x128xf32>
    %299 = arith.truncf %294 : vector<2x32xf32> to vector<2x32xbf16>
    %cst_57 = arith.constant dense<0.000000e+00> : vector<2x128xf32>
    %300 = tpu.matmul %299, %1, %cst_57 {dimension_numbers = #tpu.dot_dimension_numbers<[1], [0], [0], [1], [0, 0, 1, 1], [], []>} : vector<2x32xbf16>, vector<32x128xbf16>, vector<2x128xf32> -> vector<2x128xf32>
    %301 = arith.addf %298, %300 : vector<2x128xf32>
    %302 = arith.negf %301 : vector<2x128xf32>
    %303 = math.exp %302 : vector<2x128xf32>
    %cst_58 = arith.constant 1.000000e+00 : f32
    %304 = vector.broadcast %cst_58 : f32 to vector<2x128xf32>
    %305 = arith.addf %304, %303 : vector<2x128xf32>
    %306 = arith.divf %304, %305 : vector<2x128xf32>
    %307 = math.tanh %301 : vector<2x128xf32>
    %308 = vector.extract_strided_slice %306 {offsets = [0, 0], sizes = [2, 32], strides = [1, 1]} : vector<2x128xf32> to vector<2x32xf32>
    %309 = vector.extract_strided_slice %306 {offsets = [0, 32], sizes = [2, 32], strides = [1, 1]} : vector<2x128xf32> to vector<2x32xf32>
    %310 = vector.extract_strided_slice %307 {offsets = [0, 64], sizes = [2, 32], strides = [1, 1]} : vector<2x128xf32> to vector<2x32xf32>
    %311 = vector.extract_strided_slice %306 {offsets = [0, 96], sizes = [2, 32], strides = [1, 1]} : vector<2x128xf32> to vector<2x32xf32>
    %312 = arith.mulf %309, %295 : vector<2x32xf32>
    %313 = arith.mulf %308, %310 : vector<2x32xf32>
    %314 = arith.addf %312, %313 : vector<2x32xf32>
    %315 = math.tanh %314 : vector<2x32xf32>
    %316 = arith.mulf %311, %315 : vector<2x32xf32>
    %317 = vector.extract_strided_slice %14 {offsets = [11, 0, 0], sizes = [1, 2, 32], strides = [1, 1, 1]} : vector<16x2x32xi1> to vector<1x2x32xi1>
    %318 = vector.shape_cast %317 : vector<1x2x32xi1> to vector<2x32xi1>
    %319 = arith.select %318, %316, %294 : vector<2x32xi1>, vector<2x32xf32>
    %320 = arith.select %318, %314, %295 : vector<2x32xi1>, vector<2x32xf32>
    %cst_59 = arith.constant 0.000000e+00 : f32
    %321 = vector.broadcast %cst_59 : f32 to vector<2x32xf32>
    %322 = arith.select %318, %316, %321 : vector<2x32xi1>, vector<2x32xf32>
    %323 = vector.extract_strided_slice %18 {offsets = [24, 0], sizes = [2, 128], strides = [1, 1]} : vector<32x128xf32> to vector<2x128xf32>
    %324 = arith.truncf %319 : vector<2x32xf32> to vector<2x32xbf16>
    %cst_60 = arith.constant dense<0.000000e+00> : vector<2x128xf32>
    %325 = tpu.matmul %324, %1, %cst_60 {dimension_numbers = #tpu.dot_dimension_numbers<[1], [0], [0], [1], [0, 0, 1, 1], [], []>} : vector<2x32xbf16>, vector<32x128xbf16>, vector<2x128xf32> -> vector<2x128xf32>
    %326 = arith.addf %323, %325 : vector<2x128xf32>
    %327 = arith.negf %326 : vector<2x128xf32>
    %328 = math.exp %327 : vector<2x128xf32>
    %cst_61 = arith.constant 1.000000e+00 : f32
    %329 = vector.broadcast %cst_61 : f32 to vector<2x128xf32>
    %330 = arith.addf %329, %328 : vector<2x128xf32>
    %331 = arith.divf %329, %330 : vector<2x128xf32>
    %332 = math.tanh %326 : vector<2x128xf32>
    %333 = vector.extract_strided_slice %331 {offsets = [0, 0], sizes = [2, 32], strides = [1, 1]} : vector<2x128xf32> to vector<2x32xf32>
    %334 = vector.extract_strided_slice %331 {offsets = [0, 32], sizes = [2, 32], strides = [1, 1]} : vector<2x128xf32> to vector<2x32xf32>
    %335 = vector.extract_strided_slice %332 {offsets = [0, 64], sizes = [2, 32], strides = [1, 1]} : vector<2x128xf32> to vector<2x32xf32>
    %336 = vector.extract_strided_slice %331 {offsets = [0, 96], sizes = [2, 32], strides = [1, 1]} : vector<2x128xf32> to vector<2x32xf32>
    %337 = arith.mulf %334, %320 : vector<2x32xf32>
    %338 = arith.mulf %333, %335 : vector<2x32xf32>
    %339 = arith.addf %337, %338 : vector<2x32xf32>
    %340 = math.tanh %339 : vector<2x32xf32>
    %341 = arith.mulf %336, %340 : vector<2x32xf32>
    %342 = vector.extract_strided_slice %14 {offsets = [12, 0, 0], sizes = [1, 2, 32], strides = [1, 1, 1]} : vector<16x2x32xi1> to vector<1x2x32xi1>
    %343 = vector.shape_cast %342 : vector<1x2x32xi1> to vector<2x32xi1>
    %344 = arith.select %343, %341, %319 : vector<2x32xi1>, vector<2x32xf32>
    %345 = arith.select %343, %339, %320 : vector<2x32xi1>, vector<2x32xf32>
    %cst_62 = arith.constant 0.000000e+00 : f32
    %346 = vector.broadcast %cst_62 : f32 to vector<2x32xf32>
    %347 = arith.select %343, %341, %346 : vector<2x32xi1>, vector<2x32xf32>
    %348 = vector.extract_strided_slice %18 {offsets = [26, 0], sizes = [2, 128], strides = [1, 1]} : vector<32x128xf32> to vector<2x128xf32>
    %349 = arith.truncf %344 : vector<2x32xf32> to vector<2x32xbf16>
    %cst_63 = arith.constant dense<0.000000e+00> : vector<2x128xf32>
    %350 = tpu.matmul %349, %1, %cst_63 {dimension_numbers = #tpu.dot_dimension_numbers<[1], [0], [0], [1], [0, 0, 1, 1], [], []>} : vector<2x32xbf16>, vector<32x128xbf16>, vector<2x128xf32> -> vector<2x128xf32>
    %351 = arith.addf %348, %350 : vector<2x128xf32>
    %352 = arith.negf %351 : vector<2x128xf32>
    %353 = math.exp %352 : vector<2x128xf32>
    %cst_64 = arith.constant 1.000000e+00 : f32
    %354 = vector.broadcast %cst_64 : f32 to vector<2x128xf32>
    %355 = arith.addf %354, %353 : vector<2x128xf32>
    %356 = arith.divf %354, %355 : vector<2x128xf32>
    %357 = math.tanh %351 : vector<2x128xf32>
    %358 = vector.extract_strided_slice %356 {offsets = [0, 0], sizes = [2, 32], strides = [1, 1]} : vector<2x128xf32> to vector<2x32xf32>
    %359 = vector.extract_strided_slice %356 {offsets = [0, 32], sizes = [2, 32], strides = [1, 1]} : vector<2x128xf32> to vector<2x32xf32>
    %360 = vector.extract_strided_slice %357 {offsets = [0, 64], sizes = [2, 32], strides = [1, 1]} : vector<2x128xf32> to vector<2x32xf32>
    %361 = vector.extract_strided_slice %356 {offsets = [0, 96], sizes = [2, 32], strides = [1, 1]} : vector<2x128xf32> to vector<2x32xf32>
    %362 = arith.mulf %359, %345 : vector<2x32xf32>
    %363 = arith.mulf %358, %360 : vector<2x32xf32>
    %364 = arith.addf %362, %363 : vector<2x32xf32>
    %365 = math.tanh %364 : vector<2x32xf32>
    %366 = arith.mulf %361, %365 : vector<2x32xf32>
    %367 = vector.extract_strided_slice %14 {offsets = [13, 0, 0], sizes = [1, 2, 32], strides = [1, 1, 1]} : vector<16x2x32xi1> to vector<1x2x32xi1>
    %368 = vector.shape_cast %367 : vector<1x2x32xi1> to vector<2x32xi1>
    %369 = arith.select %368, %366, %344 : vector<2x32xi1>, vector<2x32xf32>
    %370 = arith.select %368, %364, %345 : vector<2x32xi1>, vector<2x32xf32>
    %cst_65 = arith.constant 0.000000e+00 : f32
    %371 = vector.broadcast %cst_65 : f32 to vector<2x32xf32>
    %372 = arith.select %368, %366, %371 : vector<2x32xi1>, vector<2x32xf32>
    %373 = vector.extract_strided_slice %18 {offsets = [28, 0], sizes = [2, 128], strides = [1, 1]} : vector<32x128xf32> to vector<2x128xf32>
    %374 = arith.truncf %369 : vector<2x32xf32> to vector<2x32xbf16>
    %cst_66 = arith.constant dense<0.000000e+00> : vector<2x128xf32>
    %375 = tpu.matmul %374, %1, %cst_66 {dimension_numbers = #tpu.dot_dimension_numbers<[1], [0], [0], [1], [0, 0, 1, 1], [], []>} : vector<2x32xbf16>, vector<32x128xbf16>, vector<2x128xf32> -> vector<2x128xf32>
    %376 = arith.addf %373, %375 : vector<2x128xf32>
    %377 = arith.negf %376 : vector<2x128xf32>
    %378 = math.exp %377 : vector<2x128xf32>
    %cst_67 = arith.constant 1.000000e+00 : f32
    %379 = vector.broadcast %cst_67 : f32 to vector<2x128xf32>
    %380 = arith.addf %379, %378 : vector<2x128xf32>
    %381 = arith.divf %379, %380 : vector<2x128xf32>
    %382 = math.tanh %376 : vector<2x128xf32>
    %383 = vector.extract_strided_slice %381 {offsets = [0, 0], sizes = [2, 32], strides = [1, 1]} : vector<2x128xf32> to vector<2x32xf32>
    %384 = vector.extract_strided_slice %381 {offsets = [0, 32], sizes = [2, 32], strides = [1, 1]} : vector<2x128xf32> to vector<2x32xf32>
    %385 = vector.extract_strided_slice %382 {offsets = [0, 64], sizes = [2, 32], strides = [1, 1]} : vector<2x128xf32> to vector<2x32xf32>
    %386 = vector.extract_strided_slice %381 {offsets = [0, 96], sizes = [2, 32], strides = [1, 1]} : vector<2x128xf32> to vector<2x32xf32>
    %387 = arith.mulf %384, %370 : vector<2x32xf32>
    %388 = arith.mulf %383, %385 : vector<2x32xf32>
    %389 = arith.addf %387, %388 : vector<2x32xf32>
    %390 = math.tanh %389 : vector<2x32xf32>
    %391 = arith.mulf %386, %390 : vector<2x32xf32>
    %392 = vector.extract_strided_slice %14 {offsets = [14, 0, 0], sizes = [1, 2, 32], strides = [1, 1, 1]} : vector<16x2x32xi1> to vector<1x2x32xi1>
    %393 = vector.shape_cast %392 : vector<1x2x32xi1> to vector<2x32xi1>
    %394 = arith.select %393, %391, %369 : vector<2x32xi1>, vector<2x32xf32>
    %395 = arith.select %393, %389, %370 : vector<2x32xi1>, vector<2x32xf32>
    %cst_68 = arith.constant 0.000000e+00 : f32
    %396 = vector.broadcast %cst_68 : f32 to vector<2x32xf32>
    %397 = arith.select %393, %391, %396 : vector<2x32xi1>, vector<2x32xf32>
    %398 = vector.extract_strided_slice %18 {offsets = [30, 0], sizes = [2, 128], strides = [1, 1]} : vector<32x128xf32> to vector<2x128xf32>
    %399 = arith.truncf %394 : vector<2x32xf32> to vector<2x32xbf16>
    %cst_69 = arith.constant dense<0.000000e+00> : vector<2x128xf32>
    %400 = tpu.matmul %399, %1, %cst_69 {dimension_numbers = #tpu.dot_dimension_numbers<[1], [0], [0], [1], [0, 0, 1, 1], [], []>} : vector<2x32xbf16>, vector<32x128xbf16>, vector<2x128xf32> -> vector<2x128xf32>
    %401 = arith.addf %398, %400 : vector<2x128xf32>
    %402 = arith.negf %401 : vector<2x128xf32>
    %403 = math.exp %402 : vector<2x128xf32>
    %cst_70 = arith.constant 1.000000e+00 : f32
    %404 = vector.broadcast %cst_70 : f32 to vector<2x128xf32>
    %405 = arith.addf %404, %403 : vector<2x128xf32>
    %406 = arith.divf %404, %405 : vector<2x128xf32>
    %407 = math.tanh %401 : vector<2x128xf32>
    %408 = vector.extract_strided_slice %406 {offsets = [0, 0], sizes = [2, 32], strides = [1, 1]} : vector<2x128xf32> to vector<2x32xf32>
    %409 = vector.extract_strided_slice %406 {offsets = [0, 32], sizes = [2, 32], strides = [1, 1]} : vector<2x128xf32> to vector<2x32xf32>
    %410 = vector.extract_strided_slice %407 {offsets = [0, 64], sizes = [2, 32], strides = [1, 1]} : vector<2x128xf32> to vector<2x32xf32>
    %411 = vector.extract_strided_slice %406 {offsets = [0, 96], sizes = [2, 32], strides = [1, 1]} : vector<2x128xf32> to vector<2x32xf32>
    %412 = arith.mulf %409, %395 : vector<2x32xf32>
    %413 = arith.mulf %408, %410 : vector<2x32xf32>
    %414 = arith.addf %412, %413 : vector<2x32xf32>
    %415 = math.tanh %414 : vector<2x32xf32>
    %416 = arith.mulf %411, %415 : vector<2x32xf32>
    %417 = vector.extract_strided_slice %14 {offsets = [15, 0, 0], sizes = [1, 2, 32], strides = [1, 1, 1]} : vector<16x2x32xi1> to vector<1x2x32xi1>
    %418 = vector.shape_cast %417 : vector<1x2x32xi1> to vector<2x32xi1>
    %cst_71 = arith.constant 0.000000e+00 : f32
    %419 = vector.broadcast %cst_71 : f32 to vector<2x32xf32>
    %420 = arith.select %418, %416, %419 : vector<2x32xi1>, vector<2x32xf32>
    %421 = vector.extract_strided_slice %47 {offsets = [0, 0], sizes = [2, 16], strides = [1, 1]} : vector<2x32xf32> to vector<2x16xf32>
    %422 = vector.extract_strided_slice %47 {offsets = [0, 16], sizes = [2, 16], strides = [1, 1]} : vector<2x32xf32> to vector<2x16xf32>
    %423 = vector.extract_strided_slice %72 {offsets = [0, 0], sizes = [2, 16], strides = [1, 1]} : vector<2x32xf32> to vector<2x16xf32>
    %424 = vector.extract_strided_slice %72 {offsets = [0, 16], sizes = [2, 16], strides = [1, 1]} : vector<2x32xf32> to vector<2x16xf32>
    %425 = vector.extract_strided_slice %97 {offsets = [0, 0], sizes = [2, 16], strides = [1, 1]} : vector<2x32xf32> to vector<2x16xf32>
    %426 = vector.extract_strided_slice %97 {offsets = [0, 16], sizes = [2, 16], strides = [1, 1]} : vector<2x32xf32> to vector<2x16xf32>
    %427 = vector.extract_strided_slice %122 {offsets = [0, 0], sizes = [2, 16], strides = [1, 1]} : vector<2x32xf32> to vector<2x16xf32>
    %428 = vector.extract_strided_slice %122 {offsets = [0, 16], sizes = [2, 16], strides = [1, 1]} : vector<2x32xf32> to vector<2x16xf32>
    %429 = vector.extract_strided_slice %147 {offsets = [0, 0], sizes = [2, 16], strides = [1, 1]} : vector<2x32xf32> to vector<2x16xf32>
    %430 = vector.extract_strided_slice %147 {offsets = [0, 16], sizes = [2, 16], strides = [1, 1]} : vector<2x32xf32> to vector<2x16xf32>
    %431 = vector.extract_strided_slice %172 {offsets = [0, 0], sizes = [2, 16], strides = [1, 1]} : vector<2x32xf32> to vector<2x16xf32>
    %432 = vector.extract_strided_slice %172 {offsets = [0, 16], sizes = [2, 16], strides = [1, 1]} : vector<2x32xf32> to vector<2x16xf32>
    %433 = vector.extract_strided_slice %197 {offsets = [0, 0], sizes = [2, 16], strides = [1, 1]} : vector<2x32xf32> to vector<2x16xf32>
    %434 = vector.extract_strided_slice %197 {offsets = [0, 16], sizes = [2, 16], strides = [1, 1]} : vector<2x32xf32> to vector<2x16xf32>
    %435 = vector.extract_strided_slice %222 {offsets = [0, 0], sizes = [2, 16], strides = [1, 1]} : vector<2x32xf32> to vector<2x16xf32>
    %436 = vector.extract_strided_slice %222 {offsets = [0, 16], sizes = [2, 16], strides = [1, 1]} : vector<2x32xf32> to vector<2x16xf32>
    %437 = vector.extract_strided_slice %247 {offsets = [0, 0], sizes = [2, 16], strides = [1, 1]} : vector<2x32xf32> to vector<2x16xf32>
    %438 = vector.extract_strided_slice %247 {offsets = [0, 16], sizes = [2, 16], strides = [1, 1]} : vector<2x32xf32> to vector<2x16xf32>
    %439 = vector.extract_strided_slice %272 {offsets = [0, 0], sizes = [2, 16], strides = [1, 1]} : vector<2x32xf32> to vector<2x16xf32>
    %440 = vector.extract_strided_slice %272 {offsets = [0, 16], sizes = [2, 16], strides = [1, 1]} : vector<2x32xf32> to vector<2x16xf32>
    %441 = vector.extract_strided_slice %297 {offsets = [0, 0], sizes = [2, 16], strides = [1, 1]} : vector<2x32xf32> to vector<2x16xf32>
    %442 = vector.extract_strided_slice %297 {offsets = [0, 16], sizes = [2, 16], strides = [1, 1]} : vector<2x32xf32> to vector<2x16xf32>
    %443 = vector.extract_strided_slice %322 {offsets = [0, 0], sizes = [2, 16], strides = [1, 1]} : vector<2x32xf32> to vector<2x16xf32>
    %444 = vector.extract_strided_slice %322 {offsets = [0, 16], sizes = [2, 16], strides = [1, 1]} : vector<2x32xf32> to vector<2x16xf32>
    %445 = vector.extract_strided_slice %347 {offsets = [0, 0], sizes = [2, 16], strides = [1, 1]} : vector<2x32xf32> to vector<2x16xf32>
    %446 = vector.extract_strided_slice %347 {offsets = [0, 16], sizes = [2, 16], strides = [1, 1]} : vector<2x32xf32> to vector<2x16xf32>
    %447 = vector.extract_strided_slice %372 {offsets = [0, 0], sizes = [2, 16], strides = [1, 1]} : vector<2x32xf32> to vector<2x16xf32>
    %448 = vector.extract_strided_slice %372 {offsets = [0, 16], sizes = [2, 16], strides = [1, 1]} : vector<2x32xf32> to vector<2x16xf32>
    %449 = vector.extract_strided_slice %397 {offsets = [0, 0], sizes = [2, 16], strides = [1, 1]} : vector<2x32xf32> to vector<2x16xf32>
    %450 = vector.extract_strided_slice %397 {offsets = [0, 16], sizes = [2, 16], strides = [1, 1]} : vector<2x32xf32> to vector<2x16xf32>
    %451 = vector.extract_strided_slice %420 {offsets = [0, 0], sizes = [2, 16], strides = [1, 1]} : vector<2x32xf32> to vector<2x16xf32>
    %452 = vector.extract_strided_slice %420 {offsets = [0, 16], sizes = [2, 16], strides = [1, 1]} : vector<2x32xf32> to vector<2x16xf32>
    %453 = tpu.concatenate %421, %452, %451, %422 in 1 : vector<2x16xf32>, vector<2x16xf32>, vector<2x16xf32>, vector<2x16xf32> -> vector<2x64xf32>
    %454 = tpu.concatenate %423, %450, %449, %424 in 1 : vector<2x16xf32>, vector<2x16xf32>, vector<2x16xf32>, vector<2x16xf32> -> vector<2x64xf32>
    %455 = tpu.concatenate %425, %448, %447, %426 in 1 : vector<2x16xf32>, vector<2x16xf32>, vector<2x16xf32>, vector<2x16xf32> -> vector<2x64xf32>
    %456 = tpu.concatenate %427, %446, %445, %428 in 1 : vector<2x16xf32>, vector<2x16xf32>, vector<2x16xf32>, vector<2x16xf32> -> vector<2x64xf32>
    %457 = tpu.concatenate %429, %444, %443, %430 in 1 : vector<2x16xf32>, vector<2x16xf32>, vector<2x16xf32>, vector<2x16xf32> -> vector<2x64xf32>
    %458 = tpu.concatenate %431, %442, %441, %432 in 1 : vector<2x16xf32>, vector<2x16xf32>, vector<2x16xf32>, vector<2x16xf32> -> vector<2x64xf32>
    %459 = tpu.concatenate %433, %440, %439, %434 in 1 : vector<2x16xf32>, vector<2x16xf32>, vector<2x16xf32>, vector<2x16xf32> -> vector<2x64xf32>
    %460 = tpu.concatenate %435, %438, %437, %436 in 1 : vector<2x16xf32>, vector<2x16xf32>, vector<2x16xf32>, vector<2x16xf32> -> vector<2x64xf32>
    %461 = tpu.concatenate %437, %436, %435, %438 in 1 : vector<2x16xf32>, vector<2x16xf32>, vector<2x16xf32>, vector<2x16xf32> -> vector<2x64xf32>
    %462 = tpu.concatenate %439, %434, %433, %440 in 1 : vector<2x16xf32>, vector<2x16xf32>, vector<2x16xf32>, vector<2x16xf32> -> vector<2x64xf32>
    %463 = tpu.concatenate %441, %432, %431, %442 in 1 : vector<2x16xf32>, vector<2x16xf32>, vector<2x16xf32>, vector<2x16xf32> -> vector<2x64xf32>
    %464 = tpu.concatenate %443, %430, %429, %444 in 1 : vector<2x16xf32>, vector<2x16xf32>, vector<2x16xf32>, vector<2x16xf32> -> vector<2x64xf32>
    %465 = tpu.concatenate %445, %428, %427, %446 in 1 : vector<2x16xf32>, vector<2x16xf32>, vector<2x16xf32>, vector<2x16xf32> -> vector<2x64xf32>
    %466 = tpu.concatenate %447, %426, %425, %448 in 1 : vector<2x16xf32>, vector<2x16xf32>, vector<2x16xf32>, vector<2x16xf32> -> vector<2x64xf32>
    %467 = tpu.concatenate %449, %424, %423, %450 in 1 : vector<2x16xf32>, vector<2x16xf32>, vector<2x16xf32>, vector<2x16xf32> -> vector<2x64xf32>
    %468 = tpu.concatenate %451, %422, %421, %452 in 1 : vector<2x16xf32>, vector<2x16xf32>, vector<2x16xf32>, vector<2x16xf32> -> vector<2x64xf32>
    %469 = tpu.concatenate %453, %454, %455, %456, %457, %458, %459, %460, %461, %462, %463, %464, %465, %466, %467, %468 in 0 : vector<2x64xf32>, vector<2x64xf32>, vector<2x64xf32>, vector<2x64xf32>, vector<2x64xf32>, vector<2x64xf32>, vector<2x64xf32>, vector<2x64xf32>, vector<2x64xf32>, vector<2x64xf32>, vector<2x64xf32>, vector<2x64xf32>, vector<2x64xf32>, vector<2x64xf32>, vector<2x64xf32>, vector<2x64xf32> -> vector<32x64xf32>
    %470 = arith.truncf %469 : vector<32x64xf32> to vector<32x64xbf16>
    %cst_72 = arith.constant dense<0.000000e+00> : vector<32x128xf32>
    %471 = tpu.matmul %470, %2, %cst_72 {dimension_numbers = #tpu.dot_dimension_numbers<[1], [0], [0], [1], [0, 0, 1, 1], [], []>} : vector<32x64xbf16>, vector<64x128xbf16>, vector<32x128xf32> -> vector<32x128xf32>
    %472 = vector.broadcast %7 : vector<1x128xf32> to vector<32x128xf32>
    %473 = arith.addf %471, %472 : vector<32x128xf32>
    %c2 = arith.constant 2 : index
    %c0_73 = arith.constant 0 : index
    %c0_74 = arith.constant 0 : index
    %474 = vector.load %arg6[%c2, %c0_73, %c0_74] : memref<4x2x32xf32, #tpu.memory_space<vmem>>, vector<1x2x32xf32>
    %475 = vector.shape_cast %474 : vector<1x2x32xf32> to vector<2x32xf32>
    %c3 = arith.constant 3 : index
    %c0_75 = arith.constant 0 : index
    %c0_76 = arith.constant 0 : index
    %476 = vector.load %arg6[%c3, %c0_75, %c0_76] : memref<4x2x32xf32, #tpu.memory_space<vmem>>, vector<1x2x32xf32>
    %477 = vector.shape_cast %476 : vector<1x2x32xf32> to vector<2x32xf32>
    %478 = vector.extract_strided_slice %473 {offsets = [0, 0], sizes = [2, 128], strides = [1, 1]} : vector<32x128xf32> to vector<2x128xf32>
    %479 = arith.truncf %475 : vector<2x32xf32> to vector<2x32xbf16>
    %cst_77 = arith.constant dense<0.000000e+00> : vector<2x128xf32>
    %480 = tpu.matmul %479, %3, %cst_77 {dimension_numbers = #tpu.dot_dimension_numbers<[1], [0], [0], [1], [0, 0, 1, 1], [], []>} : vector<2x32xbf16>, vector<32x128xbf16>, vector<2x128xf32> -> vector<2x128xf32>
    %481 = arith.addf %478, %480 : vector<2x128xf32>
    %482 = arith.negf %481 : vector<2x128xf32>
    %483 = math.exp %482 : vector<2x128xf32>
    %cst_78 = arith.constant 1.000000e+00 : f32
    %484 = vector.broadcast %cst_78 : f32 to vector<2x128xf32>
    %485 = arith.addf %484, %483 : vector<2x128xf32>
    %486 = arith.divf %484, %485 : vector<2x128xf32>
    %487 = math.tanh %481 : vector<2x128xf32>
    %488 = vector.extract_strided_slice %486 {offsets = [0, 0], sizes = [2, 32], strides = [1, 1]} : vector<2x128xf32> to vector<2x32xf32>
    %489 = vector.extract_strided_slice %486 {offsets = [0, 32], sizes = [2, 32], strides = [1, 1]} : vector<2x128xf32> to vector<2x32xf32>
    %490 = vector.extract_strided_slice %487 {offsets = [0, 64], sizes = [2, 32], strides = [1, 1]} : vector<2x128xf32> to vector<2x32xf32>
    %491 = vector.extract_strided_slice %486 {offsets = [0, 96], sizes = [2, 32], strides = [1, 1]} : vector<2x128xf32> to vector<2x32xf32>
    %492 = arith.mulf %489, %477 : vector<2x32xf32>
    %493 = arith.mulf %488, %490 : vector<2x32xf32>
    %494 = arith.addf %492, %493 : vector<2x32xf32>
    %495 = math.tanh %494 : vector<2x32xf32>
    %496 = arith.mulf %491, %495 : vector<2x32xf32>
    %497 = vector.extract_strided_slice %14 {offsets = [0, 0, 0], sizes = [1, 2, 32], strides = [1, 1, 1]} : vector<16x2x32xi1> to vector<1x2x32xi1>
    %498 = vector.shape_cast %497 : vector<1x2x32xi1> to vector<2x32xi1>
    %499 = arith.select %498, %496, %475 : vector<2x32xi1>, vector<2x32xf32>
    %500 = arith.select %498, %494, %477 : vector<2x32xi1>, vector<2x32xf32>
    %cst_79 = arith.constant 0.000000e+00 : f32
    %501 = vector.broadcast %cst_79 : f32 to vector<2x32xf32>
    %502 = arith.select %498, %496, %501 : vector<2x32xi1>, vector<2x32xf32>
    %503 = vector.extract_strided_slice %473 {offsets = [2, 0], sizes = [2, 128], strides = [1, 1]} : vector<32x128xf32> to vector<2x128xf32>
    %504 = arith.truncf %499 : vector<2x32xf32> to vector<2x32xbf16>
    %cst_80 = arith.constant dense<0.000000e+00> : vector<2x128xf32>
    %505 = tpu.matmul %504, %3, %cst_80 {dimension_numbers = #tpu.dot_dimension_numbers<[1], [0], [0], [1], [0, 0, 1, 1], [], []>} : vector<2x32xbf16>, vector<32x128xbf16>, vector<2x128xf32> -> vector<2x128xf32>
    %506 = arith.addf %503, %505 : vector<2x128xf32>
    %507 = arith.negf %506 : vector<2x128xf32>
    %508 = math.exp %507 : vector<2x128xf32>
    %cst_81 = arith.constant 1.000000e+00 : f32
    %509 = vector.broadcast %cst_81 : f32 to vector<2x128xf32>
    %510 = arith.addf %509, %508 : vector<2x128xf32>
    %511 = arith.divf %509, %510 : vector<2x128xf32>
    %512 = math.tanh %506 : vector<2x128xf32>
    %513 = vector.extract_strided_slice %511 {offsets = [0, 0], sizes = [2, 32], strides = [1, 1]} : vector<2x128xf32> to vector<2x32xf32>
    %514 = vector.extract_strided_slice %511 {offsets = [0, 32], sizes = [2, 32], strides = [1, 1]} : vector<2x128xf32> to vector<2x32xf32>
    %515 = vector.extract_strided_slice %512 {offsets = [0, 64], sizes = [2, 32], strides = [1, 1]} : vector<2x128xf32> to vector<2x32xf32>
    %516 = vector.extract_strided_slice %511 {offsets = [0, 96], sizes = [2, 32], strides = [1, 1]} : vector<2x128xf32> to vector<2x32xf32>
    %517 = arith.mulf %514, %500 : vector<2x32xf32>
    %518 = arith.mulf %513, %515 : vector<2x32xf32>
    %519 = arith.addf %517, %518 : vector<2x32xf32>
    %520 = math.tanh %519 : vector<2x32xf32>
    %521 = arith.mulf %516, %520 : vector<2x32xf32>
    %522 = vector.extract_strided_slice %14 {offsets = [1, 0, 0], sizes = [1, 2, 32], strides = [1, 1, 1]} : vector<16x2x32xi1> to vector<1x2x32xi1>
    %523 = vector.shape_cast %522 : vector<1x2x32xi1> to vector<2x32xi1>
    %524 = arith.select %523, %521, %499 : vector<2x32xi1>, vector<2x32xf32>
    %525 = arith.select %523, %519, %500 : vector<2x32xi1>, vector<2x32xf32>
    %cst_82 = arith.constant 0.000000e+00 : f32
    %526 = vector.broadcast %cst_82 : f32 to vector<2x32xf32>
    %527 = arith.select %523, %521, %526 : vector<2x32xi1>, vector<2x32xf32>
    %528 = vector.extract_strided_slice %473 {offsets = [4, 0], sizes = [2, 128], strides = [1, 1]} : vector<32x128xf32> to vector<2x128xf32>
    %529 = arith.truncf %524 : vector<2x32xf32> to vector<2x32xbf16>
    %cst_83 = arith.constant dense<0.000000e+00> : vector<2x128xf32>
    %530 = tpu.matmul %529, %3, %cst_83 {dimension_numbers = #tpu.dot_dimension_numbers<[1], [0], [0], [1], [0, 0, 1, 1], [], []>} : vector<2x32xbf16>, vector<32x128xbf16>, vector<2x128xf32> -> vector<2x128xf32>
    %531 = arith.addf %528, %530 : vector<2x128xf32>
    %532 = arith.negf %531 : vector<2x128xf32>
    %533 = math.exp %532 : vector<2x128xf32>
    %cst_84 = arith.constant 1.000000e+00 : f32
    %534 = vector.broadcast %cst_84 : f32 to vector<2x128xf32>
    %535 = arith.addf %534, %533 : vector<2x128xf32>
    %536 = arith.divf %534, %535 : vector<2x128xf32>
    %537 = math.tanh %531 : vector<2x128xf32>
    %538 = vector.extract_strided_slice %536 {offsets = [0, 0], sizes = [2, 32], strides = [1, 1]} : vector<2x128xf32> to vector<2x32xf32>
    %539 = vector.extract_strided_slice %536 {offsets = [0, 32], sizes = [2, 32], strides = [1, 1]} : vector<2x128xf32> to vector<2x32xf32>
    %540 = vector.extract_strided_slice %537 {offsets = [0, 64], sizes = [2, 32], strides = [1, 1]} : vector<2x128xf32> to vector<2x32xf32>
    %541 = vector.extract_strided_slice %536 {offsets = [0, 96], sizes = [2, 32], strides = [1, 1]} : vector<2x128xf32> to vector<2x32xf32>
    %542 = arith.mulf %539, %525 : vector<2x32xf32>
    %543 = arith.mulf %538, %540 : vector<2x32xf32>
    %544 = arith.addf %542, %543 : vector<2x32xf32>
    %545 = math.tanh %544 : vector<2x32xf32>
    %546 = arith.mulf %541, %545 : vector<2x32xf32>
    %547 = vector.extract_strided_slice %14 {offsets = [2, 0, 0], sizes = [1, 2, 32], strides = [1, 1, 1]} : vector<16x2x32xi1> to vector<1x2x32xi1>
    %548 = vector.shape_cast %547 : vector<1x2x32xi1> to vector<2x32xi1>
    %549 = arith.select %548, %546, %524 : vector<2x32xi1>, vector<2x32xf32>
    %550 = arith.select %548, %544, %525 : vector<2x32xi1>, vector<2x32xf32>
    %cst_85 = arith.constant 0.000000e+00 : f32
    %551 = vector.broadcast %cst_85 : f32 to vector<2x32xf32>
    %552 = arith.select %548, %546, %551 : vector<2x32xi1>, vector<2x32xf32>
    %553 = vector.extract_strided_slice %473 {offsets = [6, 0], sizes = [2, 128], strides = [1, 1]} : vector<32x128xf32> to vector<2x128xf32>
    %554 = arith.truncf %549 : vector<2x32xf32> to vector<2x32xbf16>
    %cst_86 = arith.constant dense<0.000000e+00> : vector<2x128xf32>
    %555 = tpu.matmul %554, %3, %cst_86 {dimension_numbers = #tpu.dot_dimension_numbers<[1], [0], [0], [1], [0, 0, 1, 1], [], []>} : vector<2x32xbf16>, vector<32x128xbf16>, vector<2x128xf32> -> vector<2x128xf32>
    %556 = arith.addf %553, %555 : vector<2x128xf32>
    %557 = arith.negf %556 : vector<2x128xf32>
    %558 = math.exp %557 : vector<2x128xf32>
    %cst_87 = arith.constant 1.000000e+00 : f32
    %559 = vector.broadcast %cst_87 : f32 to vector<2x128xf32>
    %560 = arith.addf %559, %558 : vector<2x128xf32>
    %561 = arith.divf %559, %560 : vector<2x128xf32>
    %562 = math.tanh %556 : vector<2x128xf32>
    %563 = vector.extract_strided_slice %561 {offsets = [0, 0], sizes = [2, 32], strides = [1, 1]} : vector<2x128xf32> to vector<2x32xf32>
    %564 = vector.extract_strided_slice %561 {offsets = [0, 32], sizes = [2, 32], strides = [1, 1]} : vector<2x128xf32> to vector<2x32xf32>
    %565 = vector.extract_strided_slice %562 {offsets = [0, 64], sizes = [2, 32], strides = [1, 1]} : vector<2x128xf32> to vector<2x32xf32>
    %566 = vector.extract_strided_slice %561 {offsets = [0, 96], sizes = [2, 32], strides = [1, 1]} : vector<2x128xf32> to vector<2x32xf32>
    %567 = arith.mulf %564, %550 : vector<2x32xf32>
    %568 = arith.mulf %563, %565 : vector<2x32xf32>
    %569 = arith.addf %567, %568 : vector<2x32xf32>
    %570 = math.tanh %569 : vector<2x32xf32>
    %571 = arith.mulf %566, %570 : vector<2x32xf32>
    %572 = vector.extract_strided_slice %14 {offsets = [3, 0, 0], sizes = [1, 2, 32], strides = [1, 1, 1]} : vector<16x2x32xi1> to vector<1x2x32xi1>
    %573 = vector.shape_cast %572 : vector<1x2x32xi1> to vector<2x32xi1>
    %574 = arith.select %573, %571, %549 : vector<2x32xi1>, vector<2x32xf32>
    %575 = arith.select %573, %569, %550 : vector<2x32xi1>, vector<2x32xf32>
    %cst_88 = arith.constant 0.000000e+00 : f32
    %576 = vector.broadcast %cst_88 : f32 to vector<2x32xf32>
    %577 = arith.select %573, %571, %576 : vector<2x32xi1>, vector<2x32xf32>
    %578 = vector.extract_strided_slice %473 {offsets = [8, 0], sizes = [2, 128], strides = [1, 1]} : vector<32x128xf32> to vector<2x128xf32>
    %579 = arith.truncf %574 : vector<2x32xf32> to vector<2x32xbf16>
    %cst_89 = arith.constant dense<0.000000e+00> : vector<2x128xf32>
    %580 = tpu.matmul %579, %3, %cst_89 {dimension_numbers = #tpu.dot_dimension_numbers<[1], [0], [0], [1], [0, 0, 1, 1], [], []>} : vector<2x32xbf16>, vector<32x128xbf16>, vector<2x128xf32> -> vector<2x128xf32>
    %581 = arith.addf %578, %580 : vector<2x128xf32>
    %582 = arith.negf %581 : vector<2x128xf32>
    %583 = math.exp %582 : vector<2x128xf32>
    %cst_90 = arith.constant 1.000000e+00 : f32
    %584 = vector.broadcast %cst_90 : f32 to vector<2x128xf32>
    %585 = arith.addf %584, %583 : vector<2x128xf32>
    %586 = arith.divf %584, %585 : vector<2x128xf32>
    %587 = math.tanh %581 : vector<2x128xf32>
    %588 = vector.extract_strided_slice %586 {offsets = [0, 0], sizes = [2, 32], strides = [1, 1]} : vector<2x128xf32> to vector<2x32xf32>
    %589 = vector.extract_strided_slice %586 {offsets = [0, 32], sizes = [2, 32], strides = [1, 1]} : vector<2x128xf32> to vector<2x32xf32>
    %590 = vector.extract_strided_slice %587 {offsets = [0, 64], sizes = [2, 32], strides = [1, 1]} : vector<2x128xf32> to vector<2x32xf32>
    %591 = vector.extract_strided_slice %586 {offsets = [0, 96], sizes = [2, 32], strides = [1, 1]} : vector<2x128xf32> to vector<2x32xf32>
    %592 = arith.mulf %589, %575 : vector<2x32xf32>
    %593 = arith.mulf %588, %590 : vector<2x32xf32>
    %594 = arith.addf %592, %593 : vector<2x32xf32>
    %595 = math.tanh %594 : vector<2x32xf32>
    %596 = arith.mulf %591, %595 : vector<2x32xf32>
    %597 = vector.extract_strided_slice %14 {offsets = [4, 0, 0], sizes = [1, 2, 32], strides = [1, 1, 1]} : vector<16x2x32xi1> to vector<1x2x32xi1>
    %598 = vector.shape_cast %597 : vector<1x2x32xi1> to vector<2x32xi1>
    %599 = arith.select %598, %596, %574 : vector<2x32xi1>, vector<2x32xf32>
    %600 = arith.select %598, %594, %575 : vector<2x32xi1>, vector<2x32xf32>
    %cst_91 = arith.constant 0.000000e+00 : f32
    %601 = vector.broadcast %cst_91 : f32 to vector<2x32xf32>
    %602 = arith.select %598, %596, %601 : vector<2x32xi1>, vector<2x32xf32>
    %603 = vector.extract_strided_slice %473 {offsets = [10, 0], sizes = [2, 128], strides = [1, 1]} : vector<32x128xf32> to vector<2x128xf32>
    %604 = arith.truncf %599 : vector<2x32xf32> to vector<2x32xbf16>
    %cst_92 = arith.constant dense<0.000000e+00> : vector<2x128xf32>
    %605 = tpu.matmul %604, %3, %cst_92 {dimension_numbers = #tpu.dot_dimension_numbers<[1], [0], [0], [1], [0, 0, 1, 1], [], []>} : vector<2x32xbf16>, vector<32x128xbf16>, vector<2x128xf32> -> vector<2x128xf32>
    %606 = arith.addf %603, %605 : vector<2x128xf32>
    %607 = arith.negf %606 : vector<2x128xf32>
    %608 = math.exp %607 : vector<2x128xf32>
    %cst_93 = arith.constant 1.000000e+00 : f32
    %609 = vector.broadcast %cst_93 : f32 to vector<2x128xf32>
    %610 = arith.addf %609, %608 : vector<2x128xf32>
    %611 = arith.divf %609, %610 : vector<2x128xf32>
    %612 = math.tanh %606 : vector<2x128xf32>
    %613 = vector.extract_strided_slice %611 {offsets = [0, 0], sizes = [2, 32], strides = [1, 1]} : vector<2x128xf32> to vector<2x32xf32>
    %614 = vector.extract_strided_slice %611 {offsets = [0, 32], sizes = [2, 32], strides = [1, 1]} : vector<2x128xf32> to vector<2x32xf32>
    %615 = vector.extract_strided_slice %612 {offsets = [0, 64], sizes = [2, 32], strides = [1, 1]} : vector<2x128xf32> to vector<2x32xf32>
    %616 = vector.extract_strided_slice %611 {offsets = [0, 96], sizes = [2, 32], strides = [1, 1]} : vector<2x128xf32> to vector<2x32xf32>
    %617 = arith.mulf %614, %600 : vector<2x32xf32>
    %618 = arith.mulf %613, %615 : vector<2x32xf32>
    %619 = arith.addf %617, %618 : vector<2x32xf32>
    %620 = math.tanh %619 : vector<2x32xf32>
    %621 = arith.mulf %616, %620 : vector<2x32xf32>
    %622 = vector.extract_strided_slice %14 {offsets = [5, 0, 0], sizes = [1, 2, 32], strides = [1, 1, 1]} : vector<16x2x32xi1> to vector<1x2x32xi1>
    %623 = vector.shape_cast %622 : vector<1x2x32xi1> to vector<2x32xi1>
    %624 = arith.select %623, %621, %599 : vector<2x32xi1>, vector<2x32xf32>
    %625 = arith.select %623, %619, %600 : vector<2x32xi1>, vector<2x32xf32>
    %cst_94 = arith.constant 0.000000e+00 : f32
    %626 = vector.broadcast %cst_94 : f32 to vector<2x32xf32>
    %627 = arith.select %623, %621, %626 : vector<2x32xi1>, vector<2x32xf32>
    %628 = vector.extract_strided_slice %473 {offsets = [12, 0], sizes = [2, 128], strides = [1, 1]} : vector<32x128xf32> to vector<2x128xf32>
    %629 = arith.truncf %624 : vector<2x32xf32> to vector<2x32xbf16>
    %cst_95 = arith.constant dense<0.000000e+00> : vector<2x128xf32>
    %630 = tpu.matmul %629, %3, %cst_95 {dimension_numbers = #tpu.dot_dimension_numbers<[1], [0], [0], [1], [0, 0, 1, 1], [], []>} : vector<2x32xbf16>, vector<32x128xbf16>, vector<2x128xf32> -> vector<2x128xf32>
    %631 = arith.addf %628, %630 : vector<2x128xf32>
    %632 = arith.negf %631 : vector<2x128xf32>
    %633 = math.exp %632 : vector<2x128xf32>
    %cst_96 = arith.constant 1.000000e+00 : f32
    %634 = vector.broadcast %cst_96 : f32 to vector<2x128xf32>
    %635 = arith.addf %634, %633 : vector<2x128xf32>
    %636 = arith.divf %634, %635 : vector<2x128xf32>
    %637 = math.tanh %631 : vector<2x128xf32>
    %638 = vector.extract_strided_slice %636 {offsets = [0, 0], sizes = [2, 32], strides = [1, 1]} : vector<2x128xf32> to vector<2x32xf32>
    %639 = vector.extract_strided_slice %636 {offsets = [0, 32], sizes = [2, 32], strides = [1, 1]} : vector<2x128xf32> to vector<2x32xf32>
    %640 = vector.extract_strided_slice %637 {offsets = [0, 64], sizes = [2, 32], strides = [1, 1]} : vector<2x128xf32> to vector<2x32xf32>
    %641 = vector.extract_strided_slice %636 {offsets = [0, 96], sizes = [2, 32], strides = [1, 1]} : vector<2x128xf32> to vector<2x32xf32>
    %642 = arith.mulf %639, %625 : vector<2x32xf32>
    %643 = arith.mulf %638, %640 : vector<2x32xf32>
    %644 = arith.addf %642, %643 : vector<2x32xf32>
    %645 = math.tanh %644 : vector<2x32xf32>
    %646 = arith.mulf %641, %645 : vector<2x32xf32>
    %647 = vector.extract_strided_slice %14 {offsets = [6, 0, 0], sizes = [1, 2, 32], strides = [1, 1, 1]} : vector<16x2x32xi1> to vector<1x2x32xi1>
    %648 = vector.shape_cast %647 : vector<1x2x32xi1> to vector<2x32xi1>
    %649 = arith.select %648, %646, %624 : vector<2x32xi1>, vector<2x32xf32>
    %650 = arith.select %648, %644, %625 : vector<2x32xi1>, vector<2x32xf32>
    %cst_97 = arith.constant 0.000000e+00 : f32
    %651 = vector.broadcast %cst_97 : f32 to vector<2x32xf32>
    %652 = arith.select %648, %646, %651 : vector<2x32xi1>, vector<2x32xf32>
    %653 = vector.extract_strided_slice %473 {offsets = [14, 0], sizes = [2, 128], strides = [1, 1]} : vector<32x128xf32> to vector<2x128xf32>
    %654 = arith.truncf %649 : vector<2x32xf32> to vector<2x32xbf16>
    %cst_98 = arith.constant dense<0.000000e+00> : vector<2x128xf32>
    %655 = tpu.matmul %654, %3, %cst_98 {dimension_numbers = #tpu.dot_dimension_numbers<[1], [0], [0], [1], [0, 0, 1, 1], [], []>} : vector<2x32xbf16>, vector<32x128xbf16>, vector<2x128xf32> -> vector<2x128xf32>
    %656 = arith.addf %653, %655 : vector<2x128xf32>
    %657 = arith.negf %656 : vector<2x128xf32>
    %658 = math.exp %657 : vector<2x128xf32>
    %cst_99 = arith.constant 1.000000e+00 : f32
    %659 = vector.broadcast %cst_99 : f32 to vector<2x128xf32>
    %660 = arith.addf %659, %658 : vector<2x128xf32>
    %661 = arith.divf %659, %660 : vector<2x128xf32>
    %662 = math.tanh %656 : vector<2x128xf32>
    %663 = vector.extract_strided_slice %661 {offsets = [0, 0], sizes = [2, 32], strides = [1, 1]} : vector<2x128xf32> to vector<2x32xf32>
    %664 = vector.extract_strided_slice %661 {offsets = [0, 32], sizes = [2, 32], strides = [1, 1]} : vector<2x128xf32> to vector<2x32xf32>
    %665 = vector.extract_strided_slice %662 {offsets = [0, 64], sizes = [2, 32], strides = [1, 1]} : vector<2x128xf32> to vector<2x32xf32>
    %666 = vector.extract_strided_slice %661 {offsets = [0, 96], sizes = [2, 32], strides = [1, 1]} : vector<2x128xf32> to vector<2x32xf32>
    %667 = arith.mulf %664, %650 : vector<2x32xf32>
    %668 = arith.mulf %663, %665 : vector<2x32xf32>
    %669 = arith.addf %667, %668 : vector<2x32xf32>
    %670 = math.tanh %669 : vector<2x32xf32>
    %671 = arith.mulf %666, %670 : vector<2x32xf32>
    %672 = vector.extract_strided_slice %14 {offsets = [7, 0, 0], sizes = [1, 2, 32], strides = [1, 1, 1]} : vector<16x2x32xi1> to vector<1x2x32xi1>
    %673 = vector.shape_cast %672 : vector<1x2x32xi1> to vector<2x32xi1>
    %674 = arith.select %673, %671, %649 : vector<2x32xi1>, vector<2x32xf32>
    %675 = arith.select %673, %669, %650 : vector<2x32xi1>, vector<2x32xf32>
    %cst_100 = arith.constant 0.000000e+00 : f32
    %676 = vector.broadcast %cst_100 : f32 to vector<2x32xf32>
    %677 = arith.select %673, %671, %676 : vector<2x32xi1>, vector<2x32xf32>
    %678 = vector.extract_strided_slice %473 {offsets = [16, 0], sizes = [2, 128], strides = [1, 1]} : vector<32x128xf32> to vector<2x128xf32>
    %679 = arith.truncf %674 : vector<2x32xf32> to vector<2x32xbf16>
    %cst_101 = arith.constant dense<0.000000e+00> : vector<2x128xf32>
    %680 = tpu.matmul %679, %3, %cst_101 {dimension_numbers = #tpu.dot_dimension_numbers<[1], [0], [0], [1], [0, 0, 1, 1], [], []>} : vector<2x32xbf16>, vector<32x128xbf16>, vector<2x128xf32> -> vector<2x128xf32>
    %681 = arith.addf %678, %680 : vector<2x128xf32>
    %682 = arith.negf %681 : vector<2x128xf32>
    %683 = math.exp %682 : vector<2x128xf32>
    %cst_102 = arith.constant 1.000000e+00 : f32
    %684 = vector.broadcast %cst_102 : f32 to vector<2x128xf32>
    %685 = arith.addf %684, %683 : vector<2x128xf32>
    %686 = arith.divf %684, %685 : vector<2x128xf32>
    %687 = math.tanh %681 : vector<2x128xf32>
    %688 = vector.extract_strided_slice %686 {offsets = [0, 0], sizes = [2, 32], strides = [1, 1]} : vector<2x128xf32> to vector<2x32xf32>
    %689 = vector.extract_strided_slice %686 {offsets = [0, 32], sizes = [2, 32], strides = [1, 1]} : vector<2x128xf32> to vector<2x32xf32>
    %690 = vector.extract_strided_slice %687 {offsets = [0, 64], sizes = [2, 32], strides = [1, 1]} : vector<2x128xf32> to vector<2x32xf32>
    %691 = vector.extract_strided_slice %686 {offsets = [0, 96], sizes = [2, 32], strides = [1, 1]} : vector<2x128xf32> to vector<2x32xf32>
    %692 = arith.mulf %689, %675 : vector<2x32xf32>
    %693 = arith.mulf %688, %690 : vector<2x32xf32>
    %694 = arith.addf %692, %693 : vector<2x32xf32>
    %695 = math.tanh %694 : vector<2x32xf32>
    %696 = arith.mulf %691, %695 : vector<2x32xf32>
    %697 = vector.extract_strided_slice %14 {offsets = [8, 0, 0], sizes = [1, 2, 32], strides = [1, 1, 1]} : vector<16x2x32xi1> to vector<1x2x32xi1>
    %698 = vector.shape_cast %697 : vector<1x2x32xi1> to vector<2x32xi1>
    %699 = arith.select %698, %696, %674 : vector<2x32xi1>, vector<2x32xf32>
    %700 = arith.select %698, %694, %675 : vector<2x32xi1>, vector<2x32xf32>
    %cst_103 = arith.constant 0.000000e+00 : f32
    %701 = vector.broadcast %cst_103 : f32 to vector<2x32xf32>
    %702 = arith.select %698, %696, %701 : vector<2x32xi1>, vector<2x32xf32>
    %703 = vector.extract_strided_slice %473 {offsets = [18, 0], sizes = [2, 128], strides = [1, 1]} : vector<32x128xf32> to vector<2x128xf32>
    %704 = arith.truncf %699 : vector<2x32xf32> to vector<2x32xbf16>
    %cst_104 = arith.constant dense<0.000000e+00> : vector<2x128xf32>
    %705 = tpu.matmul %704, %3, %cst_104 {dimension_numbers = #tpu.dot_dimension_numbers<[1], [0], [0], [1], [0, 0, 1, 1], [], []>} : vector<2x32xbf16>, vector<32x128xbf16>, vector<2x128xf32> -> vector<2x128xf32>
    %706 = arith.addf %703, %705 : vector<2x128xf32>
    %707 = arith.negf %706 : vector<2x128xf32>
    %708 = math.exp %707 : vector<2x128xf32>
    %cst_105 = arith.constant 1.000000e+00 : f32
    %709 = vector.broadcast %cst_105 : f32 to vector<2x128xf32>
    %710 = arith.addf %709, %708 : vector<2x128xf32>
    %711 = arith.divf %709, %710 : vector<2x128xf32>
    %712 = math.tanh %706 : vector<2x128xf32>
    %713 = vector.extract_strided_slice %711 {offsets = [0, 0], sizes = [2, 32], strides = [1, 1]} : vector<2x128xf32> to vector<2x32xf32>
    %714 = vector.extract_strided_slice %711 {offsets = [0, 32], sizes = [2, 32], strides = [1, 1]} : vector<2x128xf32> to vector<2x32xf32>
    %715 = vector.extract_strided_slice %712 {offsets = [0, 64], sizes = [2, 32], strides = [1, 1]} : vector<2x128xf32> to vector<2x32xf32>
    %716 = vector.extract_strided_slice %711 {offsets = [0, 96], sizes = [2, 32], strides = [1, 1]} : vector<2x128xf32> to vector<2x32xf32>
    %717 = arith.mulf %714, %700 : vector<2x32xf32>
    %718 = arith.mulf %713, %715 : vector<2x32xf32>
    %719 = arith.addf %717, %718 : vector<2x32xf32>
    %720 = math.tanh %719 : vector<2x32xf32>
    %721 = arith.mulf %716, %720 : vector<2x32xf32>
    %722 = vector.extract_strided_slice %14 {offsets = [9, 0, 0], sizes = [1, 2, 32], strides = [1, 1, 1]} : vector<16x2x32xi1> to vector<1x2x32xi1>
    %723 = vector.shape_cast %722 : vector<1x2x32xi1> to vector<2x32xi1>
    %724 = arith.select %723, %721, %699 : vector<2x32xi1>, vector<2x32xf32>
    %725 = arith.select %723, %719, %700 : vector<2x32xi1>, vector<2x32xf32>
    %cst_106 = arith.constant 0.000000e+00 : f32
    %726 = vector.broadcast %cst_106 : f32 to vector<2x32xf32>
    %727 = arith.select %723, %721, %726 : vector<2x32xi1>, vector<2x32xf32>
    %728 = vector.extract_strided_slice %473 {offsets = [20, 0], sizes = [2, 128], strides = [1, 1]} : vector<32x128xf32> to vector<2x128xf32>
    %729 = arith.truncf %724 : vector<2x32xf32> to vector<2x32xbf16>
    %cst_107 = arith.constant dense<0.000000e+00> : vector<2x128xf32>
    %730 = tpu.matmul %729, %3, %cst_107 {dimension_numbers = #tpu.dot_dimension_numbers<[1], [0], [0], [1], [0, 0, 1, 1], [], []>} : vector<2x32xbf16>, vector<32x128xbf16>, vector<2x128xf32> -> vector<2x128xf32>
    %731 = arith.addf %728, %730 : vector<2x128xf32>
    %732 = arith.negf %731 : vector<2x128xf32>
    %733 = math.exp %732 : vector<2x128xf32>
    %cst_108 = arith.constant 1.000000e+00 : f32
    %734 = vector.broadcast %cst_108 : f32 to vector<2x128xf32>
    %735 = arith.addf %734, %733 : vector<2x128xf32>
    %736 = arith.divf %734, %735 : vector<2x128xf32>
    %737 = math.tanh %731 : vector<2x128xf32>
    %738 = vector.extract_strided_slice %736 {offsets = [0, 0], sizes = [2, 32], strides = [1, 1]} : vector<2x128xf32> to vector<2x32xf32>
    %739 = vector.extract_strided_slice %736 {offsets = [0, 32], sizes = [2, 32], strides = [1, 1]} : vector<2x128xf32> to vector<2x32xf32>
    %740 = vector.extract_strided_slice %737 {offsets = [0, 64], sizes = [2, 32], strides = [1, 1]} : vector<2x128xf32> to vector<2x32xf32>
    %741 = vector.extract_strided_slice %736 {offsets = [0, 96], sizes = [2, 32], strides = [1, 1]} : vector<2x128xf32> to vector<2x32xf32>
    %742 = arith.mulf %739, %725 : vector<2x32xf32>
    %743 = arith.mulf %738, %740 : vector<2x32xf32>
    %744 = arith.addf %742, %743 : vector<2x32xf32>
    %745 = math.tanh %744 : vector<2x32xf32>
    %746 = arith.mulf %741, %745 : vector<2x32xf32>
    %747 = vector.extract_strided_slice %14 {offsets = [10, 0, 0], sizes = [1, 2, 32], strides = [1, 1, 1]} : vector<16x2x32xi1> to vector<1x2x32xi1>
    %748 = vector.shape_cast %747 : vector<1x2x32xi1> to vector<2x32xi1>
    %749 = arith.select %748, %746, %724 : vector<2x32xi1>, vector<2x32xf32>
    %750 = arith.select %748, %744, %725 : vector<2x32xi1>, vector<2x32xf32>
    %cst_109 = arith.constant 0.000000e+00 : f32
    %751 = vector.broadcast %cst_109 : f32 to vector<2x32xf32>
    %752 = arith.select %748, %746, %751 : vector<2x32xi1>, vector<2x32xf32>
    %753 = vector.extract_strided_slice %473 {offsets = [22, 0], sizes = [2, 128], strides = [1, 1]} : vector<32x128xf32> to vector<2x128xf32>
    %754 = arith.truncf %749 : vector<2x32xf32> to vector<2x32xbf16>
    %cst_110 = arith.constant dense<0.000000e+00> : vector<2x128xf32>
    %755 = tpu.matmul %754, %3, %cst_110 {dimension_numbers = #tpu.dot_dimension_numbers<[1], [0], [0], [1], [0, 0, 1, 1], [], []>} : vector<2x32xbf16>, vector<32x128xbf16>, vector<2x128xf32> -> vector<2x128xf32>
    %756 = arith.addf %753, %755 : vector<2x128xf32>
    %757 = arith.negf %756 : vector<2x128xf32>
    %758 = math.exp %757 : vector<2x128xf32>
    %cst_111 = arith.constant 1.000000e+00 : f32
    %759 = vector.broadcast %cst_111 : f32 to vector<2x128xf32>
    %760 = arith.addf %759, %758 : vector<2x128xf32>
    %761 = arith.divf %759, %760 : vector<2x128xf32>
    %762 = math.tanh %756 : vector<2x128xf32>
    %763 = vector.extract_strided_slice %761 {offsets = [0, 0], sizes = [2, 32], strides = [1, 1]} : vector<2x128xf32> to vector<2x32xf32>
    %764 = vector.extract_strided_slice %761 {offsets = [0, 32], sizes = [2, 32], strides = [1, 1]} : vector<2x128xf32> to vector<2x32xf32>
    %765 = vector.extract_strided_slice %762 {offsets = [0, 64], sizes = [2, 32], strides = [1, 1]} : vector<2x128xf32> to vector<2x32xf32>
    %766 = vector.extract_strided_slice %761 {offsets = [0, 96], sizes = [2, 32], strides = [1, 1]} : vector<2x128xf32> to vector<2x32xf32>
    %767 = arith.mulf %764, %750 : vector<2x32xf32>
    %768 = arith.mulf %763, %765 : vector<2x32xf32>
    %769 = arith.addf %767, %768 : vector<2x32xf32>
    %770 = math.tanh %769 : vector<2x32xf32>
    %771 = arith.mulf %766, %770 : vector<2x32xf32>
    %772 = vector.extract_strided_slice %14 {offsets = [11, 0, 0], sizes = [1, 2, 32], strides = [1, 1, 1]} : vector<16x2x32xi1> to vector<1x2x32xi1>
    %773 = vector.shape_cast %772 : vector<1x2x32xi1> to vector<2x32xi1>
    %774 = arith.select %773, %771, %749 : vector<2x32xi1>, vector<2x32xf32>
    %775 = arith.select %773, %769, %750 : vector<2x32xi1>, vector<2x32xf32>
    %cst_112 = arith.constant 0.000000e+00 : f32
    %776 = vector.broadcast %cst_112 : f32 to vector<2x32xf32>
    %777 = arith.select %773, %771, %776 : vector<2x32xi1>, vector<2x32xf32>
    %778 = vector.extract_strided_slice %473 {offsets = [24, 0], sizes = [2, 128], strides = [1, 1]} : vector<32x128xf32> to vector<2x128xf32>
    %779 = arith.truncf %774 : vector<2x32xf32> to vector<2x32xbf16>
    %cst_113 = arith.constant dense<0.000000e+00> : vector<2x128xf32>
    %780 = tpu.matmul %779, %3, %cst_113 {dimension_numbers = #tpu.dot_dimension_numbers<[1], [0], [0], [1], [0, 0, 1, 1], [], []>} : vector<2x32xbf16>, vector<32x128xbf16>, vector<2x128xf32> -> vector<2x128xf32>
    %781 = arith.addf %778, %780 : vector<2x128xf32>
    %782 = arith.negf %781 : vector<2x128xf32>
    %783 = math.exp %782 : vector<2x128xf32>
    %cst_114 = arith.constant 1.000000e+00 : f32
    %784 = vector.broadcast %cst_114 : f32 to vector<2x128xf32>
    %785 = arith.addf %784, %783 : vector<2x128xf32>
    %786 = arith.divf %784, %785 : vector<2x128xf32>
    %787 = math.tanh %781 : vector<2x128xf32>
    %788 = vector.extract_strided_slice %786 {offsets = [0, 0], sizes = [2, 32], strides = [1, 1]} : vector<2x128xf32> to vector<2x32xf32>
    %789 = vector.extract_strided_slice %786 {offsets = [0, 32], sizes = [2, 32], strides = [1, 1]} : vector<2x128xf32> to vector<2x32xf32>
    %790 = vector.extract_strided_slice %787 {offsets = [0, 64], sizes = [2, 32], strides = [1, 1]} : vector<2x128xf32> to vector<2x32xf32>
    %791 = vector.extract_strided_slice %786 {offsets = [0, 96], sizes = [2, 32], strides = [1, 1]} : vector<2x128xf32> to vector<2x32xf32>
    %792 = arith.mulf %789, %775 : vector<2x32xf32>
    %793 = arith.mulf %788, %790 : vector<2x32xf32>
    %794 = arith.addf %792, %793 : vector<2x32xf32>
    %795 = math.tanh %794 : vector<2x32xf32>
    %796 = arith.mulf %791, %795 : vector<2x32xf32>
    %797 = vector.extract_strided_slice %14 {offsets = [12, 0, 0], sizes = [1, 2, 32], strides = [1, 1, 1]} : vector<16x2x32xi1> to vector<1x2x32xi1>
    %798 = vector.shape_cast %797 : vector<1x2x32xi1> to vector<2x32xi1>
    %799 = arith.select %798, %796, %774 : vector<2x32xi1>, vector<2x32xf32>
    %800 = arith.select %798, %794, %775 : vector<2x32xi1>, vector<2x32xf32>
    %cst_115 = arith.constant 0.000000e+00 : f32
    %801 = vector.broadcast %cst_115 : f32 to vector<2x32xf32>
    %802 = arith.select %798, %796, %801 : vector<2x32xi1>, vector<2x32xf32>
    %803 = vector.extract_strided_slice %473 {offsets = [26, 0], sizes = [2, 128], strides = [1, 1]} : vector<32x128xf32> to vector<2x128xf32>
    %804 = arith.truncf %799 : vector<2x32xf32> to vector<2x32xbf16>
    %cst_116 = arith.constant dense<0.000000e+00> : vector<2x128xf32>
    %805 = tpu.matmul %804, %3, %cst_116 {dimension_numbers = #tpu.dot_dimension_numbers<[1], [0], [0], [1], [0, 0, 1, 1], [], []>} : vector<2x32xbf16>, vector<32x128xbf16>, vector<2x128xf32> -> vector<2x128xf32>
    %806 = arith.addf %803, %805 : vector<2x128xf32>
    %807 = arith.negf %806 : vector<2x128xf32>
    %808 = math.exp %807 : vector<2x128xf32>
    %cst_117 = arith.constant 1.000000e+00 : f32
    %809 = vector.broadcast %cst_117 : f32 to vector<2x128xf32>
    %810 = arith.addf %809, %808 : vector<2x128xf32>
    %811 = arith.divf %809, %810 : vector<2x128xf32>
    %812 = math.tanh %806 : vector<2x128xf32>
    %813 = vector.extract_strided_slice %811 {offsets = [0, 0], sizes = [2, 32], strides = [1, 1]} : vector<2x128xf32> to vector<2x32xf32>
    %814 = vector.extract_strided_slice %811 {offsets = [0, 32], sizes = [2, 32], strides = [1, 1]} : vector<2x128xf32> to vector<2x32xf32>
    %815 = vector.extract_strided_slice %812 {offsets = [0, 64], sizes = [2, 32], strides = [1, 1]} : vector<2x128xf32> to vector<2x32xf32>
    %816 = vector.extract_strided_slice %811 {offsets = [0, 96], sizes = [2, 32], strides = [1, 1]} : vector<2x128xf32> to vector<2x32xf32>
    %817 = arith.mulf %814, %800 : vector<2x32xf32>
    %818 = arith.mulf %813, %815 : vector<2x32xf32>
    %819 = arith.addf %817, %818 : vector<2x32xf32>
    %820 = math.tanh %819 : vector<2x32xf32>
    %821 = arith.mulf %816, %820 : vector<2x32xf32>
    %822 = vector.extract_strided_slice %14 {offsets = [13, 0, 0], sizes = [1, 2, 32], strides = [1, 1, 1]} : vector<16x2x32xi1> to vector<1x2x32xi1>
    %823 = vector.shape_cast %822 : vector<1x2x32xi1> to vector<2x32xi1>
    %824 = arith.select %823, %821, %799 : vector<2x32xi1>, vector<2x32xf32>
    %825 = arith.select %823, %819, %800 : vector<2x32xi1>, vector<2x32xf32>
    %cst_118 = arith.constant 0.000000e+00 : f32
    %826 = vector.broadcast %cst_118 : f32 to vector<2x32xf32>
    %827 = arith.select %823, %821, %826 : vector<2x32xi1>, vector<2x32xf32>
    %828 = vector.extract_strided_slice %473 {offsets = [28, 0], sizes = [2, 128], strides = [1, 1]} : vector<32x128xf32> to vector<2x128xf32>
    %829 = arith.truncf %824 : vector<2x32xf32> to vector<2x32xbf16>
    %cst_119 = arith.constant dense<0.000000e+00> : vector<2x128xf32>
    %830 = tpu.matmul %829, %3, %cst_119 {dimension_numbers = #tpu.dot_dimension_numbers<[1], [0], [0], [1], [0, 0, 1, 1], [], []>} : vector<2x32xbf16>, vector<32x128xbf16>, vector<2x128xf32> -> vector<2x128xf32>
    %831 = arith.addf %828, %830 : vector<2x128xf32>
    %832 = arith.negf %831 : vector<2x128xf32>
    %833 = math.exp %832 : vector<2x128xf32>
    %cst_120 = arith.constant 1.000000e+00 : f32
    %834 = vector.broadcast %cst_120 : f32 to vector<2x128xf32>
    %835 = arith.addf %834, %833 : vector<2x128xf32>
    %836 = arith.divf %834, %835 : vector<2x128xf32>
    %837 = math.tanh %831 : vector<2x128xf32>
    %838 = vector.extract_strided_slice %836 {offsets = [0, 0], sizes = [2, 32], strides = [1, 1]} : vector<2x128xf32> to vector<2x32xf32>
    %839 = vector.extract_strided_slice %836 {offsets = [0, 32], sizes = [2, 32], strides = [1, 1]} : vector<2x128xf32> to vector<2x32xf32>
    %840 = vector.extract_strided_slice %837 {offsets = [0, 64], sizes = [2, 32], strides = [1, 1]} : vector<2x128xf32> to vector<2x32xf32>
    %841 = vector.extract_strided_slice %836 {offsets = [0, 96], sizes = [2, 32], strides = [1, 1]} : vector<2x128xf32> to vector<2x32xf32>
    %842 = arith.mulf %839, %825 : vector<2x32xf32>
    %843 = arith.mulf %838, %840 : vector<2x32xf32>
    %844 = arith.addf %842, %843 : vector<2x32xf32>
    %845 = math.tanh %844 : vector<2x32xf32>
    %846 = arith.mulf %841, %845 : vector<2x32xf32>
    %847 = vector.extract_strided_slice %14 {offsets = [14, 0, 0], sizes = [1, 2, 32], strides = [1, 1, 1]} : vector<16x2x32xi1> to vector<1x2x32xi1>
    %848 = vector.shape_cast %847 : vector<1x2x32xi1> to vector<2x32xi1>
    %849 = arith.select %848, %846, %824 : vector<2x32xi1>, vector<2x32xf32>
    %850 = arith.select %848, %844, %825 : vector<2x32xi1>, vector<2x32xf32>
    %cst_121 = arith.constant 0.000000e+00 : f32
    %851 = vector.broadcast %cst_121 : f32 to vector<2x32xf32>
    %852 = arith.select %848, %846, %851 : vector<2x32xi1>, vector<2x32xf32>
    %853 = vector.extract_strided_slice %473 {offsets = [30, 0], sizes = [2, 128], strides = [1, 1]} : vector<32x128xf32> to vector<2x128xf32>
    %854 = arith.truncf %849 : vector<2x32xf32> to vector<2x32xbf16>
    %cst_122 = arith.constant dense<0.000000e+00> : vector<2x128xf32>
    %855 = tpu.matmul %854, %3, %cst_122 {dimension_numbers = #tpu.dot_dimension_numbers<[1], [0], [0], [1], [0, 0, 1, 1], [], []>} : vector<2x32xbf16>, vector<32x128xbf16>, vector<2x128xf32> -> vector<2x128xf32>
    %856 = arith.addf %853, %855 : vector<2x128xf32>
    %857 = arith.negf %856 : vector<2x128xf32>
    %858 = math.exp %857 : vector<2x128xf32>
    %cst_123 = arith.constant 1.000000e+00 : f32
    %859 = vector.broadcast %cst_123 : f32 to vector<2x128xf32>
    %860 = arith.addf %859, %858 : vector<2x128xf32>
    %861 = arith.divf %859, %860 : vector<2x128xf32>
    %862 = math.tanh %856 : vector<2x128xf32>
    %863 = vector.extract_strided_slice %861 {offsets = [0, 0], sizes = [2, 32], strides = [1, 1]} : vector<2x128xf32> to vector<2x32xf32>
    %864 = vector.extract_strided_slice %861 {offsets = [0, 32], sizes = [2, 32], strides = [1, 1]} : vector<2x128xf32> to vector<2x32xf32>
    %865 = vector.extract_strided_slice %862 {offsets = [0, 64], sizes = [2, 32], strides = [1, 1]} : vector<2x128xf32> to vector<2x32xf32>
    %866 = vector.extract_strided_slice %861 {offsets = [0, 96], sizes = [2, 32], strides = [1, 1]} : vector<2x128xf32> to vector<2x32xf32>
    %867 = arith.mulf %864, %850 : vector<2x32xf32>
    %868 = arith.mulf %863, %865 : vector<2x32xf32>
    %869 = arith.addf %867, %868 : vector<2x32xf32>
    %870 = math.tanh %869 : vector<2x32xf32>
    %871 = arith.mulf %866, %870 : vector<2x32xf32>
    %872 = vector.extract_strided_slice %14 {offsets = [15, 0, 0], sizes = [1, 2, 32], strides = [1, 1, 1]} : vector<16x2x32xi1> to vector<1x2x32xi1>
    %873 = vector.shape_cast %872 : vector<1x2x32xi1> to vector<2x32xi1>
    %cst_124 = arith.constant 0.000000e+00 : f32
    %874 = vector.broadcast %cst_124 : f32 to vector<2x32xf32>
    %875 = arith.select %873, %871, %874 : vector<2x32xi1>, vector<2x32xf32>
    %876 = arith.maximumf %502, %527 : vector<2x32xf32>
    %877 = arith.maximumf %876, %552 : vector<2x32xf32>
    %878 = arith.maximumf %877, %577 : vector<2x32xf32>
    %879 = arith.maximumf %878, %602 : vector<2x32xf32>
    %880 = arith.maximumf %879, %627 : vector<2x32xf32>
    %881 = arith.maximumf %880, %652 : vector<2x32xf32>
    %882 = arith.maximumf %881, %677 : vector<2x32xf32>
    %883 = arith.maximumf %882, %702 : vector<2x32xf32>
    %884 = arith.maximumf %883, %727 : vector<2x32xf32>
    %885 = arith.maximumf %884, %752 : vector<2x32xf32>
    %886 = arith.maximumf %885, %777 : vector<2x32xf32>
    %887 = arith.maximumf %886, %802 : vector<2x32xf32>
    %888 = arith.maximumf %887, %827 : vector<2x32xf32>
    %889 = arith.maximumf %888, %852 : vector<2x32xf32>
    %890 = arith.maximumf %889, %875 : vector<2x32xf32>
    %c0_125 = arith.constant 0 : index
    %c0_126 = arith.constant 0 : index
    %891 = vector.load %arg4[%c0_125, %c0_126] : memref<28x99xbf16, #tpu.memory_space<vmem>>, vector<28x99xbf16>
    %cst_127 = arith.constant dense<0.000000e+00> : vector<28x32xf32>
    %892 = tpu.matmul %891, %4, %cst_127 {dimension_numbers = #tpu.dot_dimension_numbers<[1], [0], [0], [1], [0, 0, 1, 1], [], []>} : vector<28x99xbf16>, vector<99x32xbf16>, vector<28x32xf32> -> vector<28x32xf32>
    %893 = vector.broadcast %8 : vector<1x32xf32> to vector<28x32xf32>
    %894 = arith.addf %892, %893 : vector<28x32xf32>
    %cst_128 = arith.constant 0.000000e+00 : f32
    %895 = vector.broadcast %cst_128 : f32 to vector<28x32xf32>
    %896 = arith.maximumf %894, %895 : vector<28x32xf32>
    %897 = vector.extract_strided_slice %896 {offsets = [0, 0], sizes = [2, 32], strides = [1, 1]} : vector<28x32xf32> to vector<2x32xf32>
    %898 = vector.extract_strided_slice %896 {offsets = [2, 0], sizes = [2, 32], strides = [1, 1]} : vector<28x32xf32> to vector<2x32xf32>
    %899 = arith.maximumf %897, %898 : vector<2x32xf32>
    %900 = vector.extract_strided_slice %896 {offsets = [4, 0], sizes = [2, 32], strides = [1, 1]} : vector<28x32xf32> to vector<2x32xf32>
    %901 = arith.maximumf %899, %900 : vector<2x32xf32>
    %902 = vector.extract_strided_slice %896 {offsets = [6, 0], sizes = [2, 32], strides = [1, 1]} : vector<28x32xf32> to vector<2x32xf32>
    %903 = vector.extract_strided_slice %896 {offsets = [8, 0], sizes = [2, 32], strides = [1, 1]} : vector<28x32xf32> to vector<2x32xf32>
    %904 = arith.maximumf %902, %903 : vector<2x32xf32>
    %905 = vector.extract_strided_slice %896 {offsets = [10, 0], sizes = [2, 32], strides = [1, 1]} : vector<28x32xf32> to vector<2x32xf32>
    %906 = arith.maximumf %904, %905 : vector<2x32xf32>
    %907 = vector.extract_strided_slice %896 {offsets = [12, 0], sizes = [2, 32], strides = [1, 1]} : vector<28x32xf32> to vector<2x32xf32>
    %908 = vector.extract_strided_slice %896 {offsets = [14, 0], sizes = [2, 32], strides = [1, 1]} : vector<28x32xf32> to vector<2x32xf32>
    %909 = arith.maximumf %907, %908 : vector<2x32xf32>
    %910 = vector.extract_strided_slice %896 {offsets = [16, 0], sizes = [2, 32], strides = [1, 1]} : vector<28x32xf32> to vector<2x32xf32>
    %911 = arith.maximumf %909, %910 : vector<2x32xf32>
    %912 = vector.extract_strided_slice %896 {offsets = [18, 0], sizes = [2, 32], strides = [1, 1]} : vector<28x32xf32> to vector<2x32xf32>
    %913 = vector.extract_strided_slice %896 {offsets = [20, 0], sizes = [2, 32], strides = [1, 1]} : vector<28x32xf32> to vector<2x32xf32>
    %914 = arith.maximumf %912, %913 : vector<2x32xf32>
    %915 = vector.extract_strided_slice %896 {offsets = [22, 0], sizes = [2, 32], strides = [1, 1]} : vector<28x32xf32> to vector<2x32xf32>
    %916 = arith.maximumf %914, %915 : vector<2x32xf32>
    %917 = tpu.concatenate %901, %906, %911 in 1 : vector<2x32xf32>, vector<2x32xf32>, vector<2x32xf32> -> vector<2x96xf32>
    %918 = tpu.concatenate %906, %911, %916 in 1 : vector<2x32xf32>, vector<2x32xf32>, vector<2x32xf32> -> vector<2x96xf32>
    %919 = tpu.concatenate %917, %918 in 0 : vector<2x96xf32>, vector<2x96xf32> -> vector<4x96xf32>
    %920 = arith.truncf %919 : vector<4x96xf32> to vector<4x96xbf16>
    %cst_129 = arith.constant dense<0.000000e+00> : vector<4x32xf32>
    %921 = tpu.matmul %920, %5, %cst_129 {dimension_numbers = #tpu.dot_dimension_numbers<[1], [0], [0], [1], [0, 0, 1, 1], [], []>} : vector<4x96xbf16>, vector<96x32xbf16>, vector<4x32xf32> -> vector<4x32xf32>
    %922 = vector.broadcast %9 : vector<1x32xf32> to vector<4x32xf32>
    %923 = arith.addf %921, %922 : vector<4x32xf32>
    %cst_130 = arith.constant 0.000000e+00 : f32
    %924 = vector.broadcast %cst_130 : f32 to vector<4x32xf32>
    %925 = arith.maximumf %923, %924 : vector<4x32xf32>
    %926 = vector.extract_strided_slice %925 {offsets = [0, 0], sizes = [2, 32], strides = [1, 1]} : vector<4x32xf32> to vector<2x32xf32>
    %927 = vector.extract_strided_slice %925 {offsets = [2, 0], sizes = [2, 32], strides = [1, 1]} : vector<4x32xf32> to vector<2x32xf32>
    %928 = arith.maximumf %926, %927 : vector<2x32xf32>
    %929 = tpu.concatenate %890, %928 in 1 : vector<2x32xf32>, vector<2x32xf32> -> vector<2x64xf32>
    %930 = vector.broadcast %10 : vector<1x64xf32> to vector<2x64xf32>
    %931 = arith.mulf %929, %930 : vector<2x64xf32>
    %cst_131 = arith.constant dense<0.000000e+00> : vector<2xf32>
    %932 = vector.multi_reduction <add>, %931, %cst_131 [1] : vector<2x64xf32> to vector<2xf32>
    %933 = vector.shape_cast %932 : vector<2xf32> to vector<2x1xf32>
    %934 = vector.broadcast %11 : vector<1x1xf32> to vector<2x1xf32>
    %935 = arith.addf %933, %934 : vector<2x1xf32>
    %936 = arith.negf %935 : vector<2x1xf32>
    %937 = math.exp %936 : vector<2x1xf32>
    %cst_132 = arith.constant 1.000000e+00 : f32
    %938 = vector.broadcast %cst_132 : f32 to vector<2x1xf32>
    %939 = arith.addf %938, %937 : vector<2x1xf32>
    %940 = arith.divf %938, %939 : vector<2x1xf32>
    %c0_133 = arith.constant 0 : index
    %c0_134 = arith.constant 0 : index
    %941 = vector.load %arg7[%c0_133, %c0_134] : memref<2x1xf32, #tpu.memory_space<vmem>>, vector<2x1xf32>
    tpu.vector_store %arg7[%c0_133, %c0_134], %940 {strides = array<i32>} : memref<2x1xf32, #tpu.memory_space<vmem>>, vector<2x1xf32>,
    return
  }
  func.func @transform_0(%arg0: i32) -> (i32, i32) {
    %c0_i32 = arith.constant 0 : i32
    %c0_i32_0 = arith.constant 0 : i32
    %c0_i32_1 = arith.constant 0 : i32
    return %c0_i32, %c0_i32_0 : i32, i32
  }
  func.func @transform_1(%arg0: i32) -> (i32, i32) {
    %c0_i32 = arith.constant 0 : i32
    %c0_i32_0 = arith.constant 0 : i32
    %c0_i32_1 = arith.constant 0 : i32
    return %c0_i32, %c0_i32_0 : i32, i32
  }
  func.func @transform_2(%arg0: i32) -> (i32, i32) {
    %c0_i32 = arith.constant 0 : i32
    %c0_i32_0 = arith.constant 0 : i32
    %c0_i32_1 = arith.constant 0 : i32
    return %c0_i32, %c0_i32_0 : i32, i32
  }
  func.func @transform_3(%arg0: i32) -> (i32, i32) {
    %c0_i32 = arith.constant 0 : i32
    %c0_i32_0 = arith.constant 0 : i32
    %c0_i32_1 = arith.constant 0 : i32
    return %c0_i32, %c0_i32_0 : i32, i32
  }
  func.func @transform_4(%arg0: i32) -> (i32, i32, i32) {
    %c0_i32 = arith.constant 0 : i32
    %c0_i32_0 = arith.constant 0 : i32
    %c0_i32_1 = arith.constant 0 : i32
    %c0_i32_2 = arith.constant 0 : i32
    return %c0_i32, %c0_i32_0, %c0_i32_1 : i32, i32, i32
  }
  func.func @transform_5(%arg0: i32) -> (i32, i32, i32) {
    %c0_i32 = arith.constant 0 : i32
    %c0_i32_0 = arith.constant 0 : i32
    %c0_i32_1 = arith.constant 0 : i32
    %c0_i32_2 = arith.constant 0 : i32
    return %c0_i32, %c0_i32_0, %c0_i32_1 : i32, i32, i32
  }
  func.func @transform_6(%arg0: i32) -> (i32, i32) {
    %c0_i32 = arith.constant 0 : i32
    %c0_i32_0 = arith.constant 0 : i32
    %c0_i32_1 = arith.constant 0 : i32
    return %c0_i32, %c0_i32_0 : i32, i32
  }
}

</mosaic_0001>

<llo_original>
// kernel: sentiment_forward.1
$region0: #{sentiment_forward.1}
  #allocation0 [shape = 'u32[]', space=smem, size = 0x4, offset = 0x4, fixed_abs, tag = 'smem constant byte address 0x4 - core index']
  #allocation1 [shape = 'u32[144,128]{1,0:T(1,128)}', space=vmem, size = 0x12000, scoped, tag = 'internal scratch']
  %s0 = inlined_call_operand.vmem [shape: bf16[416,128], index: 0, kind: input, shape index: {}]
  %s1 = inlined_call_operand.vmem [shape: f32[48,128], index: 1, kind: input, shape index: {}]
  %s2 = inlined_call_operand.vmem [shape: bf16[32,66], index: 2, kind: input, shape index: {}]
  %s3 = inlined_call_operand.vmem [shape: bf16[28,99], index: 3, kind: input, shape index: {}]
  %s4 = inlined_call_operand.vmem [shape: f32[16,2,32], index: 4, kind: input, shape index: {}]
  %s5 = inlined_call_operand.vmem [shape: f32[4,2,32], index: 5, kind: input, shape index: {}]
  %s6 = inlined_call_operand.vmem [shape: f32[2,1], index: 6, kind: output, shape index: {}]
  %s7 = sld [smem:[#allocation0]]
  $region34: #{sentiment_forward.1} parent=0
    _
  %s9 = ssub.s32 1, %s7
  %s10 = scalar_select 0, %s9, %s7
  // Predicated region
  $region2: #{sentiment_forward.1} parent=0 // pred_check
    _
  $region3: #{sentiment_forward.1} parent=0 // pred_check_branch
    %12 = sbr.rel (0) target = $region5
  $region4: #{sentiment_forward.1} parent=0 // pred_region
    _
  $region5: #{sentiment_forward.1} parent=0 // pred_fallthru
    _
  // Predicated region
  $region6: #{sentiment_forward.1} parent=0 // pred_check
    _
  $region7: #{sentiment_forward.1} parent=0 // pred_check_branch
    %14 = sbr.rel (0) target = $region9
  $region8: #{sentiment_forward.1} parent=0 // pred_region
    _
  $region9: #{sentiment_forward.1} parent=0 // pred_fallthru
    _
  // Predicated region
  $region10: #{sentiment_forward.1} parent=0 // pred_check
    _
  $region11: #{sentiment_forward.1} parent=0 // pred_check_branch
    %16 = sbr.rel (0) target = $region13
  $region12: #{sentiment_forward.1} parent=0 // pred_region
    _
  $region13: #{sentiment_forward.1} parent=0 // pred_fallthru
    _
  // Predicated region
  $region14: #{sentiment_forward.1} parent=0 // pred_check
    _
  $region15: #{sentiment_forward.1} parent=0 // pred_check_branch
    %18 = sbr.rel (0) target = $region17
  $region16: #{sentiment_forward.1} parent=0 // pred_region
    _
  $region17: #{sentiment_forward.1} parent=0 // pred_fallthru
    _
  // Predicated region
  $region18: #{sentiment_forward.1} parent=0 // pred_check
    _
  $region19: #{sentiment_forward.1} parent=0 // pred_check_branch
    %20 = sbr.rel (0) target = $region21
  $region20: #{sentiment_forward.1} parent=0 // pred_region
    _
  $region21: #{sentiment_forward.1} parent=0 // pred_fallthru
    _
  // Predicated region
  $region22: #{sentiment_forward.1} parent=0 // pred_check
    _
  $region23: #{sentiment_forward.1} parent=0 // pred_check_branch
    %22 = sbr.rel (0) target = $region25
  $region24: #{sentiment_forward.1} parent=0 // pred_region
    _
  $region25: #{sentiment_forward.1} parent=0 // pred_fallthru
    _
  %v24 = vld [vmem:[%s0] sm:$0xf]
  %v25 = vld [vmem:[%s0 + $0x4] sm:$0xf]
  %v26 = vld [vmem:[%s0 + $0x8] sm:$0xf]
  %v27 = vld [vmem:[%s0 + $0xc] sm:$0xf]
  %v28 = vld [vmem:[%s0 + $0x10] sm:$0xf]
  %v29 = vld [vmem:[%s0 + $0x14] sm:$0xf]
  %v30 = vld [vmem:[%s0 + $0x18] sm:$0xf]
  %v31 = vld [vmem:[%s0 + $0x1c] sm:$0xf]
  %v32 = vld [vmem:[%s0 + $0x20] sm:$0x1]
  %v33 = vld [vmem:[%s0 + $0x28] sm:$0xf]
  %v34 = vld [vmem:[%s0 + $0x2c] sm:$0xf]
  %v35 = vld [vmem:[%s0 + $0x30] sm:$0xf]
  %v36 = vld [vmem:[%s0 + $0x34] sm:$0xf]
  %v37 = vld [vmem:[%s0 + $0x38] sm:$0xf]
  %v38 = vld [vmem:[%s0 + $0x3c] sm:$0xf]
  %v39 = vld [vmem:[%s0 + $0x40] sm:$0xf]
  %v40 = vld [vmem:[%s0 + $0x44] sm:$0xf]
  %v41 = vld [vmem:[%s0 + $0x48] sm:$0xf]
  %v42 = vld [vmem:[%s0 + $0x4c] sm:$0xf]
  %v43 = vld [vmem:[%s0 + $0x50] sm:$0xf]
  %v44 = vld [vmem:[%s0 + $0x54] sm:$0xf]
  %v45 = vld [vmem:[%s0 + $0x58] sm:$0xf]
  %v46 = vld [vmem:[%s0 + $0x5c] sm:$0xf]
  %v47 = vld [vmem:[%s0 + $0x60] sm:$0xf]
  %v48 = vld [vmem:[%s0 + $0x64] sm:$0xf]
  %v49 = vld [vmem:[%s0 + $0x68] sm:$0xf]
  %v50 = vld [vmem:[%s0 + $0x6c] sm:$0xf]
  %v51 = vld [vmem:[%s0 + $0x70] sm:$0xf]
  %v52 = vld [vmem:[%s0 + $0x74] sm:$0xf]
  %v53 = vld [vmem:[%s0 + $0x78] sm:$0xf]
  %v54 = vld [vmem:[%s0 + $0x7c] sm:$0xf]
  %v55 = vld [vmem:[%s0 + $0x80] sm:$0xf]
  %v56 = vld [vmem:[%s0 + $0x84] sm:$0xf]
  %v57 = vld [vmem:[%s0 + $0x88] sm:$0xf]
  %v58 = vld [vmem:[%s0 + $0x8c] sm:$0xf]
  %v59 = vld [vmem:[%s0 + $0x90] sm:$0xf]
  %v60 = vld [vmem:[%s0 + $0x94] sm:$0xf]
  %v61 = vld [vmem:[%s0 + $0x98] sm:$0x3]
  %v62 = vld [vmem:[%s0 + $0xa0] sm:$0xf]
  %v63 = vld [vmem:[%s0 + $0xa4] sm:$0xf]
  %v64 = vld [vmem:[%s0 + $0xa8] sm:$0xf]
  %v65 = vld [vmem:[%s0 + $0xac] sm:$0xf]
  %v66 = vld [vmem:[%s0 + $0xb0] sm:$0xf]
  %v67 = vld [vmem:[%s0 + $0xb4] sm:$0xf]
  %v68 = vld [vmem:[%s0 + $0xb8] sm:$0xf]
  %v69 = vld [vmem:[%s0 + $0xbc] sm:$0xf]
  %v70 = vld [vmem:[%s0 + $0xc0] sm:$0xf]
  %v71 = vld [vmem:[%s0 + $0xc4] sm:$0xf]
  %v72 = vld [vmem:[%s0 + $0xc8] sm:$0xf]
  %v73 = vld [vmem:[%s0 + $0xcc] sm:$0xf]
  %v74 = vld [vmem:[%s1] sm:$0x1]
  %v75 = vld [vmem:[%s1 + $0x8] sm:$0x1]
  %v76 = vld [vmem:[%s1 + $0x10] sm:$0x1]
  %v77 = vld [vmem:[%s1 + $0x18] sm:$0x1]
  %v78 = vld [vmem:[%s1 + $0x20] sm:$0x1]
  %v79 = vld [vmem:[%s1 + $0x28] sm:$0x1]
  %v80 = vld [vmem:[%s4] sm:$0x3]
  %v81 = vld [vmem:[%s4 + $0x2] sm:$0x3]
  %v82 = vld [vmem:[%s4 + $0x4] sm:$0x3]
  %v83 = vld [vmem:[%s4 + $0x6] sm:$0x3]
  %v84 = vld [vmem:[%s4 + $0x8] sm:$0x3]
  %v85 = vld [vmem:[%s4 + $0xa] sm:$0x3]
  %v86 = vld [vmem:[%s4 + $0xc] sm:$0x3]
  %v87 = vld [vmem:[%s4 + $0xe] sm:$0x3]
  %v88 = vld [vmem:[%s4 + $0x10] sm:$0x3]
  %v89 = vld [vmem:[%s4 + $0x12] sm:$0x3]
  %v90 = vld [vmem:[%s4 + $0x14] sm:$0x3]
  %v91 = vld [vmem:[%s4 + $0x16] sm:$0x3]
  %v92 = vld [vmem:[%s4 + $0x18] sm:$0x3]
  %v93 = vld [vmem:[%s4 + $0x1a] sm:$0x3]
  %v94 = vld [vmem:[%s4 + $0x1c] sm:$0x3]
  %v95 = vld [vmem:[%s4 + $0x1e] sm:$0x3]
  %vm96 = vcmp.ne.f32.partialorder %v80, 0.0
  %vm97 = vcmp.ne.f32.partialorder %v81, 0.0
  %vm98 = vcmp.ne.f32.partialorder %v82, 0.0
  %vm99 = vcmp.ne.f32.partialorder %v83, 0.0
  %vm100 = vcmp.ne.f32.partialorder %v84, 0.0
  %vm101 = vcmp.ne.f32.partialorder %v85, 0.0
  %vm102 = vcmp.ne.f32.partialorder %v86, 0.0
  %vm103 = vcmp.ne.f32.partialorder %v87, 0.0
  %vm104 = vcmp.ne.f32.partialorder %v88, 0.0
  %vm105 = vcmp.ne.f32.partialorder %v89, 0.0
  %vm106 = vcmp.ne.f32.partialorder %v90, 0.0
  %vm107 = vcmp.ne.f32.partialorder %v91, 0.0
  %vm108 = vcmp.ne.f32.partialorder %v92, 0.0
  %vm109 = vcmp.ne.f32.partialorder %v93, 0.0
  %vm110 = vcmp.ne.f32.partialorder %v94, 0.0
  %vm111 = vcmp.ne.f32.partialorder %v95, 0.0
  %v112 = vld [vmem:[%s2] sm:$0xf]
  %v113 = vld [vmem:[%s2 + $0x4] sm:$0xf]
  %v114 = vld [vmem:[%s2 + $0x8] sm:$0xf]
  %v115 = vld [vmem:[%s2 + $0xc] sm:$0xf]
  %v116 = vlaneseq
  %v117 = vshrl.u32 %v116, 7
  %v118 = vsub.s32 0, %v117
  %v119 = vrot.slane %v74, %v118
  %v124 = vunpack.c.l.b16 %v112
  %v125 = vunpack.c.l.b16 %v113
  %v126 = vunpack.c.l.b16 %v114
  %v127 = vunpack.c.l.b16 %v115
  %v128 = vpack.c.b16 %v125, %v124
  %v129 = vpack.c.b16 %v127, %v126
  %v139 = vunpack.c.l.b16 %v24
  %v140 = vunpack.c.l.b16 %v25
  %v141 = vunpack.c.l.b16 %v26
  %v142 = vunpack.c.l.b16 %v27
  %v143 = vunpack.c.l.b16 %v28
  %v144 = vunpack.c.l.b16 %v29
  %v145 = vunpack.c.l.b16 %v30
  %v146 = vunpack.c.l.b16 %v31
  %v147 = vunpack.c.l.b16 %v32
  %v148 = vpack.c.b16 %v140, %v139
  %v149 = vpack.c.b16 %v142, %v141
  %v150 = vpack.c.b16 %v144, %v143
  %v151 = vpack.c.b16 %v146, %v145
  %v152 = vpack.c.b16 %v147, %v147
  %vm157 = vcmask 539648
  %v159 = vsel %vm157, %v128, 0
  %v162 = vsel %vm157, %v129, 0
  %vm164 = vcmask 1040384
  %v166 = vsel %vm164, %v152, 0
  %168 = vmatprep.subr.bf16.mxu0 0
  %169 = vmatpush1.bf16.msra.mxu0 %v148
  %170 = vmatprep.subr.bf16.mxu0 0
  %171 = vmatpush1.bf16.msra.mxu0 %v149
  %172 = vmatprep.subr.bf16.mxu0 0
  %173 = vmatpush1.bf16.msra.mxu0 %v150
  %174 = vmatprep.subr.bf16.mxu0 0
  %175 = vmatpush1.bf16.msra.mxu0 %v151
  %176 = vmatprep.subr.bf16.mxu0 0
  %177 = vmatpush1.bf16.msra.mxu0 %v166
  %178 = vmatprep.subr.bf16.mxu0 0
  %179 = vmatpush1.bf16.msra.mxu0 0
  %180 = vmatprep.subr.bf16.mxu0 0
  %181 = vmatpush1.bf16.msra.mxu0 0
  %182 = vmatprep.subr.bf16.mxu0 0
  %183 = vmatpush1.bf16.msra.mxu0 0
  %184 = vmatprep.subr.bf16.mxu0 0
  %185 = vmatpush1.bf16.msra.mxu0 0
  %186 = vmatprep.subr.bf16.mxu0 0
  %187 = vmatpush1.bf16.msra.mxu0 0
  %188 = vmatprep.subr.bf16.mxu0 0
  %189 = vmatpush1.bf16.msra.mxu0 0
  %190 = vmatprep.subr.bf16.mxu0 0
  %191 = vmatpush1.bf16.msra.mxu0 0
  %192 = vmatprep.subr.bf16.mxu0 0
  %193 = vmatpush1.bf16.msra.mxu0 0
  %194 = vmatprep.subr.bf16.mxu0 0
  %195 = vmatpush1.bf16.msra.mxu0 0
  %196 = vmatprep.subr.bf16.mxu0 0
  %197 = vmatpush1.bf16.msra.mxu0 0
  %198 = vmatprep.subr.bf16.mxu0 0
  %199 = vmatpush1.bf16.msra.mxu0 0
  %200 = vmatprep.mubr.bf16.mxu0 0
  %201 = vmatmul.mubr.bf16.gmra.mrb[0].mxu0 %v159
  %v202 = vpop.f32.mrb[0].mxu0
  %v203 = vadd.f32 %v119, %v202
  %v204 = vpop.f32.mrb[0].mxu0
  %v205 = vpop.f32.mrb[0].mxu0
  %v206 = vadd.f32 %v119, %v205
  %v207 = vpop.f32.mrb[0].mxu0
  %208 = vmatprep.mubr.bf16.mxu0 0
  %209 = vmatmul.mubr.bf16.gmra.mrb[0].mxu0 %v162
  %v210 = vpop.f32.mrb[0].mxu0
  %v211 = vadd.f32 %v119, %v210
  %v212 = vpop.f32.mrb[0].mxu0
  %v213 = vpop.f32.mrb[0].mxu0
  %v214 = vadd.f32 %v119, %v213
  %v215 = vpop.f32.mrb[0].mxu0
  %216 = vdwg.mxu0
  %v217 = vld [vmem:[%s5] sm:$0x3]
  %s218 = scalar_lea.vmem %s5, 2
  %v219 = vld [vmem:[%s218] sm:$0x3]
  %v220 = vpack.c.bf16 %v217, %v217
  %v225 = vunpack.c.l.b16 %v33
  %v226 = vunpack.c.l.b16 %v34
  %v227 = vunpack.c.l.b16 %v35
  %v228 = vunpack.c.l.b16 %v36
  %v229 = vpack.c.b16 %v226, %v225
  %v230 = vpack.c.b16 %v228, %v227
  %vm233 = vcmask 261120
  %v235 = vsel %vm233, %v220, 0
  %237 = vmatprep.subr.bf16.mxu0 0
  %238 = vmatpush1.bf16.msra.mxu0 %v229
  %239 = vmatprep.subr.bf16.mxu0 0
  %240 = vmatpush1.bf16.msra.mxu0 %v230
  %241 = vmatprep.subr.bf16.mxu0 0
  %242 = vmatpush1.bf16.msra.mxu0 0
  %243 = vmatprep.subr.bf16.mxu0 0
  %244 = vmatpush1.bf16.msra.mxu0 0
  %245 = vmatprep.subr.bf16.mxu0 0
  %246 = vmatpush1.bf16.msra.mxu0 0
  %247 = vmatprep.subr.bf16.mxu0 0
  %248 = vmatpush1.bf16.msra.mxu0 0
  %249 = vmatprep.subr.bf16.mxu0 0
  %250 = vmatpush1.bf16.msra.mxu0 0
  %251 = vmatprep.subr.bf16.mxu0 0
  %252 = vmatpush1.bf16.msra.mxu0 0
  %253 = vmatprep.subr.bf16.mxu0 0
  %254 = vmatpush1.bf16.msra.mxu0 0
  %255 = vmatprep.subr.bf16.mxu0 0
  %256 = vmatpush1.bf16.msra.mxu0 0
  %257 = vmatprep.subr.bf16.mxu0 0
  %258 = vmatpush1.bf16.msra.mxu0 0
  %259 = vmatprep.subr.bf16.mxu0 0
  %260 = vmatpush1.bf16.msra.mxu0 0
  %261 = vmatprep.subr.bf16.mxu0 0
  %262 = vmatpush1.bf16.msra.mxu0 0
  %263 = vmatprep.subr.bf16.mxu0 0
  %264 = vmatpush1.bf16.msra.mxu0 0
  %265 = vmatprep.subr.bf16.mxu0 0
  %266 = vmatpush1.bf16.msra.mxu0 0
  %267 = vmatprep.subr.bf16.mxu0 0
  %268 = vmatpush1.bf16.msra.mxu0 0
  %269 = vmatprep.mubr.bf16.mxu0 0
  %270 = vmatmul.mubr.bf16.gmra.mrb[0].mxu0 %v235
  %v271 = vpop.f32.mrb[0].mxu0
  %v272 = vadd.f32 0.0, %v271
  %v273 = vpop.f32.mrb[0].mxu0
  %v274 = vpop.f32.mrb[0].mxu0
  %v275 = vpop.f32.mrb[0].mxu0
  %276 = vdwg.mxu0
  %v277 = vadd.f32 %v203, %v272
  %v278 = vxor.u32 %v277, 2147483648
  %v279 = vmul.f32 %v278, 1.442695
  %v280 = vpow.pop %v279
  %v281 = vadd.f32 %v280, 1.0
  %v282 = vrcp.pop %v281
  %v283 = vmul.f32 1.0, %v282
  %v284 = vtanh.pop %v277
  %286 = vrot.lane.b32.xlu0 %v219, 32
  %v287 = vpop.permute.xlu0 %286
  %v289 = vmul.f32 %v283, %v287
  %291 = vrot.lane.b32.xlu0 %v284, 64
  %v292 = vpop.permute.xlu0 %291
  %v294 = vmul.f32 %v283, %v292
  %296 = vrot.lane.b32.xlu0 %v294, 32
  %v297 = vpop.permute.xlu0 %296
  %v299 = vadd.f32 %v289, %v297
  %v300 = vtanh.pop %v299
  %302 = vrot.lane.b32.xlu0 %v300, 64
  %v303 = vpop.permute.xlu0 %302
  %v305 = vmul.f32 %v283, %v303
  %307 = vrot.lane.b32.xlu0 %v305, 32
  %v308 = vpop.permute.xlu0 %307
  %v310 = vsel %vm96, %v308, %v217
  %312 = vrot.lane.b32.xlu0 %v299, 96
  %v313 = vpop.permute.xlu0 %312
  %v315 = vsel %vm96, %v313, %v219
  %v316 = vsel %vm96, %v308, 0.0
  %v317 = vpack.c.bf16 %v310, %v310
  %v319 = vsel %vm233, %v317, 0
  %321 = vmatprep.subr.bf16.mxu0 0
  %322 = vmatpush1.bf16.msra.mxu0 %v229
  %323 = vmatprep.subr.bf16.mxu0 0
  %324 = vmatpush1.bf16.msra.mxu0 %v230
  %325 = vmatprep.subr.bf16.mxu0 0
  %326 = vmatpush1.bf16.msra.mxu0 0
  %327 = vmatprep.subr.bf16.mxu0 0
  %328 = vmatpush1.bf16.msra.mxu0 0
  %329 = vmatprep.subr.bf16.mxu0 0
  %330 = vmatpush1.bf16.msra.mxu0 0
  %331 = vmatprep.subr.bf16.mxu0 0
  %332 = vmatpush1.bf16.msra.mxu0 0
  %333 = vmatprep.subr.bf16.mxu0 0
  %334 = vmatpush1.bf16.msra.mxu0 0
  %335 = vmatprep.subr.bf16.mxu0 0
  %336 = vmatpush1.bf16.msra.mxu0 0
  %337 = vmatprep.subr.bf16.mxu0 0
  %338 = vmatpush1.bf16.msra.mxu0 0
  %339 = vmatprep.subr.bf16.mxu0 0
  %340 = vmatpush1.bf16.msra.mxu0 0
  %341 = vmatprep.subr.bf16.mxu0 0
  %342 = vmatpush1.bf16.msra.mxu0 0
  %343 = vmatprep.subr.bf16.mxu0 0
  %344 = vmatpush1.bf16.msra.mxu0 0
  %345 = vmatprep.subr.bf16.mxu0 0
  %346 = vmatpush1.bf16.msra.mxu0 0
  %347 = vmatprep.subr.bf16.mxu0 0
  %348 = vmatpush1.bf16.msra.mxu0 0
  %349 = vmatprep.subr.bf16.mxu0 0
  %350 = vmatpush1.bf16.msra.mxu0 0
  %351 = vmatprep.subr.bf16.mxu0 0
  %352 = vmatpush1.bf16.msra.mxu0 0
  %353 = vmatprep.mubr.bf16.mxu0 0
  %354 = vmatmul.mubr.bf16.gmra.mrb[0].mxu0 %v319
  %v355 = vpop.f32.mrb[0].mxu0
  %v356 = vadd.f32 0.0, %v355
  %v357 = vpop.f32.mrb[0].mxu0
  %v358 = vpop.f32.mrb[0].mxu0
  %v359 = vpop.f32.mrb[0].mxu0
  %360 = vdwg.mxu0
  %v362 = vrot.slane %v356, 6
  %v364 = vadd.f32 %v203, %v362
  %v365 = vxor.u32 %v364, 2147483648
  %v366 = vmul.f32 %v365, 1.442695
  %v367 = vpow.pop %v366
  %v368 = vadd.f32 %v367, 1.0
  %v369 = vrcp.pop %v368
  %v370 = vmul.f32 1.0, %v369
  %v371 = vtanh.pop %v364
  %v373 = vrot.slane %v315, 6
  %374 = vrot.lane.b32.xlu0 %v373, 32
  %v375 = vpop.permute.xlu0 %374
  %v377 = vmul.f32 %v370, %v375
  %379 = vrot.lane.b32.xlu0 %v371, 64
  %v380 = vpop.permute.xlu0 %379
  %v382 = vmul.f32 %v370, %v380
  %384 = vrot.lane.b32.xlu0 %v382, 32
  %v385 = vpop.permute.xlu0 %384
  %v387 = vadd.f32 %v377, %v385
  %v388 = vtanh.pop %v387
  %390 = vrot.lane.b32.xlu0 %v388, 64
  %v391 = vpop.permute.xlu0 %390
  %v393 = vmul.f32 %v370, %v391
  %v395 = vrot.slane %v393, 2
  %396 = vrot.lane.b32.xlu0 %v395, 32
  %v397 = vpop.permute.xlu0 %396
  %v399 = vsel %vm97, %v397, %v310
  %v401 = vrot.slane %v387, 2
  %402 = vrot.lane.b32.xlu0 %v401, 96
  %v403 = vpop.permute.xlu0 %402
  %v405 = vsel %vm97, %v403, %v315
  %v406 = vsel %vm97, %v397, 0.0
  %v407 = vpack.c.bf16 %v399, %v399
  %v409 = vsel %vm233, %v407, 0
  %411 = vmatprep.subr.bf16.mxu0 0
  %412 = vmatpush1.bf16.msra.mxu0 %v229
  %413 = vmatprep.subr.bf16.mxu0 0
  %414 = vmatpush1.bf16.msra.mxu0 %v230
  %415 = vmatprep.subr.bf16.mxu0 0
  %416 = vmatpush1.bf16.msra.mxu0 0
  %417 = vmatprep.subr.bf16.mxu0 0
  %418 = vmatpush1.bf16.msra.mxu0 0
  %419 = vmatprep.subr.bf16.mxu0 0
  %420 = vmatpush1.bf16.msra.mxu0 0
  %421 = vmatprep.subr.bf16.mxu0 0
  %422 = vmatpush1.bf16.msra.mxu0 0
  %423 = vmatprep.subr.bf16.mxu0 0
  %424 = vmatpush1.bf16.msra.mxu0 0
  %425 = vmatprep.subr.bf16.mxu0 0
  %426 = vmatpush1.bf16.msra.mxu0 0
  %427 = vmatprep.subr.bf16.mxu0 0
  %428 = vmatpush1.bf16.msra.mxu0 0
  %429 = vmatprep.subr.bf16.mxu0 0
  %430 = vmatpush1.bf16.msra.mxu0 0
  %431 = vmatprep.subr.bf16.mxu0 0
  %432 = vmatpush1.bf16.msra.mxu0 0
  %433 = vmatprep.subr.bf16.mxu0 0
  %434 = vmatpush1.bf16.msra.mxu0 0
  %435 = vmatprep.subr.bf16.mxu0 0
  %436 = vmatpush1.bf16.msra.mxu0 0
  %437 = vmatprep.subr.bf16.mxu0 0
  %438 = vmatpush1.bf16.msra.mxu0 0
  %439 = vmatprep.subr.bf16.mxu0 0
  %440 = vmatpush1.bf16.msra.mxu0 0
  %441 = vmatprep.subr.bf16.mxu0 0
  %442 = vmatpush1.bf16.msra.mxu0 0
  %443 = vmatprep.mubr.bf16.mxu0 0
  %444 = vmatmul.mubr.bf16.gmra.mrb[0].mxu0 %v409
  %v445 = vpop.f32.mrb[0].mxu0
  %v446 = vadd.f32 0.0, %v445
  %v447 = vpop.f32.mrb[0].mxu0
  %v448 = vpop.f32.mrb[0].mxu0
  %v449 = vpop.f32.mrb[0].mxu0
  %450 = vdwg.mxu0
  %v452 = vrot.slane %v446, 4
  %v454 = vadd.f32 %v203, %v452
  %v455 = vxor.u32 %v454, 2147483648
  %v456 = vmul.f32 %v455, 1.442695
  %v457 = vpow.pop %v456
  %v458 = vadd.f32 %v457, 1.0
  %v459 = vrcp.pop %v458
  %v460 = vmul.f32 1.0, %v459
  %v461 = vtanh.pop %v454
  %v463 = vrot.slane %v405, 4
  %464 = vrot.lane.b32.xlu0 %v463, 32
  %v465 = vpop.permute.xlu0 %464
  %v467 = vmul.f32 %v460, %v465
  %469 = vrot.lane.b32.xlu0 %v461, 64
  %v470 = vpop.permute.xlu0 %469
  %v472 = vmul.f32 %v460, %v470
  %474 = vrot.lane.b32.xlu0 %v472, 32
  %v475 = vpop.permute.xlu0 %474
  %v477 = vadd.f32 %v467, %v475
  %v478 = vtanh.pop %v477
  %480 = vrot.lane.b32.xlu0 %v478, 64
  %v481 = vpop.permute.xlu0 %480
  %v483 = vmul.f32 %v460, %v481
  %v485 = vrot.slane %v483, 4
  %486 = vrot.lane.b32.xlu0 %v485, 32
  %v487 = vpop.permute.xlu0 %486
  %v489 = vsel %vm98, %v487, %v399
  %v491 = vrot.slane %v477, 4
  %492 = vrot.lane.b32.xlu0 %v491, 96
  %v493 = vpop.permute.xlu0 %492
  %v495 = vsel %vm98, %v493, %v405
  %v496 = vsel %vm98, %v487, 0.0
  %v497 = vpack.c.bf16 %v489, %v489
  %v499 = vsel %vm233, %v497, 0
  %501 = vmatprep.subr.bf16.mxu0 0
  %502 = vmatpush1.bf16.msra.mxu0 %v229
  %503 = vmatprep.subr.bf16.mxu0 0
  %504 = vmatpush1.bf16.msra.mxu0 %v230
  %505 = vmatprep.subr.bf16.mxu0 0
  %506 = vmatpush1.bf16.msra.mxu0 0
  %507 = vmatprep.subr.bf16.mxu0 0
  %508 = vmatpush1.bf16.msra.mxu0 0
  %509 = vmatprep.subr.bf16.mxu0 0
  %510 = vmatpush1.bf16.msra.mxu0 0
  %511 = vmatprep.subr.bf16.mxu0 0
  %512 = vmatpush1.bf16.msra.mxu0 0
  %513 = vmatprep.subr.bf16.mxu0 0
  %514 = vmatpush1.bf16.msra.mxu0 0
  %515 = vmatprep.subr.bf16.mxu0 0
  %516 = vmatpush1.bf16.msra.mxu0 0
  %517 = vmatprep.subr.bf16.mxu0 0
  %518 = vmatpush1.bf16.msra.mxu0 0
  %519 = vmatprep.subr.bf16.mxu0 0
  %520 = vmatpush1.bf16.msra.mxu0 0
  %521 = vmatprep.subr.bf16.mxu0 0
  %522 = vmatpush1.bf16.msra.mxu0 0
  %523 = vmatprep.subr.bf16.mxu0 0
  %524 = vmatpush1.bf16.msra.mxu0 0
  %525 = vmatprep.subr.bf16.mxu0 0
  %526 = vmatpush1.bf16.msra.mxu0 0
  %527 = vmatprep.subr.bf16.mxu0 0
  %528 = vmatpush1.bf16.msra.mxu0 0
  %529 = vmatprep.subr.bf16.mxu0 0
  %530 = vmatpush1.bf16.msra.mxu0 0
  %531 = vmatprep.subr.bf16.mxu0 0
  %532 = vmatpush1.bf16.msra.mxu0 0
  %533 = vmatprep.mubr.bf16.mxu0 0
  %534 = vmatmul.mubr.bf16.gmra.mrb[0].mxu0 %v499
  %v535 = vpop.f32.mrb[0].mxu0
  %v536 = vadd.f32 0.0, %v535
  %v537 = vpop.f32.mrb[0].mxu0
  %v538 = vpop.f32.mrb[0].mxu0
  %v539 = vpop.f32.mrb[0].mxu0
  %540 = vdwg.mxu0
  %v542 = vrot.slane %v536, 2
  %v544 = vadd.f32 %v203, %v542
  %v545 = vxor.u32 %v544, 2147483648
  %v546 = vmul.f32 %v545, 1.442695
  %v547 = vpow.pop %v546
  %v548 = vadd.f32 %v547, 1.0
  %v549 = vrcp.pop %v548
  %v550 = vmul.f32 1.0, %v549
  %v551 = vtanh.pop %v544
  %v553 = vrot.slane %v495, 2
  %554 = vrot.lane.b32.xlu0 %v553, 32
  %v555 = vpop.permute.xlu0 %554
  %v557 = vmul.f32 %v550, %v555
  %559 = vrot.lane.b32.xlu0 %v551, 64
  %v560 = vpop.permute.xlu0 %559
  %v562 = vmul.f32 %v550, %v560
  %564 = vrot.lane.b32.xlu0 %v562, 32
  %v565 = vpop.permute.xlu0 %564
  %v567 = vadd.f32 %v557, %v565
  %v568 = vtanh.pop %v567
  %570 = vrot.lane.b32.xlu0 %v568, 64
  %v571 = vpop.permute.xlu0 %570
  %v573 = vmul.f32 %v550, %v571
  %v575 = vrot.slane %v573, 6
  %576 = vrot.lane.b32.xlu0 %v575, 32
  %v577 = vpop.permute.xlu0 %576
  %v579 = vsel %vm99, %v577, %v489
  %v581 = vrot.slane %v567, 6
  %582 = vrot.lane.b32.xlu0 %v581, 96
  %v583 = vpop.permute.xlu0 %582
  %v585 = vsel %vm99, %v583, %v495
  %v586 = vsel %vm99, %v577, 0.0
  %v587 = vpack.c.bf16 %v579, %v579
  %v589 = vsel %vm233, %v587, 0
  %591 = vmatprep.subr.bf16.mxu0 0
  %592 = vmatpush1.bf16.msra.mxu0 %v229
  %593 = vmatprep.subr.bf16.mxu0 0
  %594 = vmatpush1.bf16.msra.mxu0 %v230
  %595 = vmatprep.subr.bf16.mxu0 0
  %596 = vmatpush1.bf16.msra.mxu0 0
  %597 = vmatprep.subr.bf16.mxu0 0
  %598 = vmatpush1.bf16.msra.mxu0 0
  %599 = vmatprep.subr.bf16.mxu0 0
  %600 = vmatpush1.bf16.msra.mxu0 0
  %601 = vmatprep.subr.bf16.mxu0 0
  %602 = vmatpush1.bf16.msra.mxu0 0
  %603 = vmatprep.subr.bf16.mxu0 0
  %604 = vmatpush1.bf16.msra.mxu0 0
  %605 = vmatprep.subr.bf16.mxu0 0
  %606 = vmatpush1.bf16.msra.mxu0 0
  %607 = vmatprep.subr.bf16.mxu0 0
  %608 = vmatpush1.bf16.msra.mxu0 0
  %609 = vmatprep.subr.bf16.mxu0 0
  %610 = vmatpush1.bf16.msra.mxu0 0
  %611 = vmatprep.subr.bf16.mxu0 0
  %612 = vmatpush1.bf16.msra.mxu0 0
  %613 = vmatprep.subr.bf16.mxu0 0
  %614 = vmatpush1.bf16.msra.mxu0 0
  %615 = vmatprep.subr.bf16.mxu0 0
  %616 = vmatpush1.bf16.msra.mxu0 0
  %617 = vmatprep.subr.bf16.mxu0 0
  %618 = vmatpush1.bf16.msra.mxu0 0
  %619 = vmatprep.subr.bf16.mxu0 0
  %620 = vmatpush1.bf16.msra.mxu0 0
  %621 = vmatprep.subr.bf16.mxu0 0
  %622 = vmatpush1.bf16.msra.mxu0 0
  %623 = vmatprep.mubr.bf16.mxu0 0
  %624 = vmatmul.mubr.bf16.gmra.mrb[0].mxu0 %v589
  %v625 = vpop.f32.mrb[0].mxu0
  %v626 = vadd.f32 0.0, %v625
  %v627 = vpop.f32.mrb[0].mxu0
  %v628 = vpop.f32.mrb[0].mxu0
  %v629 = vpop.f32.mrb[0].mxu0
  %630 = vdwg.mxu0
  %v631 = vadd.f32 %v206, %v626
  %v632 = vxor.u32 %v631, 2147483648
  %v633 = vmul.f32 %v632, 1.442695
  %v634 = vpow.pop %v633
  %v635 = vadd.f32 %v634, 1.0
  %v636 = vrcp.pop %v635
  %v637 = vmul.f32 1.0, %v636
  %v638 = vtanh.pop %v631
  %640 = vrot.lane.b32.xlu0 %v585, 32
  %v641 = vpop.permute.xlu0 %640
  %v643 = vmul.f32 %v637, %v641
  %645 = vrot.lane.b32.xlu0 %v638, 64
  %v646 = vpop.permute.xlu0 %645
  %v648 = vmul.f32 %v637, %v646
  %650 = vrot.lane.b32.xlu0 %v648, 32
  %v651 = vpop.permute.xlu0 %650
  %v653 = vadd.f32 %v643, %v651
  %v654 = vtanh.pop %v653
  %656 = vrot.lane.b32.xlu0 %v654, 64
  %v657 = vpop.permute.xlu0 %656
  %v659 = vmul.f32 %v637, %v657
  %661 = vrot.lane.b32.xlu0 %v659, 32
  %v662 = vpop.permute.xlu0 %661
  %v664 = vsel %vm100, %v662, %v579
  %666 = vrot.lane.b32.xlu0 %v653, 96
  %v667 = vpop.permute.xlu0 %666
  %v669 = vsel %vm100, %v667, %v585
  %v670 = vsel %vm100, %v662, 0.0
  %v671 = vpack.c.bf16 %v664, %v664
  %v673 = vsel %vm233, %v671, 0
  %675 = vmatprep.subr.bf16.mxu0 0
  %676 = vmatpush1.bf16.msra.mxu0 %v229
  %677 = vmatprep.subr.bf16.mxu0 0
  %678 = vmatpush1.bf16.msra.mxu0 %v230
  %679 = vmatprep.subr.bf16.mxu0 0
  %680 = vmatpush1.bf16.msra.mxu0 0
  %681 = vmatprep.subr.bf16.mxu0 0
  %682 = vmatpush1.bf16.msra.mxu0 0
  %683 = vmatprep.subr.bf16.mxu0 0
  %684 = vmatpush1.bf16.msra.mxu0 0
  %685 = vmatprep.subr.bf16.mxu0 0
  %686 = vmatpush1.bf16.msra.mxu0 0
  %687 = vmatprep.subr.bf16.mxu0 0
  %688 = vmatpush1.bf16.msra.mxu0 0
  %689 = vmatprep.subr.bf16.mxu0 0
  %690 = vmatpush1.bf16.msra.mxu0 0
  %691 = vmatprep.subr.bf16.mxu0 0
  %692 = vmatpush1.bf16.msra.mxu0 0
  %693 = vmatprep.subr.bf16.mxu0 0
  %694 = vmatpush1.bf16.msra.mxu0 0
  %695 = vmatprep.subr.bf16.mxu0 0
  %696 = vmatpush1.bf16.msra.mxu0 0
  %697 = vmatprep.subr.bf16.mxu0 0
  %698 = vmatpush1.bf16.msra.mxu0 0
  %699 = vmatprep.subr.bf16.mxu0 0
  %700 = vmatpush1.bf16.msra.mxu0 0
  %701 = vmatprep.subr.bf16.mxu0 0
  %702 = vmatpush1.bf16.msra.mxu0 0
  %703 = vmatprep.subr.bf16.mxu0 0
  %704 = vmatpush1.bf16.msra.mxu0 0
  %705 = vmatprep.subr.bf16.mxu0 0
  %706 = vmatpush1.bf16.msra.mxu0 0
  %707 = vmatprep.mubr.bf16.mxu0 0
  %708 = vmatmul.mubr.bf16.gmra.mrb[0].mxu0 %v673
  %v709 = vpop.f32.mrb[0].mxu0
  %v710 = vadd.f32 0.0, %v709
  %v711 = vpop.f32.mrb[0].mxu0
  %v712 = vpop.f32.mrb[0].mxu0
  %v713 = vpop.f32.mrb[0].mxu0
  %714 = vdwg.mxu0
  %v716 = vrot.slane %v710, 6
  %v718 = vadd.f32 %v206, %v716
  %v719 = vxor.u32 %v718, 2147483648
  %v720 = vmul.f32 %v719, 1.442695
  %v721 = vpow.pop %v720
  %v722 = vadd.f32 %v721, 1.0
  %v723 = vrcp.pop %v722
  %v724 = vmul.f32 1.0, %v723
  %v725 = vtanh.pop %v718
  %v727 = vrot.slane %v669, 6
  %728 = vrot.lane.b32.xlu0 %v727, 32
  %v729 = vpop.permute.xlu0 %728
  %v731 = vmul.f32 %v724, %v729
  %733 = vrot.lane.b32.xlu0 %v725, 64
  %v734 = vpop.permute.xlu0 %733
  %v736 = vmul.f32 %v724, %v734
  %738 = vrot.lane.b32.xlu0 %v736, 32
  %v739 = vpop.permute.xlu0 %738
  %v741 = vadd.f32 %v731, %v739
  %v742 = vtanh.pop %v741
  %744 = vrot.lane.b32.xlu0 %v742, 64
  %v745 = vpop.permute.xlu0 %744
  %v747 = vmul.f32 %v724, %v745
  %v749 = vrot.slane %v747, 2
  %750 = vrot.lane.b32.xlu0 %v749, 32
  %v751 = vpop.permute.xlu0 %750
  %v753 = vsel %vm101, %v751, %v664
  %v755 = vrot.slane %v741, 2
  %756 = vrot.lane.b32.xlu0 %v755, 96
  %v757 = vpop.permute.xlu0 %756
  %v759 = vsel %vm101, %v757, %v669
  %v760 = vsel %vm101, %v751, 0.0
  %v761 = vpack.c.bf16 %v753, %v753
  %v763 = vsel %vm233, %v761, 0
  %765 = vmatprep.subr.bf16.mxu0 0
  %766 = vmatpush1.bf16.msra.mxu0 %v229
  %767 = vmatprep.subr.bf16.mxu0 0
  %768 = vmatpush1.bf16.msra.mxu0 %v230
  %769 = vmatprep.subr.bf16.mxu0 0
  %770 = vmatpush1.bf16.msra.mxu0 0
  %771 = vmatprep.subr.bf16.mxu0 0
  %772 = vmatpush1.bf16.msra.mxu0 0
  %773 = vmatprep.subr.bf16.mxu0 0
  %774 = vmatpush1.bf16.msra.mxu0 0
  %775 = vmatprep.subr.bf16.mxu0 0
  %776 = vmatpush1.bf16.msra.mxu0 0
  %777 = vmatprep.subr.bf16.mxu0 0
  %778 = vmatpush1.bf16.msra.mxu0 0
  %779 = vmatprep.subr.bf16.mxu0 0
  %780 = vmatpush1.bf16.msra.mxu0 0
  %781 = vmatprep.subr.bf16.mxu0 0
  %782 = vmatpush1.bf16.msra.mxu0 0
  %783 = vmatprep.subr.bf16.mxu0 0
  %784 = vmatpush1.bf16.msra.mxu0 0
  %785 = vmatprep.subr.bf16.mxu0 0
  %786 = vmatpush1.bf16.msra.mxu0 0
  %787 = vmatprep.subr.bf16.mxu0 0
  %788 = vmatpush1.bf16.msra.mxu0 0
  %789 = vmatprep.subr.bf16.mxu0 0
  %790 = vmatpush1.bf16.msra.mxu0 0
  %791 = vmatprep.subr.bf16.mxu0 0
  %792 = vmatpush1.bf16.msra.mxu0 0
  %793 = vmatprep.subr.bf16.mxu0 0
  %794 = vmatpush1.bf16.msra.mxu0 0
  %795 = vmatprep.subr.bf16.mxu0 0
  %796 = vmatpush1.bf16.msra.mxu0 0
  %797 = vmatprep.mubr.bf16.mxu0 0
  %798 = vmatmul.mubr.bf16.gmra.mrb[0].mxu0 %v763
  %v799 = vpop.f32.mrb[0].mxu0
  %v800 = vadd.f32 0.0, %v799
  %v801 = vpop.f32.mrb[0].mxu0
  %v802 = vpop.f32.mrb[0].mxu0
  %v803 = vpop.f32.mrb[0].mxu0
  %804 = vdwg.mxu0
  %v806 = vrot.slane %v800, 4
  %v808 = vadd.f32 %v206, %v806
  %v809 = vxor.u32 %v808, 2147483648
  %v810 = vmul.f32 %v809, 1.442695
  %v811 = vpow.pop %v810
  %v812 = vadd.f32 %v811, 1.0
  %v813 = vrcp.pop %v812
  %v814 = vmul.f32 1.0, %v813
  %v815 = vtanh.pop %v808
  %v817 = vrot.slane %v759, 4
  %818 = vrot.lane.b32.xlu0 %v817, 32
  %v819 = vpop.permute.xlu0 %818
  %v821 = vmul.f32 %v814, %v819
  %823 = vrot.lane.b32.xlu0 %v815, 64
  %v824 = vpop.permute.xlu0 %823
  %v826 = vmul.f32 %v814, %v824
  %828 = vrot.lane.b32.xlu0 %v826, 32
  %v829 = vpop.permute.xlu0 %828
  %v831 = vadd.f32 %v821, %v829
  %v832 = vtanh.pop %v831
  %834 = vrot.lane.b32.xlu0 %v832, 64
  %v835 = vpop.permute.xlu0 %834
  %v837 = vmul.f32 %v814, %v835
  %v839 = vrot.slane %v837, 4
  %840 = vrot.lane.b32.xlu0 %v839, 32
  %v841 = vpop.permute.xlu0 %840
  %v843 = vsel %vm102, %v841, %v753
  %v845 = vrot.slane %v831, 4
  %846 = vrot.lane.b32.xlu0 %v845, 96
  %v847 = vpop.permute.xlu0 %846
  %v849 = vsel %vm102, %v847, %v759
  %v850 = vsel %vm102, %v841, 0.0
  %v851 = vpack.c.bf16 %v843, %v843
  %v853 = vsel %vm233, %v851, 0
  %855 = vmatprep.subr.bf16.mxu0 0
  %856 = vmatpush1.bf16.msra.mxu0 %v229
  %857 = vmatprep.subr.bf16.mxu0 0
  %858 = vmatpush1.bf16.msra.mxu0 %v230
  %859 = vmatprep.subr.bf16.mxu0 0
  %860 = vmatpush1.bf16.msra.mxu0 0
  %861 = vmatprep.subr.bf16.mxu0 0
  %862 = vmatpush1.bf16.msra.mxu0 0
  %863 = vmatprep.subr.bf16.mxu0 0
  %864 = vmatpush1.bf16.msra.mxu0 0
  %865 = vmatprep.subr.bf16.mxu0 0
  %866 = vmatpush1.bf16.msra.mxu0 0
  %867 = vmatprep.subr.bf16.mxu0 0
  %868 = vmatpush1.bf16.msra.mxu0 0
  %869 = vmatprep.subr.bf16.mxu0 0
  %870 = vmatpush1.bf16.msra.mxu0 0
  %871 = vmatprep.subr.bf16.mxu0 0
  %872 = vmatpush1.bf16.msra.mxu0 0
  %873 = vmatprep.subr.bf16.mxu0 0
  %874 = vmatpush1.bf16.msra.mxu0 0
  %875 = vmatprep.subr.bf16.mxu0 0
  %876 = vmatpush1.bf16.msra.mxu0 0
  %877 = vmatprep.subr.bf16.mxu0 0
  %878 = vmatpush1.bf16.msra.mxu0 0
  %879 = vmatprep.subr.bf16.mxu0 0
  %880 = vmatpush1.bf16.msra.mxu0 0
  %881 = vmatprep.subr.bf16.mxu0 0
  %882 = vmatpush1.bf16.msra.mxu0 0
  %883 = vmatprep.subr.bf16.mxu0 0
  %884 = vmatpush1.bf16.msra.mxu0 0
  %885 = vmatprep.subr.bf16.mxu0 0
  %886 = vmatpush1.bf16.msra.mxu0 0
  %887 = vmatprep.mubr.bf16.mxu0 0
  %888 = vmatmul.mubr.bf16.gmra.mrb[0].mxu0 %v853
  %v889 = vpop.f32.mrb[0].mxu0
  %v890 = vadd.f32 0.0, %v889
  %v891 = vpop.f32.mrb[0].mxu0
  %v892 = vpop.f32.mrb[0].mxu0
  %v893 = vpop.f32.mrb[0].mxu0
  %894 = vdwg.mxu0
  %v896 = vrot.slane %v890, 2
  %v898 = vadd.f32 %v206, %v896
  %v899 = vxor.u32 %v898, 2147483648
  %v900 = vmul.f32 %v899, 1.442695
  %v901 = vpow.pop %v900
  %v902 = vadd.f32 %v901, 1.0
  %v903 = vrcp.pop %v902
  %v904 = vmul.f32 1.0, %v903
  %v905 = vtanh.pop %v898
  %v907 = vrot.slane %v849, 2
  %908 = vrot.lane.b32.xlu0 %v907, 32
  %v909 = vpop.permute.xlu0 %908
  %v911 = vmul.f32 %v904, %v909
  %913 = vrot.lane.b32.xlu0 %v905, 64
  %v914 = vpop.permute.xlu0 %913
  %v916 = vmul.f32 %v904, %v914
  %918 = vrot.lane.b32.xlu0 %v916, 32
  %v919 = vpop.permute.xlu0 %918
  %v921 = vadd.f32 %v911, %v919
  %v922 = vtanh.pop %v921
  %924 = vrot.lane.b32.xlu0 %v922, 64
  %v925 = vpop.permute.xlu0 %924
  %v927 = vmul.f32 %v904, %v925
  %v929 = vrot.slane %v927, 6
  %930 = vrot.lane.b32.xlu0 %v929, 32
  %v931 = vpop.permute.xlu0 %930
  %v933 = vsel %vm103, %v931, %v843
  %v935 = vrot.slane %v921, 6
  %936 = vrot.lane.b32.xlu0 %v935, 96
  %v937 = vpop.permute.xlu0 %936
  %v939 = vsel %vm103, %v937, %v849
  %v940 = vsel %vm103, %v931, 0.0
  %v941 = vpack.c.bf16 %v933, %v933
  %v943 = vsel %vm233, %v941, 0
  %945 = vmatprep.subr.bf16.mxu0 0
  %946 = vmatpush1.bf16.msra.mxu0 %v229
  %947 = vmatprep.subr.bf16.mxu0 0
  %948 = vmatpush1.bf16.msra.mxu0 %v230
  %949 = vmatprep.subr.bf16.mxu0 0
  %950 = vmatpush1.bf16.msra.mxu0 0
  %951 = vmatprep.subr.bf16.mxu0 0
  %952 = vmatpush1.bf16.msra.mxu0 0
  %953 = vmatprep.subr.bf16.mxu0 0
  %954 = vmatpush1.bf16.msra.mxu0 0
  %955 = vmatprep.subr.bf16.mxu0 0
  %956 = vmatpush1.bf16.msra.mxu0 0
  %957 = vmatprep.subr.bf16.mxu0 0
  %958 = vmatpush1.bf16.msra.mxu0 0
  %959 = vmatprep.subr.bf16.mxu0 0
  %960 = vmatpush1.bf16.msra.mxu0 0
  %961 = vmatprep.subr.bf16.mxu0 0
  %962 = vmatpush1.bf16.msra.mxu0 0
  %963 = vmatprep.subr.bf16.mxu0 0
  %964 = vmatpush1.bf16.msra.mxu0 0
  %965 = vmatprep.subr.bf16.mxu0 0
  %966 = vmatpush1.bf16.msra.mxu0 0
  %967 = vmatprep.subr.bf16.mxu0 0
  %968 = vmatpush1.bf16.msra.mxu0 0
  %969 = vmatprep.subr.bf16.mxu0 0
  %970 = vmatpush1.bf16.msra.mxu0 0
  %971 = vmatprep.subr.bf16.mxu0 0
  %972 = vmatpush1.bf16.msra.mxu0 0
  %973 = vmatprep.subr.bf16.mxu0 0
  %974 = vmatpush1.bf16.msra.mxu0 0
  %975 = vmatprep.subr.bf16.mxu0 0
  %976 = vmatpush1.bf16.msra.mxu0 0
  %977 = vmatprep.mubr.bf16.mxu0 0
  %978 = vmatmul.mubr.bf16.gmra.mrb[0].mxu0 %v943
  %v979 = vpop.f32.mrb[0].mxu0
  %v980 = vadd.f32 0.0, %v979
  %v981 = vpop.f32.mrb[0].mxu0
  %v982 = vpop.f32.mrb[0].mxu0
  %v983 = vpop.f32.mrb[0].mxu0
  %984 = vdwg.mxu0
  %v985 = vadd.f32 %v211, %v980
  %v986 = vxor.u32 %v985, 2147483648
  %v987 = vmul.f32 %v986, 1.442695
  %v988 = vpow.pop %v987
  %v989 = vadd.f32 %v988, 1.0
  %v990 = vrcp.pop %v989
  %v991 = vmul.f32 1.0, %v990
  %v992 = vtanh.pop %v985
  %994 = vrot.lane.b32.xlu0 %v939, 32
  %v995 = vpop.permute.xlu0 %994
  %v997 = vmul.f32 %v991, %v995
  %999 = vrot.lane.b32.xlu0 %v992, 64
  %v1000 = vpop.permute.xlu0 %999
  %v1002 = vmul.f32 %v991, %v1000
  %1004 = vrot.lane.b32.xlu0 %v1002, 32
  %v1005 = vpop.permute.xlu0 %1004
  %v1007 = vadd.f32 %v997, %v1005
  %v1008 = vtanh.pop %v1007
  %1010 = vrot.lane.b32.xlu0 %v1008, 64
  %v1011 = vpop.permute.xlu0 %1010
  %v1013 = vmul.f32 %v991, %v1011
  %1015 = vrot.lane.b32.xlu0 %v1013, 32
  %v1016 = vpop.permute.xlu0 %1015
  %v1018 = vsel %vm104, %v1016, %v933
  %1020 = vrot.lane.b32.xlu0 %v1007, 96
  %v1021 = vpop.permute.xlu0 %1020
  %v1023 = vsel %vm104, %v1021, %v939
  %v1024 = vsel %vm104, %v1016, 0.0
  %v1025 = vpack.c.bf16 %v1018, %v1018
  %v1027 = vsel %vm233, %v1025, 0
  %1029 = vmatprep.subr.bf16.mxu0 0
  %1030 = vmatpush1.bf16.msra.mxu0 %v229
  %1031 = vmatprep.subr.bf16.mxu0 0
  %1032 = vmatpush1.bf16.msra.mxu0 %v230
  %1033 = vmatprep.subr.bf16.mxu0 0
  %1034 = vmatpush1.bf16.msra.mxu0 0
  %1035 = vmatprep.subr.bf16.mxu0 0
  %1036 = vmatpush1.bf16.msra.mxu0 0
  %1037 = vmatprep.subr.bf16.mxu0 0
  %1038 = vmatpush1.bf16.msra.mxu0 0
  %1039 = vmatprep.subr.bf16.mxu0 0
  %1040 = vmatpush1.bf16.msra.mxu0 0
  %1041 = vmatprep.subr.bf16.mxu0 0
  %1042 = vmatpush1.bf16.msra.mxu0 0
  %1043 = vmatprep.subr.bf16.mxu0 0
  %1044 = vmatpush1.bf16.msra.mxu0 0
  %1045 = vmatprep.subr.bf16.mxu0 0
  %1046 = vmatpush1.bf16.msra.mxu0 0
  %1047 = vmatprep.subr.bf16.mxu0 0
  %1048 = vmatpush1.bf16.msra.mxu0 0
  %1049 = vmatprep.subr.bf16.mxu0 0
  %1050 = vmatpush1.bf16.msra.mxu0 0
  %1051 = vmatprep.subr.bf16.mxu0 0
  %1052 = vmatpush1.bf16.msra.mxu0 0
  %1053 = vmatprep.subr.bf16.mxu0 0
  %1054 = vmatpush1.bf16.msra.mxu0 0
  %1055 = vmatprep.subr.bf16.mxu0 0
  %1056 = vmatpush1.bf16.msra.mxu0 0
  %1057 = vmatprep.subr.bf16.mxu0 0
  %1058 = vmatpush1.bf16.msra.mxu0 0
  %1059 = vmatprep.subr.bf16.mxu0 0
  %1060 = vmatpush1.bf16.msra.mxu0 0
  %1061 = vmatprep.mubr.bf16.mxu0 0
  %1062 = vmatmul.mubr.bf16.gmra.mrb[0].mxu0 %v1027
  %v1063 = vpop.f32.mrb[0].mxu0
  %v1064 = vadd.f32 0.0, %v1063
  %v1065 = vpop.f32.mrb[0].mxu0
  %v1066 = vpop.f32.mrb[0].mxu0
  %v1067 = vpop.f32.mrb[0].mxu0
  %1068 = vdwg.mxu0
  %v1070 = vrot.slane %v1064, 6
  %v1072 = vadd.f32 %v211, %v1070
  %v1073 = vxor.u32 %v1072, 2147483648
  %v1074 = vmul.f32 %v1073, 1.442695
  %v1075 = vpow.pop %v1074
  %v1076 = vadd.f32 %v1075, 1.0
  %v1077 = vrcp.pop %v1076
  %v1078 = vmul.f32 1.0, %v1077
  %v1079 = vtanh.pop %v1072
  %v1081 = vrot.slane %v1023, 6
  %1082 = vrot.lane.b32.xlu0 %v1081, 32
  %v1083 = vpop.permute.xlu0 %1082
  %v1085 = vmul.f32 %v1078, %v1083
  %1087 = vrot.lane.b32.xlu0 %v1079, 64
  %v1088 = vpop.permute.xlu0 %1087
  %v1090 = vmul.f32 %v1078, %v1088
  %1092 = vrot.lane.b32.xlu0 %v1090, 32
  %v1093 = vpop.permute.xlu0 %1092
  %v1095 = vadd.f32 %v1085, %v1093
  %v1096 = vtanh.pop %v1095
  %1098 = vrot.lane.b32.xlu0 %v1096, 64
  %v1099 = vpop.permute.xlu0 %1098
  %v1101 = vmul.f32 %v1078, %v1099
  %v1103 = vrot.slane %v1101, 2
  %1104 = vrot.lane.b32.xlu0 %v1103, 32
  %v1105 = vpop.permute.xlu0 %1104
  %v1107 = vsel %vm105, %v1105, %v1018
  %v1109 = vrot.slane %v1095, 2
  %1110 = vrot.lane.b32.xlu0 %v1109, 96
  %v1111 = vpop.permute.xlu0 %1110
  %v1113 = vsel %vm105, %v1111, %v1023
  %v1114 = vsel %vm105, %v1105, 0.0
  %v1115 = vpack.c.bf16 %v1107, %v1107
  %v1117 = vsel %vm233, %v1115, 0
  %1119 = vmatprep.subr.bf16.mxu0 0
  %1120 = vmatpush1.bf16.msra.mxu0 %v229
  %1121 = vmatprep.subr.bf16.mxu0 0
  %1122 = vmatpush1.bf16.msra.mxu0 %v230
  %1123 = vmatprep.subr.bf16.mxu0 0
  %1124 = vmatpush1.bf16.msra.mxu0 0
  %1125 = vmatprep.subr.bf16.mxu0 0
  %1126 = vmatpush1.bf16.msra.mxu0 0
  %1127 = vmatprep.subr.bf16.mxu0 0
  %1128 = vmatpush1.bf16.msra.mxu0 0
  %1129 = vmatprep.subr.bf16.mxu0 0
  %1130 = vmatpush1.bf16.msra.mxu0 0
  %1131 = vmatprep.subr.bf16.mxu0 0
  %1132 = vmatpush1.bf16.msra.mxu0 0
  %1133 = vmatprep.subr.bf16.mxu0 0
  %1134 = vmatpush1.bf16.msra.mxu0 0
  %1135 = vmatprep.subr.bf16.mxu0 0
  %1136 = vmatpush1.bf16.msra.mxu0 0
  %1137 = vmatprep.subr.bf16.mxu0 0
  %1138 = vmatpush1.bf16.msra.mxu0 0
  %1139 = vmatprep.subr.bf16.mxu0 0
  %1140 = vmatpush1.bf16.msra.mxu0 0
  %1141 = vmatprep.subr.bf16.mxu0 0
  %1142 = vmatpush1.bf16.msra.mxu0 0
  %1143 = vmatprep.subr.bf16.mxu0 0
  %1144 = vmatpush1.bf16.msra.mxu0 0
  %1145 = vmatprep.subr.bf16.mxu0 0
  %1146 = vmatpush1.bf16.msra.mxu0 0
  %1147 = vmatprep.subr.bf16.mxu0 0
  %1148 = vmatpush1.bf16.msra.mxu0 0
  %1149 = vmatprep.subr.bf16.mxu0 0
  %1150 = vmatpush1.bf16.msra.mxu0 0
  %1151 = vmatprep.mubr.bf16.mxu0 0
  %1152 = vmatmul.mubr.bf16.gmra.mrb[0].mxu0 %v1117
  %v1153 = vpop.f32.mrb[0].mxu0
  %v1154 = vadd.f32 0.0, %v1153
  %v1155 = vpop.f32.mrb[0].mxu0
  %v1156 = vpop.f32.mrb[0].mxu0
  %v1157 = vpop.f32.mrb[0].mxu0
  %1158 = vdwg.mxu0
  %v1160 = vrot.slane %v1154, 4
  %v1162 = vadd.f32 %v211, %v1160
  %v1163 = vxor.u32 %v1162, 2147483648
  %v1164 = vmul.f32 %v1163, 1.442695
  %v1165 = vpow.pop %v1164
  %v1166 = vadd.f32 %v1165, 1.0
  %v1167 = vrcp.pop %v1166
  %v1168 = vmul.f32 1.0, %v1167
  %v1169 = vtanh.pop %v1162
  %v1171 = vrot.slane %v1113, 4
  %1172 = vrot.lane.b32.xlu0 %v1171, 32
  %v1173 = vpop.permute.xlu0 %1172
  %v1175 = vmul.f32 %v1168, %v1173
  %1177 = vrot.lane.b32.xlu0 %v1169, 64
  %v1178 = vpop.permute.xlu0 %1177
  %v1180 = vmul.f32 %v1168, %v1178
  %1182 = vrot.lane.b32.xlu0 %v1180, 32
  %v1183 = vpop.permute.xlu0 %1182
  %v1185 = vadd.f32 %v1175, %v1183
  %v1186 = vtanh.pop %v1185
  %1188 = vrot.lane.b32.xlu0 %v1186, 64
  %v1189 = vpop.permute.xlu0 %1188
  %v1191 = vmul.f32 %v1168, %v1189
  %v1193 = vrot.slane %v1191, 4
  %1194 = vrot.lane.b32.xlu0 %v1193, 32
  %v1195 = vpop.permute.xlu0 %1194
  %v1197 = vsel %vm106, %v1195, %v1107
  %v1199 = vrot.slane %v1185, 4
  %1200 = vrot.lane.b32.xlu0 %v1199, 96
  %v1201 = vpop.permute.xlu0 %1200
  %v1203 = vsel %vm106, %v1201, %v1113
  %v1204 = vsel %vm106, %v1195, 0.0
  %v1205 = vpack.c.bf16 %v1197, %v1197
  %v1207 = vsel %vm233, %v1205, 0
  %1209 = vmatprep.subr.bf16.mxu0 0
  %1210 = vmatpush1.bf16.msra.mxu0 %v229
  %1211 = vmatprep.subr.bf16.mxu0 0
  %1212 = vmatpush1.bf16.msra.mxu0 %v230
  %1213 = vmatprep.subr.bf16.mxu0 0
  %1214 = vmatpush1.bf16.msra.mxu0 0
  %1215 = vmatprep.subr.bf16.mxu0 0
  %1216 = vmatpush1.bf16.msra.mxu0 0
  %1217 = vmatprep.subr.bf16.mxu0 0
  %1218 = vmatpush1.bf16.msra.mxu0 0
  %1219 = vmatprep.subr.bf16.mxu0 0
  %1220 = vmatpush1.bf16.msra.mxu0 0
  %1221 = vmatprep.subr.bf16.mxu0 0
  %1222 = vmatpush1.bf16.msra.mxu0 0
  %1223 = vmatprep.subr.bf16.mxu0 0
  %1224 = vmatpush1.bf16.msra.mxu0 0
  %1225 = vmatprep.subr.bf16.mxu0 0
  %1226 = vmatpush1.bf16.msra.mxu0 0
  %1227 = vmatprep.subr.bf16.mxu0 0
  %1228 = vmatpush1.bf16.msra.mxu0 0
  %1229 = vmatprep.subr.bf16.mxu0 0
  %1230 = vmatpush1.bf16.msra.mxu0 0
  %1231 = vmatprep.subr.bf16.mxu0 0
  %1232 = vmatpush1.bf16.msra.mxu0 0
  %1233 = vmatprep.subr.bf16.mxu0 0
  %1234 = vmatpush1.bf16.msra.mxu0 0
  %1235 = vmatprep.subr.bf16.mxu0 0
  %1236 = vmatpush1.bf16.msra.mxu0 0
  %1237 = vmatprep.subr.bf16.mxu0 0
  %1238 = vmatpush1.bf16.msra.mxu0 0
  %1239 = vmatprep.subr.bf16.mxu0 0
  %1240 = vmatpush1.bf16.msra.mxu0 0
  %1241 = vmatprep.mubr.bf16.mxu0 0
  %1242 = vmatmul.mubr.bf16.gmra.mrb[0].mxu0 %v1207
  %v1243 = vpop.f32.mrb[0].mxu0
  %v1244 = vadd.f32 0.0, %v1243
  %v1245 = vpop.f32.mrb[0].mxu0
  %v1246 = vpop.f32.mrb[0].mxu0
  %v1247 = vpop.f32.mrb[0].mxu0
  %1248 = vdwg.mxu0
  %v1250 = vrot.slane %v1244, 2
  %v1252 = vadd.f32 %v211, %v1250
  %v1253 = vxor.u32 %v1252, 2147483648
  %v1254 = vmul.f32 %v1253, 1.442695
  %v1255 = vpow.pop %v1254
  %v1256 = vadd.f32 %v1255, 1.0
  %v1257 = vrcp.pop %v1256
  %v1258 = vmul.f32 1.0, %v1257
  %v1259 = vtanh.pop %v1252
  %v1261 = vrot.slane %v1203, 2
  %1262 = vrot.lane.b32.xlu0 %v1261, 32
  %v1263 = vpop.permute.xlu0 %1262
  %v1265 = vmul.f32 %v1258, %v1263
  %1267 = vrot.lane.b32.xlu0 %v1259, 64
  %v1268 = vpop.permute.xlu0 %1267
  %v1270 = vmul.f32 %v1258, %v1268
  %1272 = vrot.lane.b32.xlu0 %v1270, 32
  %v1273 = vpop.permute.xlu0 %1272
  %v1275 = vadd.f32 %v1265, %v1273
  %v1276 = vtanh.pop %v1275
  %1278 = vrot.lane.b32.xlu0 %v1276, 64
  %v1279 = vpop.permute.xlu0 %1278
  %v1281 = vmul.f32 %v1258, %v1279
  %v1283 = vrot.slane %v1281, 6
  %1284 = vrot.lane.b32.xlu0 %v1283, 32
  %v1285 = vpop.permute.xlu0 %1284
  %v1287 = vsel %vm107, %v1285, %v1197
  %v1289 = vrot.slane %v1275, 6
  %1290 = vrot.lane.b32.xlu0 %v1289, 96
  %v1291 = vpop.permute.xlu0 %1290
  %v1293 = vsel %vm107, %v1291, %v1203
  %v1294 = vsel %vm107, %v1285, 0.0
  %v1295 = vpack.c.bf16 %v1287, %v1287
  %v1297 = vsel %vm233, %v1295, 0
  %1299 = vmatprep.subr.bf16.mxu0 0
  %1300 = vmatpush1.bf16.msra.mxu0 %v229
  %1301 = vmatprep.subr.bf16.mxu0 0
  %1302 = vmatpush1.bf16.msra.mxu0 %v230
  %1303 = vmatprep.subr.bf16.mxu0 0
  %1304 = vmatpush1.bf16.msra.mxu0 0
  %1305 = vmatprep.subr.bf16.mxu0 0
  %1306 = vmatpush1.bf16.msra.mxu0 0
  %1307 = vmatprep.subr.bf16.mxu0 0
  %1308 = vmatpush1.bf16.msra.mxu0 0
  %1309 = vmatprep.subr.bf16.mxu0 0
  %1310 = vmatpush1.bf16.msra.mxu0 0
  %1311 = vmatprep.subr.bf16.mxu0 0
  %1312 = vmatpush1.bf16.msra.mxu0 0
  %1313 = vmatprep.subr.bf16.mxu0 0
  %1314 = vmatpush1.bf16.msra.mxu0 0
  %1315 = vmatprep.subr.bf16.mxu0 0
  %1316 = vmatpush1.bf16.msra.mxu0 0
  %1317 = vmatprep.subr.bf16.mxu0 0
  %1318 = vmatpush1.bf16.msra.mxu0 0
  %1319 = vmatprep.subr.bf16.mxu0 0
  %1320 = vmatpush1.bf16.msra.mxu0 0
  %1321 = vmatprep.subr.bf16.mxu0 0
  %1322 = vmatpush1.bf16.msra.mxu0 0
  %1323 = vmatprep.subr.bf16.mxu0 0
  %1324 = vmatpush1.bf16.msra.mxu0 0
  %1325 = vmatprep.subr.bf16.mxu0 0
  %1326 = vmatpush1.bf16.msra.mxu0 0
  %1327 = vmatprep.subr.bf16.mxu0 0
  %1328 = vmatpush1.bf16.msra.mxu0 0
  %1329 = vmatprep.subr.bf16.mxu0 0
  %1330 = vmatpush1.bf16.msra.mxu0 0
  %1331 = vmatprep.mubr.bf16.mxu0 0
  %1332 = vmatmul.mubr.bf16.gmra.mrb[0].mxu0 %v1297
  %v1333 = vpop.f32.mrb[0].mxu0
  %v1334 = vadd.f32 0.0, %v1333
  %v1335 = vpop.f32.mrb[0].mxu0
  %v1336 = vpop.f32.mrb[0].mxu0
  %v1337 = vpop.f32.mrb[0].mxu0
  %1338 = vdwg.mxu0
  %v1339 = vadd.f32 %v214, %v1334
  %v1340 = vxor.u32 %v1339, 2147483648
  %v1341 = vmul.f32 %v1340, 1.442695
  %v1342 = vpow.pop %v1341
  %v1343 = vadd.f32 %v1342, 1.0
  %v1344 = vrcp.pop %v1343
  %v1345 = vmul.f32 1.0, %v1344
  %v1346 = vtanh.pop %v1339
  %1348 = vrot.lane.b32.xlu0 %v1293, 32
  %v1349 = vpop.permute.xlu0 %1348
  %v1351 = vmul.f32 %v1345, %v1349
  %1353 = vrot.lane.b32.xlu0 %v1346, 64
  %v1354 = vpop.permute.xlu0 %1353
  %v1356 = vmul.f32 %v1345, %v1354
  %1358 = vrot.lane.b32.xlu0 %v1356, 32
  %v1359 = vpop.permute.xlu0 %1358
  %v1361 = vadd.f32 %v1351, %v1359
  %v1362 = vtanh.pop %v1361
  %1364 = vrot.lane.b32.xlu0 %v1362, 64
  %v1365 = vpop.permute.xlu0 %1364
  %v1367 = vmul.f32 %v1345, %v1365
  %1369 = vrot.lane.b32.xlu0 %v1367, 32
  %v1370 = vpop.permute.xlu0 %1369
  %v1372 = vsel %vm108, %v1370, %v1287
  %1374 = vrot.lane.b32.xlu0 %v1361, 96
  %v1375 = vpop.permute.xlu0 %1374
  %v1377 = vsel %vm108, %v1375, %v1293
  %v1378 = vsel %vm108, %v1370, 0.0
  %v1379 = vpack.c.bf16 %v1372, %v1372
  %v1381 = vsel %vm233, %v1379, 0
  %1383 = vmatprep.subr.bf16.mxu0 0
  %1384 = vmatpush1.bf16.msra.mxu0 %v229
  %1385 = vmatprep.subr.bf16.mxu0 0
  %1386 = vmatpush1.bf16.msra.mxu0 %v230
  %1387 = vmatprep.subr.bf16.mxu0 0
  %1388 = vmatpush1.bf16.msra.mxu0 0
  %1389 = vmatprep.subr.bf16.mxu0 0
  %1390 = vmatpush1.bf16.msra.mxu0 0
  %1391 = vmatprep.subr.bf16.mxu0 0
  %1392 = vmatpush1.bf16.msra.mxu0 0
  %1393 = vmatprep.subr.bf16.mxu0 0
  %1394 = vmatpush1.bf16.msra.mxu0 0
  %1395 = vmatprep.subr.bf16.mxu0 0
  %1396 = vmatpush1.bf16.msra.mxu0 0
  %1397 = vmatprep.subr.bf16.mxu0 0
  %1398 = vmatpush1.bf16.msra.mxu0 0
  %1399 = vmatprep.subr.bf16.mxu0 0
  %1400 = vmatpush1.bf16.msra.mxu0 0
  %1401 = vmatprep.subr.bf16.mxu0 0
  %1402 = vmatpush1.bf16.msra.mxu0 0
  %1403 = vmatprep.subr.bf16.mxu0 0
  %1404 = vmatpush1.bf16.msra.mxu0 0
  %1405 = vmatprep.subr.bf16.mxu0 0
  %1406 = vmatpush1.bf16.msra.mxu0 0
  %1407 = vmatprep.subr.bf16.mxu0 0
  %1408 = vmatpush1.bf16.msra.mxu0 0
  %1409 = vmatprep.subr.bf16.mxu0 0
  %1410 = vmatpush1.bf16.msra.mxu0 0
  %1411 = vmatprep.subr.bf16.mxu0 0
  %1412 = vmatpush1.bf16.msra.mxu0 0
  %1413 = vmatprep.subr.bf16.mxu0 0
  %1414 = vmatpush1.bf16.msra.mxu0 0
  %1415 = vmatprep.mubr.bf16.mxu0 0
  %1416 = vmatmul.mubr.bf16.gmra.mrb[0].mxu0 %v1381
  %v1417 = vpop.f32.mrb[0].mxu0
  %v1418 = vadd.f32 0.0, %v1417
  %v1419 = vpop.f32.mrb[0].mxu0
  %v1420 = vpop.f32.mrb[0].mxu0
  %v1421 = vpop.f32.mrb[0].mxu0
  %1422 = vdwg.mxu0
  %v1424 = vrot.slane %v1418, 6
  %v1426 = vadd.f32 %v214, %v1424
  %v1427 = vxor.u32 %v1426, 2147483648
  %v1428 = vmul.f32 %v1427, 1.442695
  %v1429 = vpow.pop %v1428
  %v1430 = vadd.f32 %v1429, 1.0
  %v1431 = vrcp.pop %v1430
  %v1432 = vmul.f32 1.0, %v1431
  %v1433 = vtanh.pop %v1426
  %v1435 = vrot.slane %v1377, 6
  %1436 = vrot.lane.b32.xlu0 %v1435, 32
  %v1437 = vpop.permute.xlu0 %1436
  %v1439 = vmul.f32 %v1432, %v1437
  %1441 = vrot.lane.b32.xlu0 %v1433, 64
  %v1442 = vpop.permute.xlu0 %1441
  %v1444 = vmul.f32 %v1432, %v1442
  %1446 = vrot.lane.b32.xlu0 %v1444, 32
  %v1447 = vpop.permute.xlu0 %1446
  %v1449 = vadd.f32 %v1439, %v1447
  %v1450 = vtanh.pop %v1449
  %1452 = vrot.lane.b32.xlu0 %v1450, 64
  %v1453 = vpop.permute.xlu0 %1452
  %v1455 = vmul.f32 %v1432, %v1453
  %v1457 = vrot.slane %v1455, 2
  %1458 = vrot.lane.b32.xlu0 %v1457, 32
  %v1459 = vpop.permute.xlu0 %1458
  %v1461 = vsel %vm109, %v1459, %v1372
  %v1463 = vrot.slane %v1449, 2
  %1464 = vrot.lane.b32.xlu0 %v1463, 96
  %v1465 = vpop.permute.xlu0 %1464
  %v1467 = vsel %vm109, %v1465, %v1377
  %v1468 = vsel %vm109, %v1459, 0.0
  %v1469 = vpack.c.bf16 %v1461, %v1461
  %v1471 = vsel %vm233, %v1469, 0
  %1473 = vmatprep.subr.bf16.mxu0 0
  %1474 = vmatpush1.bf16.msra.mxu0 %v229
  %1475 = vmatprep.subr.bf16.mxu0 0
  %1476 = vmatpush1.bf16.msra.mxu0 %v230
  %1477 = vmatprep.subr.bf16.mxu0 0
  %1478 = vmatpush1.bf16.msra.mxu0 0
  %1479 = vmatprep.subr.bf16.mxu0 0
  %1480 = vmatpush1.bf16.msra.mxu0 0
  %1481 = vmatprep.subr.bf16.mxu0 0
  %1482 = vmatpush1.bf16.msra.mxu0 0
  %1483 = vmatprep.subr.bf16.mxu0 0
  %1484 = vmatpush1.bf16.msra.mxu0 0
  %1485 = vmatprep.subr.bf16.mxu0 0
  %1486 = vmatpush1.bf16.msra.mxu0 0
  %1487 = vmatprep.subr.bf16.mxu0 0
  %1488 = vmatpush1.bf16.msra.mxu0 0
  %1489 = vmatprep.subr.bf16.mxu0 0
  %1490 = vmatpush1.bf16.msra.mxu0 0
  %1491 = vmatprep.subr.bf16.mxu0 0
  %1492 = vmatpush1.bf16.msra.mxu0 0
  %1493 = vmatprep.subr.bf16.mxu0 0
  %1494 = vmatpush1.bf16.msra.mxu0 0
  %1495 = vmatprep.subr.bf16.mxu0 0
  %1496 = vmatpush1.bf16.msra.mxu0 0
  %1497 = vmatprep.subr.bf16.mxu0 0
  %1498 = vmatpush1.bf16.msra.mxu0 0
  %1499 = vmatprep.subr.bf16.mxu0 0
  %1500 = vmatpush1.bf16.msra.mxu0 0
  %1501 = vmatprep.subr.bf16.mxu0 0
  %1502 = vmatpush1.bf16.msra.mxu0 0
  %1503 = vmatprep.subr.bf16.mxu0 0
  %1504 = vmatpush1.bf16.msra.mxu0 0
  %1505 = vmatprep.mubr.bf16.mxu0 0
  %1506 = vmatmul.mubr.bf16.gmra.mrb[0].mxu0 %v1471
  %v1507 = vpop.f32.mrb[0].mxu0
  %v1508 = vadd.f32 0.0, %v1507
  %v1509 = vpop.f32.mrb[0].mxu0
  %v1510 = vpop.f32.mrb[0].mxu0
  %v1511 = vpop.f32.mrb[0].mxu0
  %1512 = vdwg.mxu0
  %v1514 = vrot.slane %v1508, 4
  %v1516 = vadd.f32 %v214, %v1514
  %v1517 = vxor.u32 %v1516, 2147483648
  %v1518 = vmul.f32 %v1517, 1.442695
  %v1519 = vpow.pop %v1518
  %v1520 = vadd.f32 %v1519, 1.0
  %v1521 = vrcp.pop %v1520
  %v1522 = vmul.f32 1.0, %v1521
  %v1523 = vtanh.pop %v1516
  %v1525 = vrot.slane %v1467, 4
  %1526 = vrot.lane.b32.xlu0 %v1525, 32
  %v1527 = vpop.permute.xlu0 %1526
  %v1529 = vmul.f32 %v1522, %v1527
  %1531 = vrot.lane.b32.xlu0 %v1523, 64
  %v1532 = vpop.permute.xlu0 %1531
  %v1534 = vmul.f32 %v1522, %v1532
  %1536 = vrot.lane.b32.xlu0 %v1534, 32
  %v1537 = vpop.permute.xlu0 %1536
  %v1539 = vadd.f32 %v1529, %v1537
  %v1540 = vtanh.pop %v1539
  %1542 = vrot.lane.b32.xlu0 %v1540, 64
  %v1543 = vpop.permute.xlu0 %1542
  %v1545 = vmul.f32 %v1522, %v1543
  %v1547 = vrot.slane %v1545, 4
  %1548 = vrot.lane.b32.xlu0 %v1547, 32
  %v1549 = vpop.permute.xlu0 %1548
  %v1551 = vsel %vm110, %v1549, %v1461
  %v1553 = vrot.slane %v1539, 4
  %1554 = vrot.lane.b32.xlu0 %v1553, 96
  %v1555 = vpop.permute.xlu0 %1554
  %v1557 = vsel %vm110, %v1555, %v1467
  %v1558 = vsel %vm110, %v1549, 0.0
  %v1559 = vpack.c.bf16 %v1551, %v1551
  %v1561 = vsel %vm233, %v1559, 0
  %1563 = vmatprep.subr.bf16.mxu0 0
  %1564 = vmatpush1.bf16.msra.mxu0 %v229
  %1565 = vmatprep.subr.bf16.mxu0 0
  %1566 = vmatpush1.bf16.msra.mxu0 %v230
  %1567 = vmatprep.subr.bf16.mxu0 0
  %1568 = vmatpush1.bf16.msra.mxu0 0
  %1569 = vmatprep.subr.bf16.mxu0 0
  %1570 = vmatpush1.bf16.msra.mxu0 0
  %1571 = vmatprep.subr.bf16.mxu0 0
  %1572 = vmatpush1.bf16.msra.mxu0 0
  %1573 = vmatprep.subr.bf16.mxu0 0
  %1574 = vmatpush1.bf16.msra.mxu0 0
  %1575 = vmatprep.subr.bf16.mxu0 0
  %1576 = vmatpush1.bf16.msra.mxu0 0
  %1577 = vmatprep.subr.bf16.mxu0 0
  %1578 = vmatpush1.bf16.msra.mxu0 0
  %1579 = vmatprep.subr.bf16.mxu0 0
  %1580 = vmatpush1.bf16.msra.mxu0 0
  %1581 = vmatprep.subr.bf16.mxu0 0
  %1582 = vmatpush1.bf16.msra.mxu0 0
  %1583 = vmatprep.subr.bf16.mxu0 0
  %1584 = vmatpush1.bf16.msra.mxu0 0
  %1585 = vmatprep.subr.bf16.mxu0 0
  %1586 = vmatpush1.bf16.msra.mxu0 0
  %1587 = vmatprep.subr.bf16.mxu0 0
  %1588 = vmatpush1.bf16.msra.mxu0 0
  %1589 = vmatprep.subr.bf16.mxu0 0
  %1590 = vmatpush1.bf16.msra.mxu0 0
  %1591 = vmatprep.subr.bf16.mxu0 0
  %1592 = vmatpush1.bf16.msra.mxu0 0
  %1593 = vmatprep.subr.bf16.mxu0 0
  %1594 = vmatpush1.bf16.msra.mxu0 0
  %1595 = vmatprep.mubr.bf16.mxu0 0
  %1596 = vmatmul.mubr.bf16.gmra.mrb[0].mxu0 %v1561
  %v1597 = vpop.f32.mrb[0].mxu0
  %v1598 = vadd.f32 0.0, %v1597
  %v1599 = vpop.f32.mrb[0].mxu0
  %v1600 = vpop.f32.mrb[0].mxu0
  %v1601 = vpop.f32.mrb[0].mxu0
  %1602 = vdwg.mxu0
  %v1604 = vrot.slane %v1598, 2
  %v1606 = vadd.f32 %v214, %v1604
  %v1607 = vxor.u32 %v1606, 2147483648
  %v1608 = vmul.f32 %v1607, 1.442695
  %v1609 = vpow.pop %v1608
  %v1610 = vadd.f32 %v1609, 1.0
  %v1611 = vrcp.pop %v1610
  %v1612 = vmul.f32 1.0, %v1611
  %v1613 = vtanh.pop %v1606
  %v1615 = vrot.slane %v1557, 2
  %1616 = vrot.lane.b32.xlu0 %v1615, 32
  %v1617 = vpop.permute.xlu0 %1616
  %v1619 = vmul.f32 %v1612, %v1617
  %1621 = vrot.lane.b32.xlu0 %v1613, 64
  %v1622 = vpop.permute.xlu0 %1621
  %v1624 = vmul.f32 %v1612, %v1622
  %1626 = vrot.lane.b32.xlu0 %v1624, 32
  %v1627 = vpop.permute.xlu0 %1626
  %v1629 = vadd.f32 %v1619, %v1627
  %v1630 = vtanh.pop %v1629
  %1632 = vrot.lane.b32.xlu0 %v1630, 64
  %v1633 = vpop.permute.xlu0 %1632
  %v1635 = vmul.f32 %v1612, %v1633
  %v1637 = vrot.slane %v1635, 6
  %1638 = vrot.lane.b32.xlu0 %v1637, 32
  %v1639 = vpop.permute.xlu0 %1638
  %v1641 = vsel %vm111, %v1639, 0.0
  %1643 = vrot.lane.b32.xlu0 %v1641, 32
  %v1644 = vpop.permute.xlu0 %1643
  %1647 = vrot.lane.b32.xlu0 %v316, 32
  %v1648 = vpop.permute.xlu0 %1647
  %vm1650 = vcmask 130048
  %v1651 = vsel %vm1650, %v316, %v1641
  %v1652 = vsel %vm233, %v1651, %v1644
  %vm1653 = vcmask 392192
  %v1654 = vsel %vm1653, %v1652, %v1648
  %1656 = vrot.lane.b32.xlu0 %v1558, 32
  %v1657 = vpop.permute.xlu0 %1656
  %1660 = vrot.lane.b32.xlu0 %v406, 32
  %v1661 = vpop.permute.xlu0 %1660
  %v1663 = vsel %vm1650, %v406, %v1558
  %v1664 = vsel %vm233, %v1663, %v1657
  %v1665 = vsel %vm1653, %v1664, %v1661
  %1667 = vrot.lane.b32.xlu0 %v1468, 32
  %v1668 = vpop.permute.xlu0 %1667
  %1671 = vrot.lane.b32.xlu0 %v496, 32
  %v1672 = vpop.permute.xlu0 %1671
  %v1674 = vsel %vm1650, %v496, %v1468
  %v1675 = vsel %vm233, %v1674, %v1668
  %v1676 = vsel %vm1653, %v1675, %v1672
  %1678 = vrot.lane.b32.xlu0 %v1378, 32
  %v1679 = vpop.permute.xlu0 %1678
  %1682 = vrot.lane.b32.xlu0 %v586, 32
  %v1683 = vpop.permute.xlu0 %1682
  %v1685 = vsel %vm1650, %v586, %v1378
  %v1686 = vsel %vm233, %v1685, %v1679
  %v1687 = vsel %vm1653, %v1686, %v1683
  %1689 = vrot.lane.b32.xlu0 %v1294, 32
  %v1690 = vpop.permute.xlu0 %1689
  %1693 = vrot.lane.b32.xlu0 %v670, 32
  %v1694 = vpop.permute.xlu0 %1693
  %v1696 = vsel %vm1650, %v670, %v1294
  %v1697 = vsel %vm233, %v1696, %v1690
  %v1698 = vsel %vm1653, %v1697, %v1694
  %1700 = vrot.lane.b32.xlu0 %v1204, 32
  %v1701 = vpop.permute.xlu0 %1700
  %1704 = vrot.lane.b32.xlu0 %v760, 32
  %v1705 = vpop.permute.xlu0 %1704
  %v1707 = vsel %vm1650, %v760, %v1204
  %v1708 = vsel %vm233, %v1707, %v1701
  %v1709 = vsel %vm1653, %v1708, %v1705
  %1711 = vrot.lane.b32.xlu0 %v1114, 32
  %v1712 = vpop.permute.xlu0 %1711
  %1715 = vrot.lane.b32.xlu0 %v850, 32
  %v1716 = vpop.permute.xlu0 %1715
  %v1718 = vsel %vm1650, %v850, %v1114
  %v1719 = vsel %vm233, %v1718, %v1712
  %v1720 = vsel %vm1653, %v1719, %v1716
  %1722 = vrot.lane.b32.xlu0 %v1024, 32
  %v1723 = vpop.permute.xlu0 %1722
  %1726 = vrot.lane.b32.xlu0 %v940, 32
  %v1727 = vpop.permute.xlu0 %1726
  %v1729 = vsel %vm1650, %v940, %v1024
  %v1730 = vsel %vm233, %v1729, %v1723
  %v1731 = vsel %vm1653, %v1730, %v1727
  %v1732 = vsel %vm1650, %v1024, %v940
  %v1733 = vsel %vm233, %v1732, %v1727
  %v1734 = vsel %vm1653, %v1733, %v1723
  %v1735 = vsel %vm1650, %v1114, %v850
  %v1736 = vsel %vm233, %v1735, %v1716
  %v1737 = vsel %vm1653, %v1736, %v1712
  %v1738 = vsel %vm1650, %v1204, %v760
  %v1739 = vsel %vm233, %v1738, %v1705
  %v1740 = vsel %vm1653, %v1739, %v1701
  %v1741 = vsel %vm1650, %v1294, %v670
  %v1742 = vsel %vm233, %v1741, %v1694
  %v1743 = vsel %vm1653, %v1742, %v1690
  %v1744 = vsel %vm1650, %v1378, %v586
  %v1745 = vsel %vm233, %v1744, %v1683
  %v1746 = vsel %vm1653, %v1745, %v1679
  %v1747 = vsel %vm1650, %v1468, %v496
  %v1748 = vsel %vm233, %v1747, %v1672
  %v1749 = vsel %vm1653, %v1748, %v1668
  %v1750 = vsel %vm1650, %v1558, %v406
  %v1751 = vsel %vm233, %v1750, %v1661
  %v1752 = vsel %vm1653, %v1751, %v1657
  %v1753 = vsel %vm1650, %v1641, %v316
  %v1754 = vsel %vm233, %v1753, %v1648
  %v1755 = vsel %vm1653, %v1754, %v1644
  %v1757 = vrot.slane %v1665, 6
  %v1760 = vrot.slane %v1676, 4
  %v1763 = vrot.slane %v1687, 2
  %v1766 = vrot.slane %v1709, 6
  %v1769 = vrot.slane %v1720, 4
  %v1772 = vrot.slane %v1731, 2
  %v1775 = vrot.slane %v1737, 6
  %v1778 = vrot.slane %v1740, 4
  %v1781 = vrot.slane %v1743, 2
  %v1784 = vrot.slane %v1749, 6
  %v1787 = vrot.slane %v1752, 4
  %v1790 = vrot.slane %v1755, 2
  %vm1792 = vcmask 1041408
  %v1793 = vsel %vm1792, %v1654, %v1757
  %vm1794 = vcmask 1043456
  %v1795 = vsel %vm1794, %v1793, %v1760
  %vm1796 = vcmask 1045504
  %v1797 = vsel %vm1796, %v1795, %v1763
  %v1798 = vsel %vm1792, %v1698, %v1766
  %v1799 = vsel %vm1794, %v1798, %v1769
  %v1800 = vsel %vm1796, %v1799, %v1772
  %v1801 = vsel %vm1792, %v1734, %v1775
  %v1802 = vsel %vm1794, %v1801, %v1778
  %v1803 = vsel %vm1796, %v1802, %v1781
  %v1804 = vsel %vm1792, %v1746, %v1784
  %v1805 = vsel %vm1794, %v1804, %v1787
  %v1806 = vsel %vm1796, %v1805, %v1790
  %v1807 = vpack.c.bf16 %v1800, %v1797
  %v1808 = vpack.c.bf16 %v1806, %v1803
  %v1809 = vlaneseq
  %v1810 = vshrl.u32 %v1809, 7
  %v1811 = vsub.s32 0, %v1810
  %v1812 = vrot.slane %v75, %v1811
  %v1821 = vunpack.c.l.b16 %v37
  %v1822 = vunpack.c.l.b16 %v38
  %v1823 = vunpack.c.l.b16 %v39
  %v1824 = vunpack.c.l.b16 %v40
  %v1825 = vunpack.c.l.b16 %v41
  %v1826 = vunpack.c.l.b16 %v42
  %v1827 = vunpack.c.l.b16 %v43
  %v1828 = vunpack.c.l.b16 %v44
  %v1829 = vpack.c.b16 %v1822, %v1821
  %v1830 = vpack.c.b16 %v1824, %v1823
  %v1831 = vpack.c.b16 %v1826, %v1825
  %v1832 = vpack.c.b16 %v1828, %v1827
  %vm1837 = vcmask 523264
  %v1839 = vsel %vm1837, %v1807, 0
  %v1842 = vsel %vm1837, %v1808, 0
  %1844 = vmatprep.subr.bf16.mxu0 0
  %1845 = vmatpush1.bf16.msra.mxu0 %v1829
  %1846 = vmatprep.subr.bf16.mxu0 0
  %1847 = vmatpush1.bf16.msra.mxu0 %v1830
  %1848 = vmatprep.subr.bf16.mxu0 0
  %1849 = vmatpush1.bf16.msra.mxu0 %v1831
  %1850 = vmatprep.subr.bf16.mxu0 0
  %1851 = vmatpush1.bf16.msra.mxu0 %v1832
  %1852 = vmatprep.subr.bf16.mxu0 0
  %1853 = vmatpush1.bf16.msra.mxu0 0
  %1854 = vmatprep.subr.bf16.mxu0 0
  %1855 = vmatpush1.bf16.msra.mxu0 0
  %1856 = vmatprep.subr.bf16.mxu0 0
  %1857 = vmatpush1.bf16.msra.mxu0 0
  %1858 = vmatprep.subr.bf16.mxu0 0
  %1859 = vmatpush1.bf16.msra.mxu0 0
  %1860 = vmatprep.subr.bf16.mxu0 0
  %1861 = vmatpush1.bf16.msra.mxu0 0
  %1862 = vmatprep.subr.bf16.mxu0 0
  %1863 = vmatpush1.bf16.msra.mxu0 0
  %1864 = vmatprep.subr.bf16.mxu0 0
  %1865 = vmatpush1.bf16.msra.mxu0 0
  %1866 = vmatprep.subr.bf16.mxu0 0
  %1867 = vmatpush1.bf16.msra.mxu0 0
  %1868 = vmatprep.subr.bf16.mxu0 0
  %1869 = vmatpush1.bf16.msra.mxu0 0
  %1870 = vmatprep.subr.bf16.mxu0 0
  %1871 = vmatpush1.bf16.msra.mxu0 0
  %1872 = vmatprep.subr.bf16.mxu0 0
  %1873 = vmatpush1.bf16.msra.mxu0 0
  %1874 = vmatprep.subr.bf16.mxu0 0
  %1875 = vmatpush1.bf16.msra.mxu0 0
  %1876 = vmatprep.mubr.bf16.mxu0 0
  %1877 = vmatmul.mubr.bf16.gmra.mrb[0].mxu0 %v1839
  %v1878 = vpop.f32.mrb[0].mxu0
  %v1879 = vadd.f32 %v1812, %v1878
  %v1880 = vpop.f32.mrb[0].mxu0
  %v1881 = vpop.f32.mrb[0].mxu0
  %v1882 = vadd.f32 %v1812, %v1881
  %v1883 = vpop.f32.mrb[0].mxu0
  %1884 = vmatprep.mubr.bf16.mxu0 0
  %1885 = vmatmul.mubr.bf16.gmra.mrb[0].mxu0 %v1842
  %v1886 = vpop.f32.mrb[0].mxu0
  %v1887 = vadd.f32 %v1812, %v1886
  %v1888 = vpop.f32.mrb[0].mxu0
  %v1889 = vpop.f32.mrb[0].mxu0
  %v1890 = vadd.f32 %v1812, %v1889
  %v1891 = vpop.f32.mrb[0].mxu0
  %1892 = vdwg.mxu0
  %s1893 = scalar_lea.vmem %s5, 4
  %v1894 = vld [vmem:[%s1893] sm:$0x3]
  %s1895 = scalar_lea.vmem %s5, 6
  %v1896 = vld [vmem:[%s1895] sm:$0x3]
  %v1897 = vpack.c.bf16 %v1894, %v1894
  %v1902 = vunpack.c.l.b16 %v45
  %v1903 = vunpack.c.l.b16 %v46
  %v1904 = vunpack.c.l.b16 %v47
  %v1905 = vunpack.c.l.b16 %v48
  %v1906 = vpack.c.b16 %v1903, %v1902
  %v1907 = vpack.c.b16 %v1905, %v1904
  %v1911 = vsel %vm233, %v1897, 0
  %1913 = vmatprep.subr.bf16.mxu0 0
  %1914 = vmatpush1.bf16.msra.mxu0 %v1906
  %1915 = vmatprep.subr.bf16.mxu0 0
  %1916 = vmatpush1.bf16.msra.mxu0 %v1907
  %1917 = vmatprep.subr.bf16.mxu0 0
  %1918 = vmatpush1.bf16.msra.mxu0 0
  %1919 = vmatprep.subr.bf16.mxu0 0
  %1920 = vmatpush1.bf16.msra.mxu0 0
  %1921 = vmatprep.subr.bf16.mxu0 0
  %1922 = vmatpush1.bf16.msra.mxu0 0
  %1923 = vmatprep.subr.bf16.mxu0 0
  %1924 = vmatpush1.bf16.msra.mxu0 0
  %1925 = vmatprep.subr.bf16.mxu0 0
  %1926 = vmatpush1.bf16.msra.mxu0 0
  %1927 = vmatprep.subr.bf16.mxu0 0
  %1928 = vmatpush1.bf16.msra.mxu0 0
  %1929 = vmatprep.subr.bf16.mxu0 0
  %1930 = vmatpush1.bf16.msra.mxu0 0
  %1931 = vmatprep.subr.bf16.mxu0 0
  %1932 = vmatpush1.bf16.msra.mxu0 0
  %1933 = vmatprep.subr.bf16.mxu0 0
  %1934 = vmatpush1.bf16.msra.mxu0 0
  %1935 = vmatprep.subr.bf16.mxu0 0
  %1936 = vmatpush1.bf16.msra.mxu0 0
  %1937 = vmatprep.subr.bf16.mxu0 0
  %1938 = vmatpush1.bf16.msra.mxu0 0
  %1939 = vmatprep.subr.bf16.mxu0 0
  %1940 = vmatpush1.bf16.msra.mxu0 0
  %1941 = vmatprep.subr.bf16.mxu0 0
  %1942 = vmatpush1.bf16.msra.mxu0 0
  %1943 = vmatprep.subr.bf16.mxu0 0
  %1944 = vmatpush1.bf16.msra.mxu0 0
  %1945 = vmatprep.mubr.bf16.mxu0 0
  %1946 = vmatmul.mubr.bf16.gmra.mrb[0].mxu0 %v1911
  %v1947 = vpop.f32.mrb[0].mxu0
  %v1948 = vadd.f32 0.0, %v1947
  %v1949 = vpop.f32.mrb[0].mxu0
  %v1950 = vpop.f32.mrb[0].mxu0
  %v1951 = vpop.f32.mrb[0].mxu0
  %1952 = vdwg.mxu0
  %v1953 = vadd.f32 %v1879, %v1948
  %v1954 = vxor.u32 %v1953, 2147483648
  %v1955 = vmul.f32 %v1954, 1.442695
  %v1956 = vpow.pop %v1955
  %v1957 = vadd.f32 %v1956, 1.0
  %v1958 = vrcp.pop %v1957
  %v1959 = vmul.f32 1.0, %v1958
  %v1960 = vtanh.pop %v1953
  %1962 = vrot.lane.b32.xlu0 %v1896, 32
  %v1963 = vpop.permute.xlu0 %1962
  %v1965 = vmul.f32 %v1959, %v1963
  %1967 = vrot.lane.b32.xlu0 %v1960, 64
  %v1968 = vpop.permute.xlu0 %1967
  %v1970 = vmul.f32 %v1959, %v1968
  %1972 = vrot.lane.b32.xlu0 %v1970, 32
  %v1973 = vpop.permute.xlu0 %1972
  %v1975 = vadd.f32 %v1965, %v1973
  %v1976 = vtanh.pop %v1975
  %1978 = vrot.lane.b32.xlu0 %v1976, 64
  %v1979 = vpop.permute.xlu0 %1978
  %v1981 = vmul.f32 %v1959, %v1979
  %1983 = vrot.lane.b32.xlu0 %v1981, 32
  %v1984 = vpop.permute.xlu0 %1983
  %v1986 = vsel %vm96, %v1984, %v1894
  %1988 = vrot.lane.b32.xlu0 %v1975, 96
  %v1989 = vpop.permute.xlu0 %1988
  %v1991 = vsel %vm96, %v1989, %v1896
  %v1992 = vsel %vm96, %v1984, 0.0
  %v1993 = vpack.c.bf16 %v1986, %v1986
  %v1995 = vsel %vm233, %v1993, 0
  %1997 = vmatprep.subr.bf16.mxu0 0
  %1998 = vmatpush1.bf16.msra.mxu0 %v1906
  %1999 = vmatprep.subr.bf16.mxu0 0
  %2000 = vmatpush1.bf16.msra.mxu0 %v1907
  %2001 = vmatprep.subr.bf16.mxu0 0
  %2002 = vmatpush1.bf16.msra.mxu0 0
  %2003 = vmatprep.subr.bf16.mxu0 0
  %2004 = vmatpush1.bf16.msra.mxu0 0
  %2005 = vmatprep.subr.bf16.mxu0 0
  %2006 = vmatpush1.bf16.msra.mxu0 0
  %2007 = vmatprep.subr.bf16.mxu0 0
  %2008 = vmatpush1.bf16.msra.mxu0 0
  %2009 = vmatprep.subr.bf16.mxu0 0
  %2010 = vmatpush1.bf16.msra.mxu0 0
  %2011 = vmatprep.subr.bf16.mxu0 0
  %2012 = vmatpush1.bf16.msra.mxu0 0
  %2013 = vmatprep.subr.bf16.mxu0 0
  %2014 = vmatpush1.bf16.msra.mxu0 0
  %2015 = vmatprep.subr.bf16.mxu0 0
  %2016 = vmatpush1.bf16.msra.mxu0 0
  %2017 = vmatprep.subr.bf16.mxu0 0
  %2018 = vmatpush1.bf16.msra.mxu0 0
  %2019 = vmatprep.subr.bf16.mxu0 0
  %2020 = vmatpush1.bf16.msra.mxu0 0
  %2021 = vmatprep.subr.bf16.mxu0 0
  %2022 = vmatpush1.bf16.msra.mxu0 0
  %2023 = vmatprep.subr.bf16.mxu0 0
  %2024 = vmatpush1.bf16.msra.mxu0 0
  %2025 = vmatprep.subr.bf16.mxu0 0
  %2026 = vmatpush1.bf16.msra.mxu0 0
  %2027 = vmatprep.subr.bf16.mxu0 0
  %2028 = vmatpush1.bf16.msra.mxu0 0
  %2029 = vmatprep.mubr.bf16.mxu0 0
  %2030 = vmatmul.mubr.bf16.gmra.mrb[0].mxu0 %v1995
  %v2031 = vpop.f32.mrb[0].mxu0
  %v2032 = vadd.f32 0.0, %v2031
  %v2033 = vpop.f32.mrb[0].mxu0
  %v2034 = vpop.f32.mrb[0].mxu0
  %v2035 = vpop.f32.mrb[0].mxu0
  %2036 = vdwg.mxu0
  %v2038 = vrot.slane %v2032, 6
  %v2040 = vadd.f32 %v1879, %v2038
  %v2041 = vxor.u32 %v2040, 2147483648
  %v2042 = vmul.f32 %v2041, 1.442695
  %v2043 = vpow.pop %v2042
  %v2044 = vadd.f32 %v2043, 1.0
  %v2045 = vrcp.pop %v2044
  %v2046 = vmul.f32 1.0, %v2045
  %v2047 = vtanh.pop %v2040
  %v2049 = vrot.slane %v1991, 6
  %2050 = vrot.lane.b32.xlu0 %v2049, 32
  %v2051 = vpop.permute.xlu0 %2050
  %v2053 = vmul.f32 %v2046, %v2051
  %2055 = vrot.lane.b32.xlu0 %v2047, 64
  %v2056 = vpop.permute.xlu0 %2055
  %v2058 = vmul.f32 %v2046, %v2056
  %2060 = vrot.lane.b32.xlu0 %v2058, 32
  %v2061 = vpop.permute.xlu0 %2060
  %v2063 = vadd.f32 %v2053, %v2061
  %v2064 = vtanh.pop %v2063
  %2066 = vrot.lane.b32.xlu0 %v2064, 64
  %v2067 = vpop.permute.xlu0 %2066
  %v2069 = vmul.f32 %v2046, %v2067
  %v2071 = vrot.slane %v2069, 2
  %2072 = vrot.lane.b32.xlu0 %v2071, 32
  %v2073 = vpop.permute.xlu0 %2072
  %v2075 = vsel %vm97, %v2073, %v1986
  %v2077 = vrot.slane %v2063, 2
  %2078 = vrot.lane.b32.xlu0 %v2077, 96
  %v2079 = vpop.permute.xlu0 %2078
  %v2081 = vsel %vm97, %v2079, %v1991
  %v2082 = vsel %vm97, %v2073, 0.0
  %v2083 = vpack.c.bf16 %v2075, %v2075
  %v2085 = vsel %vm233, %v2083, 0
  %2087 = vmatprep.subr.bf16.mxu0 0
  %2088 = vmatpush1.bf16.msra.mxu0 %v1906
  %2089 = vmatprep.subr.bf16.mxu0 0
  %2090 = vmatpush1.bf16.msra.mxu0 %v1907
  %2091 = vmatprep.subr.bf16.mxu0 0
  %2092 = vmatpush1.bf16.msra.mxu0 0
  %2093 = vmatprep.subr.bf16.mxu0 0
  %2094 = vmatpush1.bf16.msra.mxu0 0
  %2095 = vmatprep.subr.bf16.mxu0 0
  %2096 = vmatpush1.bf16.msra.mxu0 0
  %2097 = vmatprep.subr.bf16.mxu0 0
  %2098 = vmatpush1.bf16.msra.mxu0 0
  %2099 = vmatprep.subr.bf16.mxu0 0
  %2100 = vmatpush1.bf16.msra.mxu0 0
  %2101 = vmatprep.subr.bf16.mxu0 0
  %2102 = vmatpush1.bf16.msra.mxu0 0
  %2103 = vmatprep.subr.bf16.mxu0 0
  %2104 = vmatpush1.bf16.msra.mxu0 0
  %2105 = vmatprep.subr.bf16.mxu0 0
  %2106 = vmatpush1.bf16.msra.mxu0 0
  %2107 = vmatprep.subr.bf16.mxu0 0
  %2108 = vmatpush1.bf16.msra.mxu0 0
  %2109 = vmatprep.subr.bf16.mxu0 0
  %2110 = vmatpush1.bf16.msra.mxu0 0
  %2111 = vmatprep.subr.bf16.mxu0 0
  %2112 = vmatpush1.bf16.msra.mxu0 0
  %2113 = vmatprep.subr.bf16.mxu0 0
  %2114 = vmatpush1.bf16.msra.mxu0 0
  %2115 = vmatprep.subr.bf16.mxu0 0
  %2116 = vmatpush1.bf16.msra.mxu0 0
  %2117 = vmatprep.subr.bf16.mxu0 0
  %2118 = vmatpush1.bf16.msra.mxu0 0
  %2119 = vmatprep.mubr.bf16.mxu0 0
  %2120 = vmatmul.mubr.bf16.gmra.mrb[0].mxu0 %v2085
  %v2121 = vpop.f32.mrb[0].mxu0
  %v2122 = vadd.f32 0.0, %v2121
  %v2123 = vpop.f32.mrb[0].mxu0
  %v2124 = vpop.f32.mrb[0].mxu0
  %v2125 = vpop.f32.mrb[0].mxu0
  %2126 = vdwg.mxu0
  %v2128 = vrot.slane %v2122, 4
  %v2130 = vadd.f32 %v1879, %v2128
  %v2131 = vxor.u32 %v2130, 2147483648
  %v2132 = vmul.f32 %v2131, 1.442695
  %v2133 = vpow.pop %v2132
  %v2134 = vadd.f32 %v2133, 1.0
  %v2135 = vrcp.pop %v2134
  %v2136 = vmul.f32 1.0, %v2135
  %v2137 = vtanh.pop %v2130
  %v2139 = vrot.slane %v2081, 4
  %2140 = vrot.lane.b32.xlu0 %v2139, 32
  %v2141 = vpop.permute.xlu0 %2140
  %v2143 = vmul.f32 %v2136, %v2141
  %2145 = vrot.lane.b32.xlu0 %v2137, 64
  %v2146 = vpop.permute.xlu0 %2145
  %v2148 = vmul.f32 %v2136, %v2146
  %2150 = vrot.lane.b32.xlu0 %v2148, 32
  %v2151 = vpop.permute.xlu0 %2150
  %v2153 = vadd.f32 %v2143, %v2151
  %v2154 = vtanh.pop %v2153
  %2156 = vrot.lane.b32.xlu0 %v2154, 64
  %v2157 = vpop.permute.xlu0 %2156
  %v2159 = vmul.f32 %v2136, %v2157
  %v2161 = vrot.slane %v2159, 4
  %2162 = vrot.lane.b32.xlu0 %v2161, 32
  %v2163 = vpop.permute.xlu0 %2162
  %v2165 = vsel %vm98, %v2163, %v2075
  %v2167 = vrot.slane %v2153, 4
  %2168 = vrot.lane.b32.xlu0 %v2167, 96
  %v2169 = vpop.permute.xlu0 %2168
  %v2171 = vsel %vm98, %v2169, %v2081
  %v2172 = vsel %vm98, %v2163, 0.0
  %v2173 = vpack.c.bf16 %v2165, %v2165
  %v2175 = vsel %vm233, %v2173, 0
  %2177 = vmatprep.subr.bf16.mxu0 0
  %2178 = vmatpush1.bf16.msra.mxu0 %v1906
  %2179 = vmatprep.subr.bf16.mxu0 0
  %2180 = vmatpush1.bf16.msra.mxu0 %v1907
  %2181 = vmatprep.subr.bf16.mxu0 0
  %2182 = vmatpush1.bf16.msra.mxu0 0
  %2183 = vmatprep.subr.bf16.mxu0 0
  %2184 = vmatpush1.bf16.msra.mxu0 0
  %2185 = vmatprep.subr.bf16.mxu0 0
  %2186 = vmatpush1.bf16.msra.mxu0 0
  %2187 = vmatprep.subr.bf16.mxu0 0
  %2188 = vmatpush1.bf16.msra.mxu0 0
  %2189 = vmatprep.subr.bf16.mxu0 0
  %2190 = vmatpush1.bf16.msra.mxu0 0
  %2191 = vmatprep.subr.bf16.mxu0 0
  %2192 = vmatpush1.bf16.msra.mxu0 0
  %2193 = vmatprep.subr.bf16.mxu0 0
  %2194 = vmatpush1.bf16.msra.mxu0 0
  %2195 = vmatprep.subr.bf16.mxu0 0
  %2196 = vmatpush1.bf16.msra.mxu0 0
  %2197 = vmatprep.subr.bf16.mxu0 0
  %2198 = vmatpush1.bf16.msra.mxu0 0
  %2199 = vmatprep.subr.bf16.mxu0 0
  %2200 = vmatpush1.bf16.msra.mxu0 0
  %2201 = vmatprep.subr.bf16.mxu0 0
  %2202 = vmatpush1.bf16.msra.mxu0 0
  %2203 = vmatprep.subr.bf16.mxu0 0
  %2204 = vmatpush1.bf16.msra.mxu0 0
  %2205 = vmatprep.subr.bf16.mxu0 0
  %2206 = vmatpush1.bf16.msra.mxu0 0
  %2207 = vmatprep.subr.bf16.mxu0 0
  %2208 = vmatpush1.bf16.msra.mxu0 0
  %2209 = vmatprep.mubr.bf16.mxu0 0
  %2210 = vmatmul.mubr.bf16.gmra.mrb[0].mxu0 %v2175
  %v2211 = vpop.f32.mrb[0].mxu0
  %v2212 = vadd.f32 0.0, %v2211
  %v2213 = vpop.f32.mrb[0].mxu0
  %v2214 = vpop.f32.mrb[0].mxu0
  %v2215 = vpop.f32.mrb[0].mxu0
  %2216 = vdwg.mxu0
  %v2218 = vrot.slane %v2212, 2
  %v2220 = vadd.f32 %v1879, %v2218
  %v2221 = vxor.u32 %v2220, 2147483648
  %v2222 = vmul.f32 %v2221, 1.442695
  %v2223 = vpow.pop %v2222
  %v2224 = vadd.f32 %v2223, 1.0
  %v2225 = vrcp.pop %v2224
  %v2226 = vmul.f32 1.0, %v2225
  %v2227 = vtanh.pop %v2220
  %v2229 = vrot.slane %v2171, 2
  %2230 = vrot.lane.b32.xlu0 %v2229, 32
  %v2231 = vpop.permute.xlu0 %2230
  %v2233 = vmul.f32 %v2226, %v2231
  %2235 = vrot.lane.b32.xlu0 %v2227, 64
  %v2236 = vpop.permute.xlu0 %2235
  %v2238 = vmul.f32 %v2226, %v2236
  %2240 = vrot.lane.b32.xlu0 %v2238, 32
  %v2241 = vpop.permute.xlu0 %2240
  %v2243 = vadd.f32 %v2233, %v2241
  %v2244 = vtanh.pop %v2243
  %2246 = vrot.lane.b32.xlu0 %v2244, 64
  %v2247 = vpop.permute.xlu0 %2246
  %v2249 = vmul.f32 %v2226, %v2247
  %v2251 = vrot.slane %v2249, 6
  %2252 = vrot.lane.b32.xlu0 %v2251, 32
  %v2253 = vpop.permute.xlu0 %2252
  %v2255 = vsel %vm99, %v2253, %v2165
  %v2257 = vrot.slane %v2243, 6
  %2258 = vrot.lane.b32.xlu0 %v2257, 96
  %v2259 = vpop.permute.xlu0 %2258
  %v2261 = vsel %vm99, %v2259, %v2171
  %v2262 = vsel %vm99, %v2253, 0.0
  %v2263 = vpack.c.bf16 %v2255, %v2255
  %v2265 = vsel %vm233, %v2263, 0
  %2267 = vmatprep.subr.bf16.mxu0 0
  %2268 = vmatpush1.bf16.msra.mxu0 %v1906
  %2269 = vmatprep.subr.bf16.mxu0 0
  %2270 = vmatpush1.bf16.msra.mxu0 %v1907
  %2271 = vmatprep.subr.bf16.mxu0 0
  %2272 = vmatpush1.bf16.msra.mxu0 0
  %2273 = vmatprep.subr.bf16.mxu0 0
  %2274 = vmatpush1.bf16.msra.mxu0 0
  %2275 = vmatprep.subr.bf16.mxu0 0
  %2276 = vmatpush1.bf16.msra.mxu0 0
  %2277 = vmatprep.subr.bf16.mxu0 0
  %2278 = vmatpush1.bf16.msra.mxu0 0
  %2279 = vmatprep.subr.bf16.mxu0 0
  %2280 = vmatpush1.bf16.msra.mxu0 0
  %2281 = vmatprep.subr.bf16.mxu0 0
  %2282 = vmatpush1.bf16.msra.mxu0 0
  %2283 = vmatprep.subr.bf16.mxu0 0
  %2284 = vmatpush1.bf16.msra.mxu0 0
  %2285 = vmatprep.subr.bf16.mxu0 0
  %2286 = vmatpush1.bf16.msra.mxu0 0
  %2287 = vmatprep.subr.bf16.mxu0 0
  %2288 = vmatpush1.bf16.msra.mxu0 0
  %2289 = vmatprep.subr.bf16.mxu0 0
  %2290 = vmatpush1.bf16.msra.mxu0 0
  %2291 = vmatprep.subr.bf16.mxu0 0
  %2292 = vmatpush1.bf16.msra.mxu0 0
  %2293 = vmatprep.subr.bf16.mxu0 0
  %2294 = vmatpush1.bf16.msra.mxu0 0
  %2295 = vmatprep.subr.bf16.mxu0 0
  %2296 = vmatpush1.bf16.msra.mxu0 0
  %2297 = vmatprep.subr.bf16.mxu0 0
  %2298 = vmatpush1.bf16.msra.mxu0 0
  %2299 = vmatprep.mubr.bf16.mxu0 0
  %2300 = vmatmul.mubr.bf16.gmra.mrb[0].mxu0 %v2265
  %v2301 = vpop.f32.mrb[0].mxu0
  %v2302 = vadd.f32 0.0, %v2301
  %v2303 = vpop.f32.mrb[0].mxu0
  %v2304 = vpop.f32.mrb[0].mxu0
  %v2305 = vpop.f32.mrb[0].mxu0
  %2306 = vdwg.mxu0
  %v2307 = vadd.f32 %v1882, %v2302
  %v2308 = vxor.u32 %v2307, 2147483648
  %v2309 = vmul.f32 %v2308, 1.442695
  %v2310 = vpow.pop %v2309
  %v2311 = vadd.f32 %v2310, 1.0
  %v2312 = vrcp.pop %v2311
  %v2313 = vmul.f32 1.0, %v2312
  %v2314 = vtanh.pop %v2307
  %2316 = vrot.lane.b32.xlu0 %v2261, 32
  %v2317 = vpop.permute.xlu0 %2316
  %v2319 = vmul.f32 %v2313, %v2317
  %2321 = vrot.lane.b32.xlu0 %v2314, 64
  %v2322 = vpop.permute.xlu0 %2321
  %v2324 = vmul.f32 %v2313, %v2322
  %2326 = vrot.lane.b32.xlu0 %v2324, 32
  %v2327 = vpop.permute.xlu0 %2326
  %v2329 = vadd.f32 %v2319, %v2327
  %v2330 = vtanh.pop %v2329
  %2332 = vrot.lane.b32.xlu0 %v2330, 64
  %v2333 = vpop.permute.xlu0 %2332
  %v2335 = vmul.f32 %v2313, %v2333
  %2337 = vrot.lane.b32.xlu0 %v2335, 32
  %v2338 = vpop.permute.xlu0 %2337
  %v2340 = vsel %vm100, %v2338, %v2255
  %2342 = vrot.lane.b32.xlu0 %v2329, 96
  %v2343 = vpop.permute.xlu0 %2342
  %v2345 = vsel %vm100, %v2343, %v2261
  %v2346 = vsel %vm100, %v2338, 0.0
  %v2347 = vpack.c.bf16 %v2340, %v2340
  %v2349 = vsel %vm233, %v2347, 0
  %2351 = vmatprep.subr.bf16.mxu0 0
  %2352 = vmatpush1.bf16.msra.mxu0 %v1906
  %2353 = vmatprep.subr.bf16.mxu0 0
  %2354 = vmatpush1.bf16.msra.mxu0 %v1907
  %2355 = vmatprep.subr.bf16.mxu0 0
  %2356 = vmatpush1.bf16.msra.mxu0 0
  %2357 = vmatprep.subr.bf16.mxu0 0
  %2358 = vmatpush1.bf16.msra.mxu0 0
  %2359 = vmatprep.subr.bf16.mxu0 0
  %2360 = vmatpush1.bf16.msra.mxu0 0
  %2361 = vmatprep.subr.bf16.mxu0 0
  %2362 = vmatpush1.bf16.msra.mxu0 0
  %2363 = vmatprep.subr.bf16.mxu0 0
  %2364 = vmatpush1.bf16.msra.mxu0 0
  %2365 = vmatprep.subr.bf16.mxu0 0
  %2366 = vmatpush1.bf16.msra.mxu0 0
  %2367 = vmatprep.subr.bf16.mxu0 0
  %2368 = vmatpush1.bf16.msra.mxu0 0
  %2369 = vmatprep.subr.bf16.mxu0 0
  %2370 = vmatpush1.bf16.msra.mxu0 0
  %2371 = vmatprep.subr.bf16.mxu0 0
  %2372 = vmatpush1.bf16.msra.mxu0 0
  %2373 = vmatprep.subr.bf16.mxu0 0
  %2374 = vmatpush1.bf16.msra.mxu0 0
  %2375 = vmatprep.subr.bf16.mxu0 0
  %2376 = vmatpush1.bf16.msra.mxu0 0
  %2377 = vmatprep.subr.bf16.mxu0 0
  %2378 = vmatpush1.bf16.msra.mxu0 0
  %2379 = vmatprep.subr.bf16.mxu0 0
  %2380 = vmatpush1.bf16.msra.mxu0 0
  %2381 = vmatprep.subr.bf16.mxu0 0
  %2382 = vmatpush1.bf16.msra.mxu0 0
  %2383 = vmatprep.mubr.bf16.mxu0 0
  %2384 = vmatmul.mubr.bf16.gmra.mrb[0].mxu0 %v2349
  %v2385 = vpop.f32.mrb[0].mxu0
  %v2386 = vadd.f32 0.0, %v2385
  %v2387 = vpop.f32.mrb[0].mxu0
  %v2388 = vpop.f32.mrb[0].mxu0
  %v2389 = vpop.f32.mrb[0].mxu0
  %2390 = vdwg.mxu0
  %v2392 = vrot.slane %v2386, 6
  %v2394 = vadd.f32 %v1882, %v2392
  %v2395 = vxor.u32 %v2394, 2147483648
  %v2396 = vmul.f32 %v2395, 1.442695
  %v2397 = vpow.pop %v2396
  %v2398 = vadd.f32 %v2397, 1.0
  %v2399 = vrcp.pop %v2398
  %v2400 = vmul.f32 1.0, %v2399
  %v2401 = vtanh.pop %v2394
  %v2403 = vrot.slane %v2345, 6
  %2404 = vrot.lane.b32.xlu0 %v2403, 32
  %v2405 = vpop.permute.xlu0 %2404
  %v2407 = vmul.f32 %v2400, %v2405
  %2409 = vrot.lane.b32.xlu0 %v2401, 64
  %v2410 = vpop.permute.xlu0 %2409
  %v2412 = vmul.f32 %v2400, %v2410
  %2414 = vrot.lane.b32.xlu0 %v2412, 32
  %v2415 = vpop.permute.xlu0 %2414
  %v2417 = vadd.f32 %v2407, %v2415
  %v2418 = vtanh.pop %v2417
  %2420 = vrot.lane.b32.xlu0 %v2418, 64
  %v2421 = vpop.permute.xlu0 %2420
  %v2423 = vmul.f32 %v2400, %v2421
  %v2425 = vrot.slane %v2423, 2
  %2426 = vrot.lane.b32.xlu0 %v2425, 32
  %v2427 = vpop.permute.xlu0 %2426
  %v2429 = vsel %vm101, %v2427, %v2340
  %v2431 = vrot.slane %v2417, 2
  %2432 = vrot.lane.b32.xlu0 %v2431, 96
  %v2433 = vpop.permute.xlu0 %2432
  %v2435 = vsel %vm101, %v2433, %v2345
  %v2436 = vsel %vm101, %v2427, 0.0
  %v2437 = vpack.c.bf16 %v2429, %v2429
  %v2439 = vsel %vm233, %v2437, 0
  %2441 = vmatprep.subr.bf16.mxu0 0
  %2442 = vmatpush1.bf16.msra.mxu0 %v1906
  %2443 = vmatprep.subr.bf16.mxu0 0
  %2444 = vmatpush1.bf16.msra.mxu0 %v1907
  %2445 = vmatprep.subr.bf16.mxu0 0
  %2446 = vmatpush1.bf16.msra.mxu0 0
  %2447 = vmatprep.subr.bf16.mxu0 0
  %2448 = vmatpush1.bf16.msra.mxu0 0
  %2449 = vmatprep.subr.bf16.mxu0 0
  %2450 = vmatpush1.bf16.msra.mxu0 0
  %2451 = vmatprep.subr.bf16.mxu0 0
  %2452 = vmatpush1.bf16.msra.mxu0 0
  %2453 = vmatprep.subr.bf16.mxu0 0
  %2454 = vmatpush1.bf16.msra.mxu0 0
  %2455 = vmatprep.subr.bf16.mxu0 0
  %2456 = vmatpush1.bf16.msra.mxu0 0
  %2457 = vmatprep.subr.bf16.mxu0 0
  %2458 = vmatpush1.bf16.msra.mxu0 0
  %2459 = vmatprep.subr.bf16.mxu0 0
  %2460 = vmatpush1.bf16.msra.mxu0 0
  %2461 = vmatprep.subr.bf16.mxu0 0
  %2462 = vmatpush1.bf16.msra.mxu0 0
  %2463 = vmatprep.subr.bf16.mxu0 0
  %2464 = vmatpush1.bf16.msra.mxu0 0
  %2465 = vmatprep.subr.bf16.mxu0 0
  %2466 = vmatpush1.bf16.msra.mxu0 0
  %2467 = vmatprep.subr.bf16.mxu0 0
  %2468 = vmatpush1.bf16.msra.mxu0 0
  %2469 = vmatprep.subr.bf16.mxu0 0
  %2470 = vmatpush1.bf16.msra.mxu0 0
  %2471 = vmatprep.subr.bf16.mxu0 0
  %2472 = vmatpush1.bf16.msra.mxu0 0
  %2473 = vmatprep.mubr.bf16.mxu0 0
  %2474 = vmatmul.mubr.bf16.gmra.mrb[0].mxu0 %v2439
  %v2475 = vpop.f32.mrb[0].mxu0
  %v2476 = vadd.f32 0.0, %v2475
  %v2477 = vpop.f32.mrb[0].mxu0
  %v2478 = vpop.f32.mrb[0].mxu0
  %v2479 = vpop.f32.mrb[0].mxu0
  %2480 = vdwg.mxu0
  %v2482 = vrot.slane %v2476, 4
  %v2484 = vadd.f32 %v1882, %v2482
  %v2485 = vxor.u32 %v2484, 2147483648
  %v2486 = vmul.f32 %v2485, 1.442695
  %v2487 = vpow.pop %v2486
  %v2488 = vadd.f32 %v2487, 1.0
  %v2489 = vrcp.pop %v2488
  %v2490 = vmul.f32 1.0, %v2489
  %v2491 = vtanh.pop %v2484
  %v2493 = vrot.slane %v2435, 4
  %2494 = vrot.lane.b32.xlu0 %v2493, 32
  %v2495 = vpop.permute.xlu0 %2494
  %v2497 = vmul.f32 %v2490, %v2495
  %2499 = vrot.lane.b32.xlu0 %v2491, 64
  %v2500 = vpop.permute.xlu0 %2499
  %v2502 = vmul.f32 %v2490, %v2500
  %2504 = vrot.lane.b32.xlu0 %v2502, 32
  %v2505 = vpop.permute.xlu0 %2504
  %v2507 = vadd.f32 %v2497, %v2505
  %v2508 = vtanh.pop %v2507
  %2510 = vrot.lane.b32.xlu0 %v2508, 64
  %v2511 = vpop.permute.xlu0 %2510
  %v2513 = vmul.f32 %v2490, %v2511
  %v2515 = vrot.slane %v2513, 4
  %2516 = vrot.lane.b32.xlu0 %v2515, 32
  %v2517 = vpop.permute.xlu0 %2516
  %v2519 = vsel %vm102, %v2517, %v2429
  %v2521 = vrot.slane %v2507, 4
  %2522 = vrot.lane.b32.xlu0 %v2521, 96
  %v2523 = vpop.permute.xlu0 %2522
  %v2525 = vsel %vm102, %v2523, %v2435
  %v2526 = vsel %vm102, %v2517, 0.0
  %v2527 = vpack.c.bf16 %v2519, %v2519
  %v2529 = vsel %vm233, %v2527, 0
  %2531 = vmatprep.subr.bf16.mxu0 0
  %2532 = vmatpush1.bf16.msra.mxu0 %v1906
  %2533 = vmatprep.subr.bf16.mxu0 0
  %2534 = vmatpush1.bf16.msra.mxu0 %v1907
  %2535 = vmatprep.subr.bf16.mxu0 0
  %2536 = vmatpush1.bf16.msra.mxu0 0
  %2537 = vmatprep.subr.bf16.mxu0 0
  %2538 = vmatpush1.bf16.msra.mxu0 0
  %2539 = vmatprep.subr.bf16.mxu0 0
  %2540 = vmatpush1.bf16.msra.mxu0 0
  %2541 = vmatprep.subr.bf16.mxu0 0
  %2542 = vmatpush1.bf16.msra.mxu0 0
  %2543 = vmatprep.subr.bf16.mxu0 0
  %2544 = vmatpush1.bf16.msra.mxu0 0
  %2545 = vmatprep.subr.bf16.mxu0 0
  %2546 = vmatpush1.bf16.msra.mxu0 0
  %2547 = vmatprep.subr.bf16.mxu0 0
  %2548 = vmatpush1.bf16.msra.mxu0 0
  %2549 = vmatprep.subr.bf16.mxu0 0
  %2550 = vmatpush1.bf16.msra.mxu0 0
  %2551 = vmatprep.subr.bf16.mxu0 0
  %2552 = vmatpush1.bf16.msra.mxu0 0
  %2553 = vmatprep.subr.bf16.mxu0 0
  %2554 = vmatpush1.bf16.msra.mxu0 0
  %2555 = vmatprep.subr.bf16.mxu0 0
  %2556 = vmatpush1.bf16.msra.mxu0 0
  %2557 = vmatprep.subr.bf16.mxu0 0
  %2558 = vmatpush1.bf16.msra.mxu0 0
  %2559 = vmatprep.subr.bf16.mxu0 0
  %2560 = vmatpush1.bf16.msra.mxu0 0
  %2561 = vmatprep.subr.bf16.mxu0 0
  %2562 = vmatpush1.bf16.msra.mxu0 0
  %2563 = vmatprep.mubr.bf16.mxu0 0
  %2564 = vmatmul.mubr.bf16.gmra.mrb[0].mxu0 %v2529
  %v2565 = vpop.f32.mrb[0].mxu0
  %v2566 = vadd.f32 0.0, %v2565
  %v2567 = vpop.f32.mrb[0].mxu0
  %v2568 = vpop.f32.mrb[0].mxu0
  %v2569 = vpop.f32.mrb[0].mxu0
  %2570 = vdwg.mxu0
  %v2572 = vrot.slane %v2566, 2
  %v2574 = vadd.f32 %v1882, %v2572
  %v2575 = vxor.u32 %v2574, 2147483648
  %v2576 = vmul.f32 %v2575, 1.442695
  %v2577 = vpow.pop %v2576
  %v2578 = vadd.f32 %v2577, 1.0
  %v2579 = vrcp.pop %v2578
  %v2580 = vmul.f32 1.0, %v2579
  %v2581 = vtanh.pop %v2574
  %v2583 = vrot.slane %v2525, 2
  %2584 = vrot.lane.b32.xlu0 %v2583, 32
  %v2585 = vpop.permute.xlu0 %2584
  %v2587 = vmul.f32 %v2580, %v2585
  %2589 = vrot.lane.b32.xlu0 %v2581, 64
  %v2590 = vpop.permute.xlu0 %2589
  %v2592 = vmul.f32 %v2580, %v2590
  %2594 = vrot.lane.b32.xlu0 %v2592, 32
  %v2595 = vpop.permute.xlu0 %2594
  %v2597 = vadd.f32 %v2587, %v2595
  %v2598 = vtanh.pop %v2597
  %2600 = vrot.lane.b32.xlu0 %v2598, 64
  %v2601 = vpop.permute.xlu0 %2600
  %v2603 = vmul.f32 %v2580, %v2601
  %v2605 = vrot.slane %v2603, 6
  %2606 = vrot.lane.b32.xlu0 %v2605, 32
  %v2607 = vpop.permute.xlu0 %2606
  %v2609 = vsel %vm103, %v2607, %v2519
  %v2611 = vrot.slane %v2597, 6
  %2612 = vrot.lane.b32.xlu0 %v2611, 96
  %v2613 = vpop.permute.xlu0 %2612
  %v2615 = vsel %vm103, %v2613, %v2525
  %v2616 = vsel %vm103, %v2607, 0.0
  %v2617 = vpack.c.bf16 %v2609, %v2609
  %v2619 = vsel %vm233, %v2617, 0
  %2621 = vmatprep.subr.bf16.mxu0 0
  %2622 = vmatpush1.bf16.msra.mxu0 %v1906
  %2623 = vmatprep.subr.bf16.mxu0 0
  %2624 = vmatpush1.bf16.msra.mxu0 %v1907
  %2625 = vmatprep.subr.bf16.mxu0 0
  %2626 = vmatpush1.bf16.msra.mxu0 0
  %2627 = vmatprep.subr.bf16.mxu0 0
  %2628 = vmatpush1.bf16.msra.mxu0 0
  %2629 = vmatprep.subr.bf16.mxu0 0
  %2630 = vmatpush1.bf16.msra.mxu0 0
  %2631 = vmatprep.subr.bf16.mxu0 0
  %2632 = vmatpush1.bf16.msra.mxu0 0
  %2633 = vmatprep.subr.bf16.mxu0 0
  %2634 = vmatpush1.bf16.msra.mxu0 0
  %2635 = vmatprep.subr.bf16.mxu0 0
  %2636 = vmatpush1.bf16.msra.mxu0 0
  %2637 = vmatprep.subr.bf16.mxu0 0
  %2638 = vmatpush1.bf16.msra.mxu0 0
  %2639 = vmatprep.subr.bf16.mxu0 0
  %2640 = vmatpush1.bf16.msra.mxu0 0
  %2641 = vmatprep.subr.bf16.mxu0 0
  %2642 = vmatpush1.bf16.msra.mxu0 0
  %2643 = vmatprep.subr.bf16.mxu0 0
  %2644 = vmatpush1.bf16.msra.mxu0 0
  %2645 = vmatprep.subr.bf16.mxu0 0
  %2646 = vmatpush1.bf16.msra.mxu0 0
  %2647 = vmatprep.subr.bf16.mxu0 0
  %2648 = vmatpush1.bf16.msra.mxu0 0
  %2649 = vmatprep.subr.bf16.mxu0 0
  %2650 = vmatpush1.bf16.msra.mxu0 0
  %2651 = vmatprep.subr.bf16.mxu0 0
  %2652 = vmatpush1.bf16.msra.mxu0 0
  %2653 = vmatprep.mubr.bf16.mxu0 0
  %2654 = vmatmul.mubr.bf16.gmra.mrb[0].mxu0 %v2619
  %v2655 = vpop.f32.mrb[0].mxu0
  %v2656 = vadd.f32 0.0, %v2655
  %v2657 = vpop.f32.mrb[0].mxu0
  %v2658 = vpop.f32.mrb[0].mxu0
  %v2659 = vpop.f32.mrb[0].mxu0
  %2660 = vdwg.mxu0
  %v2661 = vadd.f32 %v1887, %v2656
  %v2662 = vxor.u32 %v2661, 2147483648
  %v2663 = vmul.f32 %v2662, 1.442695
  %v2664 = vpow.pop %v2663
  %v2665 = vadd.f32 %v2664, 1.0
  %v2666 = vrcp.pop %v2665
  %v2667 = vmul.f32 1.0, %v2666
  %v2668 = vtanh.pop %v2661
  %2670 = vrot.lane.b32.xlu0 %v2615, 32
  %v2671 = vpop.permute.xlu0 %2670
  %v2673 = vmul.f32 %v2667, %v2671
  %2675 = vrot.lane.b32.xlu0 %v2668, 64
  %v2676 = vpop.permute.xlu0 %2675
  %v2678 = vmul.f32 %v2667, %v2676
  %2680 = vrot.lane.b32.xlu0 %v2678, 32
  %v2681 = vpop.permute.xlu0 %2680
  %v2683 = vadd.f32 %v2673, %v2681
  %v2684 = vtanh.pop %v2683
  %2686 = vrot.lane.b32.xlu0 %v2684, 64
  %v2687 = vpop.permute.xlu0 %2686
  %v2689 = vmul.f32 %v2667, %v2687
  %2691 = vrot.lane.b32.xlu0 %v2689, 32
  %v2692 = vpop.permute.xlu0 %2691
  %v2694 = vsel %vm104, %v2692, %v2609
  %2696 = vrot.lane.b32.xlu0 %v2683, 96
  %v2697 = vpop.permute.xlu0 %2696
  %v2699 = vsel %vm104, %v2697, %v2615
  %v2700 = vsel %vm104, %v2692, 0.0
  %v2701 = vpack.c.bf16 %v2694, %v2694
  %v2703 = vsel %vm233, %v2701, 0
  %2705 = vmatprep.subr.bf16.mxu0 0
  %2706 = vmatpush1.bf16.msra.mxu0 %v1906
  %2707 = vmatprep.subr.bf16.mxu0 0
  %2708 = vmatpush1.bf16.msra.mxu0 %v1907
  %2709 = vmatprep.subr.bf16.mxu0 0
  %2710 = vmatpush1.bf16.msra.mxu0 0
  %2711 = vmatprep.subr.bf16.mxu0 0
  %2712 = vmatpush1.bf16.msra.mxu0 0
  %2713 = vmatprep.subr.bf16.mxu0 0
  %2714 = vmatpush1.bf16.msra.mxu0 0
  %2715 = vmatprep.subr.bf16.mxu0 0
  %2716 = vmatpush1.bf16.msra.mxu0 0
  %2717 = vmatprep.subr.bf16.mxu0 0
  %2718 = vmatpush1.bf16.msra.mxu0 0
  %2719 = vmatprep.subr.bf16.mxu0 0
  %2720 = vmatpush1.bf16.msra.mxu0 0
  %2721 = vmatprep.subr.bf16.mxu0 0
  %2722 = vmatpush1.bf16.msra.mxu0 0
  %2723 = vmatprep.subr.bf16.mxu0 0
  %2724 = vmatpush1.bf16.msra.mxu0 0
  %2725 = vmatprep.subr.bf16.mxu0 0
  %2726 = vmatpush1.bf16.msra.mxu0 0
  %2727 = vmatprep.subr.bf16.mxu0 0
  %2728 = vmatpush1.bf16.msra.mxu0 0
  %2729 = vmatprep.subr.bf16.mxu0 0
  %2730 = vmatpush1.bf16.msra.mxu0 0
  %2731 = vmatprep.subr.bf16.mxu0 0
  %2732 = vmatpush1.bf16.msra.mxu0 0
  %2733 = vmatprep.subr.bf16.mxu0 0
  %2734 = vmatpush1.bf16.msra.mxu0 0
  %2735 = vmatprep.subr.bf16.mxu0 0
  %2736 = vmatpush1.bf16.msra.mxu0 0
  %2737 = vmatprep.mubr.bf16.mxu0 0
  %2738 = vmatmul.mubr.bf16.gmra.mrb[0].mxu0 %v2703
  %v2739 = vpop.f32.mrb[0].mxu0
  %v2740 = vadd.f32 0.0, %v2739
  %v2741 = vpop.f32.mrb[0].mxu0
  %v2742 = vpop.f32.mrb[0].mxu0
  %v2743 = vpop.f32.mrb[0].mxu0
  %2744 = vdwg.mxu0
  %v2746 = vrot.slane %v2740, 6
  %v2748 = vadd.f32 %v1887, %v2746
  %v2749 = vxor.u32 %v2748, 2147483648
  %v2750 = vmul.f32 %v2749, 1.442695
  %v2751 = vpow.pop %v2750
  %v2752 = vadd.f32 %v2751, 1.0
  %v2753 = vrcp.pop %v2752
  %v2754 = vmul.f32 1.0, %v2753
  %v2755 = vtanh.pop %v2748
  %v2757 = vrot.slane %v2699, 6
  %2758 = vrot.lane.b32.xlu0 %v2757, 32
  %v2759 = vpop.permute.xlu0 %2758
  %v2761 = vmul.f32 %v2754, %v2759
  %2763 = vrot.lane.b32.xlu0 %v2755, 64
  %v2764 = vpop.permute.xlu0 %2763
  %v2766 = vmul.f32 %v2754, %v2764
  %2768 = vrot.lane.b32.xlu0 %v2766, 32
  %v2769 = vpop.permute.xlu0 %2768
  %v2771 = vadd.f32 %v2761, %v2769
  %v2772 = vtanh.pop %v2771
  %2774 = vrot.lane.b32.xlu0 %v2772, 64
  %v2775 = vpop.permute.xlu0 %2774
  %v2777 = vmul.f32 %v2754, %v2775
  %v2779 = vrot.slane %v2777, 2
  %2780 = vrot.lane.b32.xlu0 %v2779, 32
  %v2781 = vpop.permute.xlu0 %2780
  %v2783 = vsel %vm105, %v2781, %v2694
  %v2785 = vrot.slane %v2771, 2
  %2786 = vrot.lane.b32.xlu0 %v2785, 96
  %v2787 = vpop.permute.xlu0 %2786
  %v2789 = vsel %vm105, %v2787, %v2699
  %v2790 = vsel %vm105, %v2781, 0.0
  %v2791 = vpack.c.bf16 %v2783, %v2783
  %v2793 = vsel %vm233, %v2791, 0
  %2795 = vmatprep.subr.bf16.mxu0 0
  %2796 = vmatpush1.bf16.msra.mxu0 %v1906
  %2797 = vmatprep.subr.bf16.mxu0 0
  %2798 = vmatpush1.bf16.msra.mxu0 %v1907
  %2799 = vmatprep.subr.bf16.mxu0 0
  %2800 = vmatpush1.bf16.msra.mxu0 0
  %2801 = vmatprep.subr.bf16.mxu0 0
  %2802 = vmatpush1.bf16.msra.mxu0 0
  %2803 = vmatprep.subr.bf16.mxu0 0
  %2804 = vmatpush1.bf16.msra.mxu0 0
  %2805 = vmatprep.subr.bf16.mxu0 0
  %2806 = vmatpush1.bf16.msra.mxu0 0
  %2807 = vmatprep.subr.bf16.mxu0 0
  %2808 = vmatpush1.bf16.msra.mxu0 0
  %2809 = vmatprep.subr.bf16.mxu0 0
  %2810 = vmatpush1.bf16.msra.mxu0 0
  %2811 = vmatprep.subr.bf16.mxu0 0
  %2812 = vmatpush1.bf16.msra.mxu0 0
  %2813 = vmatprep.subr.bf16.mxu0 0
  %2814 = vmatpush1.bf16.msra.mxu0 0
  %2815 = vmatprep.subr.bf16.mxu0 0
  %2816 = vmatpush1.bf16.msra.mxu0 0
  %2817 = vmatprep.subr.bf16.mxu0 0
  %2818 = vmatpush1.bf16.msra.mxu0 0
  %2819 = vmatprep.subr.bf16.mxu0 0
  %2820 = vmatpush1.bf16.msra.mxu0 0
  %2821 = vmatprep.subr.bf16.mxu0 0
  %2822 = vmatpush1.bf16.msra.mxu0 0
  %2823 = vmatprep.subr.bf16.mxu0 0
  %2824 = vmatpush1.bf16.msra.mxu0 0
  %2825 = vmatprep.subr.bf16.mxu0 0
  %2826 = vmatpush1.bf16.msra.mxu0 0
  %2827 = vmatprep.mubr.bf16.mxu0 0
  %2828 = vmatmul.mubr.bf16.gmra.mrb[0].mxu0 %v2793
  %v2829 = vpop.f32.mrb[0].mxu0
  %v2830 = vadd.f32 0.0, %v2829
  %v2831 = vpop.f32.mrb[0].mxu0
  %v2832 = vpop.f32.mrb[0].mxu0
  %v2833 = vpop.f32.mrb[0].mxu0
  %2834 = vdwg.mxu0
  %v2836 = vrot.slane %v2830, 4
  %v2838 = vadd.f32 %v1887, %v2836
  %v2839 = vxor.u32 %v2838, 2147483648
  %v2840 = vmul.f32 %v2839, 1.442695
  %v2841 = vpow.pop %v2840
  %v2842 = vadd.f32 %v2841, 1.0
  %v2843 = vrcp.pop %v2842
  %v2844 = vmul.f32 1.0, %v2843
  %v2845 = vtanh.pop %v2838
  %v2847 = vrot.slane %v2789, 4
  %2848 = vrot.lane.b32.xlu0 %v2847, 32
  %v2849 = vpop.permute.xlu0 %2848
  %v2851 = vmul.f32 %v2844, %v2849
  %2853 = vrot.lane.b32.xlu0 %v2845, 64
  %v2854 = vpop.permute.xlu0 %2853
  %v2856 = vmul.f32 %v2844, %v2854
  %2858 = vrot.lane.b32.xlu0 %v2856, 32
  %v2859 = vpop.permute.xlu0 %2858
  %v2861 = vadd.f32 %v2851, %v2859
  %v2862 = vtanh.pop %v2861
  %2864 = vrot.lane.b32.xlu0 %v2862, 64
  %v2865 = vpop.permute.xlu0 %2864
  %v2867 = vmul.f32 %v2844, %v2865
  %v2869 = vrot.slane %v2867, 4
  %2870 = vrot.lane.b32.xlu0 %v2869, 32
  %v2871 = vpop.permute.xlu0 %2870
  %v2873 = vsel %vm106, %v2871, %v2783
  %v2875 = vrot.slane %v2861, 4
  %2876 = vrot.lane.b32.xlu0 %v2875, 96
  %v2877 = vpop.permute.xlu0 %2876
  %v2879 = vsel %vm106, %v2877, %v2789
  %v2880 = vsel %vm106, %v2871, 0.0
  %v2881 = vpack.c.bf16 %v2873, %v2873
  %v2883 = vsel %vm233, %v2881, 0
  %2885 = vmatprep.subr.bf16.mxu0 0
  %2886 = vmatpush1.bf16.msra.mxu0 %v1906
  %2887 = vmatprep.subr.bf16.mxu0 0
  %2888 = vmatpush1.bf16.msra.mxu0 %v1907
  %2889 = vmatprep.subr.bf16.mxu0 0
  %2890 = vmatpush1.bf16.msra.mxu0 0
  %2891 = vmatprep.subr.bf16.mxu0 0
  %2892 = vmatpush1.bf16.msra.mxu0 0
  %2893 = vmatprep.subr.bf16.mxu0 0
  %2894 = vmatpush1.bf16.msra.mxu0 0
  %2895 = vmatprep.subr.bf16.mxu0 0
  %2896 = vmatpush1.bf16.msra.mxu0 0
  %2897 = vmatprep.subr.bf16.mxu0 0
  %2898 = vmatpush1.bf16.msra.mxu0 0
  %2899 = vmatprep.subr.bf16.mxu0 0
  %2900 = vmatpush1.bf16.msra.mxu0 0
  %2901 = vmatprep.subr.bf16.mxu0 0
  %2902 = vmatpush1.bf16.msra.mxu0 0
  %2903 = vmatprep.subr.bf16.mxu0 0
  %2904 = vmatpush1.bf16.msra.mxu0 0
  %2905 = vmatprep.subr.bf16.mxu0 0
  %2906 = vmatpush1.bf16.msra.mxu0 0
  %2907 = vmatprep.subr.bf16.mxu0 0
  %2908 = vmatpush1.bf16.msra.mxu0 0
  %2909 = vmatprep.subr.bf16.mxu0 0
  %2910 = vmatpush1.bf16.msra.mxu0 0
  %2911 = vmatprep.subr.bf16.mxu0 0
  %2912 = vmatpush1.bf16.msra.mxu0 0
  %2913 = vmatprep.subr.bf16.mxu0 0
  %2914 = vmatpush1.bf16.msra.mxu0 0
  %2915 = vmatprep.subr.bf16.mxu0 0
  %2916 = vmatpush1.bf16.msra.mxu0 0
  %2917 = vmatprep.mubr.bf16.mxu0 0
  %2918 = vmatmul.mubr.bf16.gmra.mrb[0].mxu0 %v2883
  %v2919 = vpop.f32.mrb[0].mxu0
  %v2920 = vadd.f32 0.0, %v2919
  %v2921 = vpop.f32.mrb[0].mxu0
  %v2922 = vpop.f32.mrb[0].mxu0
  %v2923 = vpop.f32.mrb[0].mxu0
  %2924 = vdwg.mxu0
  %v2926 = vrot.slane %v2920, 2
  %v2928 = vadd.f32 %v1887, %v2926
  %v2929 = vxor.u32 %v2928, 2147483648
  %v2930 = vmul.f32 %v2929, 1.442695
  %v2931 = vpow.pop %v2930
  %v2932 = vadd.f32 %v2931, 1.0
  %v2933 = vrcp.pop %v2932
  %v2934 = vmul.f32 1.0, %v2933
  %v2935 = vtanh.pop %v2928
  %v2937 = vrot.slane %v2879, 2
  %2938 = vrot.lane.b32.xlu0 %v2937, 32
  %v2939 = vpop.permute.xlu0 %2938
  %v2941 = vmul.f32 %v2934, %v2939
  %2943 = vrot.lane.b32.xlu0 %v2935, 64
  %v2944 = vpop.permute.xlu0 %2943
  %v2946 = vmul.f32 %v2934, %v2944
  %2948 = vrot.lane.b32.xlu0 %v2946, 32
  %v2949 = vpop.permute.xlu0 %2948
  %v2951 = vadd.f32 %v2941, %v2949
  %v2952 = vtanh.pop %v2951
  %2954 = vrot.lane.b32.xlu0 %v2952, 64
  %v2955 = vpop.permute.xlu0 %2954
  %v2957 = vmul.f32 %v2934, %v2955
  %v2959 = vrot.slane %v2957, 6
  %2960 = vrot.lane.b32.xlu0 %v2959, 32
  %v2961 = vpop.permute.xlu0 %2960
  %v2963 = vsel %vm107, %v2961, %v2873
  %v2965 = vrot.slane %v2951, 6
  %2966 = vrot.lane.b32.xlu0 %v2965, 96
  %v2967 = vpop.permute.xlu0 %2966
  %v2969 = vsel %vm107, %v2967, %v2879
  %v2970 = vsel %vm107, %v2961, 0.0
  %v2971 = vpack.c.bf16 %v2963, %v2963
  %v2973 = vsel %vm233, %v2971, 0
  %2975 = vmatprep.subr.bf16.mxu0 0
  %2976 = vmatpush1.bf16.msra.mxu0 %v1906
  %2977 = vmatprep.subr.bf16.mxu0 0
  %2978 = vmatpush1.bf16.msra.mxu0 %v1907
  %2979 = vmatprep.subr.bf16.mxu0 0
  %2980 = vmatpush1.bf16.msra.mxu0 0
  %2981 = vmatprep.subr.bf16.mxu0 0
  %2982 = vmatpush1.bf16.msra.mxu0 0
  %2983 = vmatprep.subr.bf16.mxu0 0
  %2984 = vmatpush1.bf16.msra.mxu0 0
  %2985 = vmatprep.subr.bf16.mxu0 0
  %2986 = vmatpush1.bf16.msra.mxu0 0
  %2987 = vmatprep.subr.bf16.mxu0 0
  %2988 = vmatpush1.bf16.msra.mxu0 0
  %2989 = vmatprep.subr.bf16.mxu0 0
  %2990 = vmatpush1.bf16.msra.mxu0 0
  %2991 = vmatprep.subr.bf16.mxu0 0
  %2992 = vmatpush1.bf16.msra.mxu0 0
  %2993 = vmatprep.subr.bf16.mxu0 0
  %2994 = vmatpush1.bf16.msra.mxu0 0
  %2995 = vmatprep.subr.bf16.mxu0 0
  %2996 = vmatpush1.bf16.msra.mxu0 0
  %2997 = vmatprep.subr.bf16.mxu0 0
  %2998 = vmatpush1.bf16.msra.mxu0 0
  %2999 = vmatprep.subr.bf16.mxu0 0
  %3000 = vmatpush1.bf16.msra.mxu0 0
  %3001 = vmatprep.subr.bf16.mxu0 0
  %3002 = vmatpush1.bf16.msra.mxu0 0
  %3003 = vmatprep.subr.bf16.mxu0 0
  %3004 = vmatpush1.bf16.msra.mxu0 0
  %3005 = vmatprep.subr.bf16.mxu0 0
  %3006 = vmatpush1.bf16.msra.mxu0 0
  %3007 = vmatprep.mubr.bf16.mxu0 0
  %3008 = vmatmul.mubr.bf16.gmra.mrb[0].mxu0 %v2973
  %v3009 = vpop.f32.mrb[0].mxu0
  %v3010 = vadd.f32 0.0, %v3009
  %v3011 = vpop.f32.mrb[0].mxu0
  %v3012 = vpop.f32.mrb[0].mxu0
  %v3013 = vpop.f32.mrb[0].mxu0
  %3014 = vdwg.mxu0
  %v3015 = vadd.f32 %v1890, %v3010
  %v3016 = vxor.u32 %v3015, 2147483648
  %v3017 = vmul.f32 %v3016, 1.442695
  %v3018 = vpow.pop %v3017
  %v3019 = vadd.f32 %v3018, 1.0
  %v3020 = vrcp.pop %v3019
  %v3021 = vmul.f32 1.0, %v3020
  %v3022 = vtanh.pop %v3015
  %3024 = vrot.lane.b32.xlu0 %v2969, 32
  %v3025 = vpop.permute.xlu0 %3024
  %v3027 = vmul.f32 %v3021, %v3025
  %3029 = vrot.lane.b32.xlu0 %v3022, 64
  %v3030 = vpop.permute.xlu0 %3029
  %v3032 = vmul.f32 %v3021, %v3030
  %3034 = vrot.lane.b32.xlu0 %v3032, 32
  %v3035 = vpop.permute.xlu0 %3034
  %v3037 = vadd.f32 %v3027, %v3035
  %v3038 = vtanh.pop %v3037
  %3040 = vrot.lane.b32.xlu0 %v3038, 64
  %v3041 = vpop.permute.xlu0 %3040
  %v3043 = vmul.f32 %v3021, %v3041
  %3045 = vrot.lane.b32.xlu0 %v3043, 32
  %v3046 = vpop.permute.xlu0 %3045
  %v3048 = vsel %vm108, %v3046, %v2963
  %3050 = vrot.lane.b32.xlu0 %v3037, 96
  %v3051 = vpop.permute.xlu0 %3050
  %v3053 = vsel %vm108, %v3051, %v2969
  %v3054 = vsel %vm108, %v3046, 0.0
  %v3055 = vpack.c.bf16 %v3048, %v3048
  %v3057 = vsel %vm233, %v3055, 0
  %3059 = vmatprep.subr.bf16.mxu0 0
  %3060 = vmatpush1.bf16.msra.mxu0 %v1906
  %3061 = vmatprep.subr.bf16.mxu0 0
  %3062 = vmatpush1.bf16.msra.mxu0 %v1907
  %3063 = vmatprep.subr.bf16.mxu0 0
  %3064 = vmatpush1.bf16.msra.mxu0 0
  %3065 = vmatprep.subr.bf16.mxu0 0
  %3066 = vmatpush1.bf16.msra.mxu0 0
  %3067 = vmatprep.subr.bf16.mxu0 0
  %3068 = vmatpush1.bf16.msra.mxu0 0
  %3069 = vmatprep.subr.bf16.mxu0 0
  %3070 = vmatpush1.bf16.msra.mxu0 0
  %3071 = vmatprep.subr.bf16.mxu0 0
  %3072 = vmatpush1.bf16.msra.mxu0 0
  %3073 = vmatprep.subr.bf16.mxu0 0
  %3074 = vmatpush1.bf16.msra.mxu0 0
  %3075 = vmatprep.subr.bf16.mxu0 0
  %3076 = vmatpush1.bf16.msra.mxu0 0
  %3077 = vmatprep.subr.bf16.mxu0 0
  %3078 = vmatpush1.bf16.msra.mxu0 0
  %3079 = vmatprep.subr.bf16.mxu0 0
  %3080 = vmatpush1.bf16.msra.mxu0 0
  %3081 = vmatprep.subr.bf16.mxu0 0
  %3082 = vmatpush1.bf16.msra.mxu0 0
  %3083 = vmatprep.subr.bf16.mxu0 0
  %3084 = vmatpush1.bf16.msra.mxu0 0
  %3085 = vmatprep.subr.bf16.mxu0 0
  %3086 = vmatpush1.bf16.msra.mxu0 0
  %3087 = vmatprep.subr.bf16.mxu0 0
  %3088 = vmatpush1.bf16.msra.mxu0 0
  %3089 = vmatprep.subr.bf16.mxu0 0
  %3090 = vmatpush1.bf16.msra.mxu0 0
  %3091 = vmatprep.mubr.bf16.mxu0 0
  %3092 = vmatmul.mubr.bf16.gmra.mrb[0].mxu0 %v3057
  %v3093 = vpop.f32.mrb[0].mxu0
  %v3094 = vadd.f32 0.0, %v3093
  %v3095 = vpop.f32.mrb[0].mxu0
  %v3096 = vpop.f32.mrb[0].mxu0
  %v3097 = vpop.f32.mrb[0].mxu0
  %3098 = vdwg.mxu0
  %v3100 = vrot.slane %v3094, 6
  %v3102 = vadd.f32 %v1890, %v3100
  %v3103 = vxor.u32 %v3102, 2147483648
  %v3104 = vmul.f32 %v3103, 1.442695
  %v3105 = vpow.pop %v3104
  %v3106 = vadd.f32 %v3105, 1.0
  %v3107 = vrcp.pop %v3106
  %v3108 = vmul.f32 1.0, %v3107
  %v3109 = vtanh.pop %v3102
  %v3111 = vrot.slane %v3053, 6
  %3112 = vrot.lane.b32.xlu0 %v3111, 32
  %v3113 = vpop.permute.xlu0 %3112
  %v3115 = vmul.f32 %v3108, %v3113
  %3117 = vrot.lane.b32.xlu0 %v3109, 64
  %v3118 = vpop.permute.xlu0 %3117
  %v3120 = vmul.f32 %v3108, %v3118
  %3122 = vrot.lane.b32.xlu0 %v3120, 32
  %v3123 = vpop.permute.xlu0 %3122
  %v3125 = vadd.f32 %v3115, %v3123
  %v3126 = vtanh.pop %v3125
  %3128 = vrot.lane.b32.xlu0 %v3126, 64
  %v3129 = vpop.permute.xlu0 %3128
  %v3131 = vmul.f32 %v3108, %v3129
  %v3133 = vrot.slane %v3131, 2
  %3134 = vrot.lane.b32.xlu0 %v3133, 32
  %v3135 = vpop.permute.xlu0 %3134
  %v3137 = vsel %vm109, %v3135, %v3048
  %v3139 = vrot.slane %v3125, 2
  %3140 = vrot.lane.b32.xlu0 %v3139, 96
  %v3141 = vpop.permute.xlu0 %3140
  %v3143 = vsel %vm109, %v3141, %v3053
  %v3144 = vsel %vm109, %v3135, 0.0
  %v3145 = vpack.c.bf16 %v3137, %v3137
  %v3147 = vsel %vm233, %v3145, 0
  %3149 = vmatprep.subr.bf16.mxu0 0
  %3150 = vmatpush1.bf16.msra.mxu0 %v1906
  %3151 = vmatprep.subr.bf16.mxu0 0
  %3152 = vmatpush1.bf16.msra.mxu0 %v1907
  %3153 = vmatprep.subr.bf16.mxu0 0
  %3154 = vmatpush1.bf16.msra.mxu0 0
  %3155 = vmatprep.subr.bf16.mxu0 0
  %3156 = vmatpush1.bf16.msra.mxu0 0
  %3157 = vmatprep.subr.bf16.mxu0 0
  %3158 = vmatpush1.bf16.msra.mxu0 0
  %3159 = vmatprep.subr.bf16.mxu0 0
  %3160 = vmatpush1.bf16.msra.mxu0 0
  %3161 = vmatprep.subr.bf16.mxu0 0
  %3162 = vmatpush1.bf16.msra.mxu0 0
  %3163 = vmatprep.subr.bf16.mxu0 0
  %3164 = vmatpush1.bf16.msra.mxu0 0
  %3165 = vmatprep.subr.bf16.mxu0 0
  %3166 = vmatpush1.bf16.msra.mxu0 0
  %3167 = vmatprep.subr.bf16.mxu0 0
  %3168 = vmatpush1.bf16.msra.mxu0 0
  %3169 = vmatprep.subr.bf16.mxu0 0
  %3170 = vmatpush1.bf16.msra.mxu0 0
  %3171 = vmatprep.subr.bf16.mxu0 0
  %3172 = vmatpush1.bf16.msra.mxu0 0
  %3173 = vmatprep.subr.bf16.mxu0 0
  %3174 = vmatpush1.bf16.msra.mxu0 0
  %3175 = vmatprep.subr.bf16.mxu0 0
  %3176 = vmatpush1.bf16.msra.mxu0 0
  %3177 = vmatprep.subr.bf16.mxu0 0
  %3178 = vmatpush1.bf16.msra.mxu0 0
  %3179 = vmatprep.subr.bf16.mxu0 0
  %3180 = vmatpush1.bf16.msra.mxu0 0
  %3181 = vmatprep.mubr.bf16.mxu0 0
  %3182 = vmatmul.mubr.bf16.gmra.mrb[0].mxu0 %v3147
  %v3183 = vpop.f32.mrb[0].mxu0
  %v3184 = vadd.f32 0.0, %v3183
  %v3185 = vpop.f32.mrb[0].mxu0
  %v3186 = vpop.f32.mrb[0].mxu0
  %v3187 = vpop.f32.mrb[0].mxu0
  %3188 = vdwg.mxu0
  %v3190 = vrot.slane %v3184, 4
  %v3192 = vadd.f32 %v1890, %v3190
  %v3193 = vxor.u32 %v3192, 2147483648
  %v3194 = vmul.f32 %v3193, 1.442695
  %v3195 = vpow.pop %v3194
  %v3196 = vadd.f32 %v3195, 1.0
  %v3197 = vrcp.pop %v3196
  %v3198 = vmul.f32 1.0, %v3197
  %v3199 = vtanh.pop %v3192
  %v3201 = vrot.slane %v3143, 4
  %3202 = vrot.lane.b32.xlu0 %v3201, 32
  %v3203 = vpop.permute.xlu0 %3202
  %v3205 = vmul.f32 %v3198, %v3203
  %3207 = vrot.lane.b32.xlu0 %v3199, 64
  %v3208 = vpop.permute.xlu0 %3207
  %v3210 = vmul.f32 %v3198, %v3208
  %3212 = vrot.lane.b32.xlu0 %v3210, 32
  %v3213 = vpop.permute.xlu0 %3212
  %v3215 = vadd.f32 %v3205, %v3213
  %v3216 = vtanh.pop %v3215
  %3218 = vrot.lane.b32.xlu0 %v3216, 64
  %v3219 = vpop.permute.xlu0 %3218
  %v3221 = vmul.f32 %v3198, %v3219
  %v3223 = vrot.slane %v3221, 4
  %3224 = vrot.lane.b32.xlu0 %v3223, 32
  %v3225 = vpop.permute.xlu0 %3224
  %v3227 = vsel %vm110, %v3225, %v3137
  %v3229 = vrot.slane %v3215, 4
  %3230 = vrot.lane.b32.xlu0 %v3229, 96
  %v3231 = vpop.permute.xlu0 %3230
  %v3233 = vsel %vm110, %v3231, %v3143
  %v3234 = vsel %vm110, %v3225, 0.0
  %v3235 = vpack.c.bf16 %v3227, %v3227
  %v3237 = vsel %vm233, %v3235, 0
  %3239 = vmatprep.subr.bf16.mxu0 0
  %3240 = vmatpush1.bf16.msra.mxu0 %v1906
  %3241 = vmatprep.subr.bf16.mxu0 0
  %3242 = vmatpush1.bf16.msra.mxu0 %v1907
  %3243 = vmatprep.subr.bf16.mxu0 0
  %3244 = vmatpush1.bf16.msra.mxu0 0
  %3245 = vmatprep.subr.bf16.mxu0 0
  %3246 = vmatpush1.bf16.msra.mxu0 0
  %3247 = vmatprep.subr.bf16.mxu0 0
  %3248 = vmatpush1.bf16.msra.mxu0 0
  %3249 = vmatprep.subr.bf16.mxu0 0
  %3250 = vmatpush1.bf16.msra.mxu0 0
  %3251 = vmatprep.subr.bf16.mxu0 0
  %3252 = vmatpush1.bf16.msra.mxu0 0
  %3253 = vmatprep.subr.bf16.mxu0 0
  %3254 = vmatpush1.bf16.msra.mxu0 0
  %3255 = vmatprep.subr.bf16.mxu0 0
  %3256 = vmatpush1.bf16.msra.mxu0 0
  %3257 = vmatprep.subr.bf16.mxu0 0
  %3258 = vmatpush1.bf16.msra.mxu0 0
  %3259 = vmatprep.subr.bf16.mxu0 0
  %3260 = vmatpush1.bf16.msra.mxu0 0
  %3261 = vmatprep.subr.bf16.mxu0 0
  %3262 = vmatpush1.bf16.msra.mxu0 0
  %3263 = vmatprep.subr.bf16.mxu0 0
  %3264 = vmatpush1.bf16.msra.mxu0 0
  %3265 = vmatprep.subr.bf16.mxu0 0
  %3266 = vmatpush1.bf16.msra.mxu0 0
  %3267 = vmatprep.subr.bf16.mxu0 0
  %3268 = vmatpush1.bf16.msra.mxu0 0
  %3269 = vmatprep.subr.bf16.mxu0 0
  %3270 = vmatpush1.bf16.msra.mxu0 0
  %3271 = vmatprep.mubr.bf16.mxu0 0
  %3272 = vmatmul.mubr.bf16.gmra.mrb[0].mxu0 %v3237
  %v3273 = vpop.f32.mrb[0].mxu0
  %v3274 = vadd.f32 0.0, %v3273
  %v3275 = vpop.f32.mrb[0].mxu0
  %v3276 = vpop.f32.mrb[0].mxu0
  %v3277 = vpop.f32.mrb[0].mxu0
  %3278 = vdwg.mxu0
  %v3280 = vrot.slane %v3274, 2
  %v3282 = vadd.f32 %v1890, %v3280
  %v3283 = vxor.u32 %v3282, 2147483648
  %v3284 = vmul.f32 %v3283, 1.442695
  %v3285 = vpow.pop %v3284
  %v3286 = vadd.f32 %v3285, 1.0
  %v3287 = vrcp.pop %v3286
  %v3288 = vmul.f32 1.0, %v3287
  %v3289 = vtanh.pop %v3282
  %v3291 = vrot.slane %v3233, 2
  %3292 = vrot.lane.b32.xlu0 %v3291, 32
  %v3293 = vpop.permute.xlu0 %3292
  %v3295 = vmul.f32 %v3288, %v3293
  %3297 = vrot.lane.b32.xlu0 %v3289, 64
  %v3298 = vpop.permute.xlu0 %3297
  %v3300 = vmul.f32 %v3288, %v3298
  %3302 = vrot.lane.b32.xlu0 %v3300, 32
  %v3303 = vpop.permute.xlu0 %3302
  %v3305 = vadd.f32 %v3295, %v3303
  %v3306 = vtanh.pop %v3305
  %3308 = vrot.lane.b32.xlu0 %v3306, 64
  %v3309 = vpop.permute.xlu0 %3308
  %v3311 = vmul.f32 %v3288, %v3309
  %v3313 = vrot.slane %v3311, 6
  %3314 = vrot.lane.b32.xlu0 %v3313, 32
  %v3315 = vpop.permute.xlu0 %3314
  %v3317 = vsel %vm111, %v3315, 0.0
  %v3318 = vmax.f32 %v1992, %v2082
  %v3319 = vmax.f32 %v3318, %v2172
  %v3320 = vmax.f32 %v3319, %v2262
  %v3321 = vmax.f32 %v3320, %v2346
  %v3322 = vmax.f32 %v3321, %v2436
  %v3323 = vmax.f32 %v3322, %v2526
  %v3324 = vmax.f32 %v3323, %v2616
  %v3325 = vmax.f32 %v3324, %v2700
  %v3326 = vmax.f32 %v3325, %v2790
  %v3327 = vmax.f32 %v3326, %v2880
  %v3328 = vmax.f32 %v3327, %v2970
  %v3329 = vmax.f32 %v3328, %v3054
  %v3330 = vmax.f32 %v3329, %v3144
  %v3331 = vmax.f32 %v3330, %v3234
  %v3332 = vmax.f32 %v3331, %v3317
  %v3333 = vld [vmem:[%s3] sm:$0xf]
  %v3334 = vld [vmem:[%s3 + $0x4] sm:$0xf]
  %v3335 = vld [vmem:[%s3 + $0x8] sm:$0xf]
  %v3336 = vld [vmem:[%s3 + $0xc] sm:$0x3]
  %v3337 = vlaneseq
  %v3338 = vshrl.u32 %v3337, 7
  %v3339 = vsub.s32 0, %v3338
  %v3340 = vrot.slane %v76, %v3339
  %v3345 = vunpack.c.l.b16 %v3333
  %v3346 = vunpack.c.l.b16 %v3334
  %v3347 = vunpack.c.l.b16 %v3335
  %v3348 = vunpack.c.l.b16 %v3336
  %v3349 = vpack.c.b16 %v3346, %v3345
  %v3350 = vpack.c.b16 %v3348, %v3347
  %v3364 = vunpack.c.l.b16 %v49
  %v3365 = vunpack.c.l.b16 %v50
  %v3366 = vunpack.c.l.b16 %v51
  %v3367 = vunpack.c.l.b16 %v52
  %v3368 = vunpack.c.l.b16 %v53
  %v3369 = vunpack.c.l.b16 %v54
  %v3370 = vunpack.c.l.b16 %v55
  %v3371 = vunpack.c.l.b16 %v56
  %v3372 = vunpack.c.l.b16 %v57
  %v3373 = vunpack.c.l.b16 %v58
  %v3374 = vunpack.c.l.b16 %v59
  %v3375 = vunpack.c.l.b16 %v60
  %v3376 = vunpack.c.l.b16 %v61
  %v3377 = vpack.c.b16 %v3365, %v3364
  %v3378 = vpack.c.b16 %v3367, %v3366
  %v3379 = vpack.c.b16 %v3369, %v3368
  %v3380 = vpack.c.b16 %v3371, %v3370
  %v3381 = vpack.c.b16 %v3373, %v3372
  %v3382 = vpack.c.b16 %v3375, %v3374
  %v3383 = vpack.c.b16 %v3376, %v3376
  %vm3390 = vcmask 809984
  %v3392 = vsel %vm3390, %v3349, 0
  %v3395 = vsel %vm3390, %v3350, 0
  %v3397 = vsel %vm164, 4294967295, 65535
  %v3398 = vsel %vm1792, %v3397, 0
  %v3400 = vand.u32 %v3383, %v3398
  %3402 = vmatprep.subr.bf16.mxu0 0
  %3403 = vmatpush1.bf16.msra.mxu0 %v3377
  %3404 = vmatprep.subr.bf16.mxu0 0
  %3405 = vmatpush1.bf16.msra.mxu0 %v3378
  %3406 = vmatprep.subr.bf16.mxu0 0
  %3407 = vmatpush1.bf16.msra.mxu0 %v3379
  %3408 = vmatprep.subr.bf16.mxu0 0
  %3409 = vmatpush1.bf16.msra.mxu0 %v3380
  %3410 = vmatprep.subr.bf16.mxu0 0
  %3411 = vmatpush1.bf16.msra.mxu0 %v3381
  %3412 = vmatprep.subr.bf16.mxu0 0
  %3413 = vmatpush1.bf16.msra.mxu0 %v3382
  %3414 = vmatprep.subr.bf16.mxu0 0
  %3415 = vmatpush1.bf16.msra.mxu0 %v3400
  %3416 = vmatprep.subr.bf16.mxu0 0
  %3417 = vmatpush1.bf16.msra.mxu0 0
  %3418 = vmatprep.subr.bf16.mxu0 0
  %3419 = vmatpush1.bf16.msra.mxu0 0
  %3420 = vmatprep.subr.bf16.mxu0 0
  %3421 = vmatpush1.bf16.msra.mxu0 0
  %3422 = vmatprep.subr.bf16.mxu0 0
  %3423 = vmatpush1.bf16.msra.mxu0 0
  %3424 = vmatprep.subr.bf16.mxu0 0
  %3425 = vmatpush1.bf16.msra.mxu0 0
  %3426 = vmatprep.subr.bf16.mxu0 0
  %3427 = vmatpush1.bf16.msra.mxu0 0
  %3428 = vmatprep.subr.bf16.mxu0 0
  %3429 = vmatpush1.bf16.msra.mxu0 0
  %3430 = vmatprep.subr.bf16.mxu0 0
  %3431 = vmatpush1.bf16.msra.mxu0 0
  %3432 = vmatprep.subr.bf16.mxu0 0
  %3433 = vmatpush1.bf16.msra.mxu0 0
  %3434 = vmatprep.mubr.bf16.mxu0 0
  %3435 = vmatmul.mubr.bf16.gmra.mrb[0].mxu0 %v3392
  %v3436 = vpop.f32.mrb[0].mxu0
  %v3437 = vadd.f32 %v3340, %v3436
  %v3438 = vpop.f32.mrb[0].mxu0
  %v3439 = vpop.f32.mrb[0].mxu0
  %v3440 = vadd.f32 %v3340, %v3439
  %v3441 = vpop.f32.mrb[0].mxu0
  %3442 = vmatprep.mubr.bf16.mxu0 0
  %3443 = vmatmul.mubr.bf16.gmra.mrb[0].mxu0 %v3395
  %v3444 = vpop.f32.mrb[0].mxu0
  %v3445 = vadd.f32 %v3340, %v3444
  %v3446 = vpop.f32.mrb[0].mxu0
  %v3447 = vpop.f32.mrb[0].mxu0
  %v3448 = vpop.f32.mrb[0].mxu0
  %3449 = vdwg.mxu0
  %v3450 = vmax.f32 %v3437, 0.0
  %v3451 = vmax.f32 %v3440, 0.0
  %v3452 = vmax.f32 %v3445, 0.0
  %v3454 = vrot.slane %v3450, 2
  %v3456 = vmax.f32 %v3450, %v3454
  %v3457 = vrot.slane %v3450, 4
  %v3459 = vmax.f32 %v3456, %v3457
  %v3461 = vrot.slane %v3451, 2
  %v3463 = vmax.f32 %v3450, %v3461
  %v3464 = vrot.slane %v3451, 4
  %v3466 = vmax.f32 %v3463, %v3464
  %v3467 = vmax.f32 %v3451, %v3461
  %v3469 = vrot.slane %v3452, 4
  %v3471 = vmax.f32 %v3467, %v3469
  %v3472 = vrot.slane %v3452, 2
  %v3474 = vmax.f32 %v3452, %v3472
  %v3475 = vmax.f32 %v3474, %v3469
  %v3477 = vrot.slane %v3466, 6
  %3478 = vrot.lane.b32.xlu0 %v3477, 32
  %v3479 = vpop.permute.xlu0 %3478
  %v3482 = vrot.slane %v3471, 4
  %3483 = vrot.lane.b32.xlu0 %v3482, 64
  %v3484 = vpop.permute.xlu0 %3483
  %v3486 = vsel %vm233, %v3459, %v3479
  %v3487 = vsel %vm1837, %v3486, %v3484
  %v3488 = vrot.slane %v3471, 6
  %3489 = vrot.lane.b32.xlu0 %v3488, 32
  %v3490 = vpop.permute.xlu0 %3489
  %v3493 = vrot.slane %v3475, 4
  %3494 = vrot.lane.b32.xlu0 %v3493, 64
  %v3495 = vpop.permute.xlu0 %3494
  %v3497 = vsel %vm233, %v3466, %v3490
  %v3498 = vsel %vm1837, %v3497, %v3495
  %v3500 = vrot.slane %v3498, 4
  %v3502 = vsel %vm1792, %v3487, %v3500
  %v3503 = vpack.c.bf16 %v3502, %v3502
  %v3504 = vlaneseq
  %v3505 = vshrl.u32 %v3504, 7
  %v3506 = vsub.s32 0, %v3505
  %v3507 = vrot.slane %v77, %v3506
  %v3520 = vunpack.c.l.b16 %v62
  %v3521 = vunpack.c.l.b16 %v63
  %v3522 = vunpack.c.l.b16 %v64
  %v3523 = vunpack.c.l.b16 %v65
  %v3524 = vunpack.c.l.b16 %v66
  %v3525 = vunpack.c.l.b16 %v67
  %v3526 = vunpack.c.l.b16 %v68
  %v3527 = vunpack.c.l.b16 %v69
  %v3528 = vunpack.c.l.b16 %v70
  %v3529 = vunpack.c.l.b16 %v71
  %v3530 = vunpack.c.l.b16 %v72
  %v3531 = vunpack.c.l.b16 %v73
  %v3532 = vpack.c.b16 %v3521, %v3520
  %v3533 = vpack.c.b16 %v3523, %v3522
  %v3534 = vpack.c.b16 %v3525, %v3524
  %v3535 = vpack.c.b16 %v3527, %v3526
  %v3536 = vpack.c.b16 %v3529, %v3528
  %v3537 = vpack.c.b16 %v3531, %v3530
  %vm3544 = vcmask 785408
  %v3546 = vsel %vm3544, %v3503, 0
  %3548 = vmatprep.subr.bf16.mxu0 0
  %3549 = vmatpush1.bf16.msra.mxu0 %v3532
  %3550 = vmatprep.subr.bf16.mxu0 0
  %3551 = vmatpush1.bf16.msra.mxu0 %v3533
  %3552 = vmatprep.subr.bf16.mxu0 0
  %3553 = vmatpush1.bf16.msra.mxu0 %v3534
  %3554 = vmatprep.subr.bf16.mxu0 0
  %3555 = vmatpush1.bf16.msra.mxu0 %v3535
  %3556 = vmatprep.subr.bf16.mxu0 0
  %3557 = vmatpush1.bf16.msra.mxu0 %v3536
  %3558 = vmatprep.subr.bf16.mxu0 0
  %3559 = vmatpush1.bf16.msra.mxu0 %v3537
  %3560 = vmatprep.subr.bf16.mxu0 0
  %3561 = vmatpush1.bf16.msra.mxu0 0
  %3562 = vmatprep.subr.bf16.mxu0 0
  %3563 = vmatpush1.bf16.msra.mxu0 0
  %3564 = vmatprep.subr.bf16.mxu0 0
  %3565 = vmatpush1.bf16.msra.mxu0 0
  %3566 = vmatprep.subr.bf16.mxu0 0
  %3567 = vmatpush1.bf16.msra.mxu0 0
  %3568 = vmatprep.subr.bf16.mxu0 0
  %3569 = vmatpush1.bf16.msra.mxu0 0
  %3570 = vmatprep.subr.bf16.mxu0 0
  %3571 = vmatpush1.bf16.msra.mxu0 0
  %3572 = vmatprep.subr.bf16.mxu0 0
  %3573 = vmatpush1.bf16.msra.mxu0 0
  %3574 = vmatprep.subr.bf16.mxu0 0
  %3575 = vmatpush1.bf16.msra.mxu0 0
  %3576 = vmatprep.subr.bf16.mxu0 0
  %3577 = vmatpush1.bf16.msra.mxu0 0
  %3578 = vmatprep.subr.bf16.mxu0 0
  %3579 = vmatpush1.bf16.msra.mxu0 0
  %3580 = vmatprep.mubr.bf16.mxu0 0
  %3581 = vmatmul.mubr.bf16.gmra.mrb[0].mxu0 %v3546
  %v3582 = vpop.f32.mrb[0].mxu0
  %v3583 = vadd.f32 %v3507, %v3582
  %v3584 = vpop.f32.mrb[0].mxu0
  %v3585 = vpop.f32.mrb[0].mxu0
  %v3586 = vpop.f32.mrb[0].mxu0
  %3587 = vdwg.mxu0
  %v3588 = vmax.f32 %v3583, 0.0
  %v3590 = vrot.slane %v3588, 2
  %v3592 = vmax.f32 %v3588, %v3590
  %3594 = vrot.lane.b32.xlu0 %v3592, 32
  %v3595 = vpop.permute.xlu0 %3594
  %v3597 = vsel %vm233, %v3332, %v3595
  %v3598 = vlaneseq
  %v3599 = vshrl.u32 %v3598, 7
  %v3600 = vsub.s32 0, %v3599
  %v3601 = vrot.slane %v78, %v3600
  %v3602 = vmul.f32 %v3597, %v3601
  %vm3603 = vcmask 517120
  %v3604 = vsel %vm3603, %v3602, 0.0
  %3605 = vadd.xlane.f32.xlu0 %v3604
  %v3606 = vpop.xlane.xlu0 %3605
  %v3607 = vlaneseq
  %v3608 = vshrl.u32 %v3607, 7
  %v3609 = vsub.s32 0, %v3608
  %v3610 = vrot.slane %v79, %v3609
  %v3611 = vadd.f32 %v3606, %v3610
  %v3612 = vxor.u32 %v3611, 2147483648
  %v3613 = vmul.f32 %v3612, 1.442695
  %v3614 = vpow.pop %v3613
  %v3615 = vadd.f32 %v3614, 1.0
  %v3616 = vrcp.pop %v3615
  %v3617 = vmul.f32 1.0, %v3616
  %vm3618 = vcmask 1024
  %3619 = vst.msk [vmem:[%s6] sm:$0x3] %vm3618, %v3617
  // Predicated region
  $region26: #{sentiment_forward.1} parent=0 // pred_check
    _
  $region27: #{sentiment_forward.1} parent=0 // pred_check_branch
    %3621 = sbr.rel (0) target = $region29
  $region28: #{sentiment_forward.1} parent=0 // pred_region
    _
  $region29: #{sentiment_forward.1} parent=0 // pred_fallthru
    _
  // Predicated region
  $region30: #{sentiment_forward.1} parent=0 // pred_check
    _
  $region31: #{sentiment_forward.1} parent=0 // pred_check_branch
    %3623 = sbr.rel (0) target = $region33
  $region32: #{sentiment_forward.1} parent=0 // pred_region
    _
  $region33: #{sentiment_forward.1} parent=0 // pred_fallthru
    _

</llo_original>
